<compile_context>
chip_gen: v6e
topology: v6e:2x2x1
jax: 0.10.0
libtpu: 0.0.40
codegen_flags: <defaults>
</compile_context>

<pallas_src>
import math
import functools

import jax
import jax.numpy as jnp
from jax.experimental import pallas as pl
from jax.experimental.pallas import tpu as pltpu


# ----------------------------- tiling helpers -------------------------------

def _pick_row_tile(M, target=512, min_steps=2):
    """Largest divisor of M that is a multiple of 8 (or M itself), <= target,
    preferring >= min_steps grid steps so v7x's two TensorCores both get work."""
    best_any = None
    for d in range(min(target, M), 0, -1):
        if M % d:
            continue
        if d % 8 == 0 or d == M:
            if best_any is None:
                best_any = d
            if d % 8 == 0 and M // d >= min_steps:
                return d
    return best_any if best_any is not None else M


def _pick_group_count(G, rows_per_group, target_rows=512, min_steps=2):
    """Number of windows processed per grid step in the attention kernel."""
    best_any = None
    for d in range(G, 0, -1):
        if G % d or d * rows_per_group > target_rows:
            continue
        if best_any is None:
            best_any = d
        if G // d >= min_steps:
            return d
    return best_any if best_any is not None else 1


def _compiler_params(est_bytes):
    # Never lower below the 32 MiB scoped default; cap below v7x's 64 MiB physical VMEM.
    limit = int(min(max(2 * est_bytes + (8 << 20), 32 << 20), 64 << 20))
    return pltpu.CompilerParams(dimension_semantics=("parallel",),
                                vmem_limit_bytes=limit)


# ----------------------------- Pallas kernels ------------------------------

def _patch_embed_kernel(p_ref, w_ref, pos_ref, g_ref, b_ref, o_ref, *, eps):
    # conv-as-matmul (Conv2d bias=False) + positional embedding + LayerNorm1 (fp32 stats).
    h = jnp.dot(p_ref[...], w_ref[...], preferred_element_type=jnp.float32)
    h = h + pos_ref[...].astype(jnp.float32)
    mu = jnp.mean(h, axis=-1, keepdims=True)
    var = jnp.mean(jnp.square(h - mu), axis=-1, keepdims=True)
    y = (h - mu) * jax.lax.rsqrt(var + eps)
    y = y * g_ref[...].astype(jnp.float32) + b_ref[...].astype(jnp.float32)
    o_ref[...] = y.astype(o_ref.dtype)


def patch_embed(patches, conv_w, pos, g, b, eps=1e-5):
    """patches: (M, C*p*p) @ conv_w: (C*p*p, D) + pos: (M, D), then LayerNorm -> (M, D)."""
    M, K = patches.shape
    D = conv_w.shape[1]
    tm = _pick_row_tile(M)
    isz = jnp.dtype(patches.dtype).itemsize
    est = (K * D + 2 * D) * isz + 2 * tm * (K + 2 * D) * 4
    return pl.pallas_call(
        functools.partial(_patch_embed_kernel, eps=eps),
        out_shape=jax.ShapeDtypeStruct((M, D), patches.dtype),
        grid=(M // tm,),
        in_specs=[pl.BlockSpec((tm, K), lambda i: (i, 0)),
                  pl.BlockSpec((K, D), lambda i: (0, 0)),
                  pl.BlockSpec((tm, D), lambda i: (i, 0)),
                  pl.BlockSpec((1, D), lambda i: (0, 0)),
                  pl.BlockSpec((1, D), lambda i: (0, 0))],
        out_specs=pl.BlockSpec((tm, D), lambda i: (i, 0)),
        compiler_params=_compiler_params(est),
    )(patches, conv_w, pos, g.reshape(1, D), b.reshape(1, D))


def _layernorm_kernel(x_ref, g_ref, b_ref, o_ref, *, eps):
    x = x_ref[...].astype(jnp.float32)          # LayerNorm always computes in fp32
    mu = jnp.mean(x, axis=-1, keepdims=True)
    var = jnp.mean(jnp.square(x - mu), axis=-1, keepdims=True)
    y = (x - mu) * jax.lax.rsqrt(var + eps)
    y = y * g_ref[...].astype(jnp.float32) + b_ref[...].astype(jnp.float32)
    o_ref[...] = y.astype(o_ref.dtype)


def layernorm(x, g, b, eps=1e-5):
    M, D = x.shape
    tm = _pick_row_tile(M)
    est = 2 * tm * 2 * D * 4
    return pl.pallas_call(
        functools.partial(_layernorm_kernel, eps=eps),
        out_shape=jax.ShapeDtypeStruct((M, D), x.dtype),
        grid=(M // tm,),
        in_specs=[pl.BlockSpec((tm, D), lambda i: (i, 0)),
                  pl.BlockSpec((1, D), lambda i: (0, 0)),
                  pl.BlockSpec((1, D), lambda i: (0, 0))],
        out_specs=pl.BlockSpec((tm, D), lambda i: (i, 0)),
        compiler_params=_compiler_params(est),
    )(x, g.reshape(1, D), b.reshape(1, D))


def _ln_mlp_res_kernel(x_ref, g_ref, b_ref, w1_ref, b1_ref, w2_ref, b2_ref, o_ref, *, eps):
    # out = x + proj(gelu(fc(LayerNorm(x)))); matmuls in native dtype with fp32 accumulation.
    dt = x_ref.dtype
    xf = x_ref[...].astype(jnp.float32)
    mu = jnp.mean(xf, axis=-1, keepdims=True)
    var = jnp.mean(jnp.square(xf - mu), axis=-1, keepdims=True)
    xn = (xf - mu) * jax.lax.rsqrt(var + eps)
    xn = xn * g_ref[...].astype(jnp.float32) + b_ref[...].astype(jnp.float32)
    h = jnp.dot(xn.astype(dt), w1_ref[...], preferred_element_type=jnp.float32)
    h = h + b1_ref[...].astype(jnp.float32)
    h = h * jax.nn.sigmoid(1.702 * h)            # fast gelu in fp32 (v5e-safe)
    y = jnp.dot(h.astype(dt), w2_ref[...], preferred_element_type=jnp.float32)
    y = y + b2_ref[...].astype(jnp.float32)
    o_ref[...] = (xf + y).astype(o_ref.dtype)


def mlp_block(x, g, b, w1, b1, w2, b2, eps=1e-5):
    """x + MLP(LayerNorm(x)); x: (M, D)."""
    M, D = x.shape
    Dh = w1.shape[1]
    tm = _pick_row_tile(M)
    isz = jnp.dtype(x.dtype).itemsize
    # weights resident + double-buffered io blocks + fp32 hidden intermediate.
    est = (2 * D * Dh + Dh + 3 * D) * isz + 2 * 2 * tm * D * isz + tm * Dh * 4
    # TODO(synk): for very large widths on v7x (64 MiB VMEM), tile the Dh axis with an fp32
    # accumulator (P3) or cast weights to bf16 instead of keeping both MLP weights resident.
    return pl.pallas_call(
        functools.partial(_ln_mlp_res_kernel, eps=eps),
        out_shape=jax.ShapeDtypeStruct((M, D), x.dtype),
        grid=(M // tm,),
        in_specs=[pl.BlockSpec((tm, D), lambda i: (i, 0)),
                  pl.BlockSpec((1, D), lambda i: (0, 0)),
                  pl.BlockSpec((1, D), lambda i: (0, 0)),
                  pl.BlockSpec((D, Dh), lambda i: (0, 0)),
                  pl.BlockSpec((1, Dh), lambda i: (0, 0)),
                  pl.BlockSpec((Dh, D), lambda i: (0, 0)),
                  pl.BlockSpec((1, D), lambda i: (0, 0))],
        out_specs=pl.BlockSpec((tm, D), lambda i: (i, 0)),
        compiler_params=_compiler_params(est),
    )(x, g.reshape(1, D), b.reshape(1, D), w1, b1.reshape(1, Dh), w2, b2.reshape(1, D))


def _attn_block_kernel(x_ref, g_ref, b_ref, wqkv_ref, bqkv_ref, wo_ref, bo_ref, o_ref,
                       *, heads, eps, scale):
    # Per block of Gb windows: out = x + OutProj(MHA(LayerNorm(x))).
    Gb, W, D = x_ref.shape
    dh = D // heads
    dt = x_ref.dtype

    xf = x_ref[...].reshape(Gb * W, D).astype(jnp.float32)
    mu = jnp.mean(xf, axis=-1, keepdims=True)
    var = jnp.mean(jnp.square(xf - mu), axis=-1, keepdims=True)
    xn = (xf - mu) * jax.lax.rsqrt(var + eps)
    xn = xn * g_ref[...].astype(jnp.float32) + b_ref[...].astype(jnp.float32)

    qkv = jnp.dot(xn.astype(dt), wqkv_ref[...], preferred_element_type=jnp.float32)
    qkv = (qkv + bqkv_ref[...].astype(jnp.float32)).astype(dt)
    qkv3 = qkv.reshape(Gb, W, 3 * D)

    outs = []
    for hh in range(heads):                      # static, unrolled; heads stay lane-resident
        qh = qkv3[..., hh * dh:(hh + 1) * dh]
        kh = qkv3[..., D + hh * dh:D + (hh + 1) * dh]
        vh = qkv3[..., 2 * D + hh * dh:2 * D + (hh + 1) * dh]
        s = jnp.einsum('gqd,gkd->gqk', qh, kh,
                       preferred_element_type=jnp.float32) * scale
        s = s - jnp.max(s, axis=-1, keepdims=True)
        p = jnp.exp(s)
        p = p * pl.reciprocal(jnp.sum(p, axis=-1, keepdims=True), approx=True)
        outs.append(jnp.einsum('gqk,gkd->gqd', p.astype(dt), vh,
                               preferred_element_type=jnp.float32))
    o2 = jnp.concatenate(outs, axis=-1).astype(dt).reshape(Gb * W, D)

    y = jnp.dot(o2, wo_ref[...], preferred_element_type=jnp.float32)
    y = y + bo_ref[...].astype(jnp.float32)
    o_ref[...] = (xf + y).reshape(Gb, W, D).astype(o_ref.dtype)


def attn_block(xw, g, b, w_qkv, b_qkv, w_out, b_out, heads, eps=1e-5):
    """Fused LN + windowed multi-head attention + out-proj + residual; xw: (G, W, D)."""
    G, W, D = xw.shape
    gb = _pick_group_count(G, W)
    scale = 1.0 / math.sqrt(D // heads)
    isz = jnp.dtype(xw.dtype).itemsize
    est = (4 * D * D + 6 * D) * isz + 2 * 2 * gb * W * D * isz + gb * W * 5 * D * 4
    kernel = functools.partial(_attn_block_kernel, heads=heads, eps=eps, scale=scale)
    xspec = pl.BlockSpec((gb, W, D), lambda i: (i, 0, 0))
    return pl.pallas_call(
        kernel,
        out_shape=jax.ShapeDtypeStruct((G, W, D), xw.dtype),
        grid=(G // gb,),
        in_specs=[xspec,
                  pl.BlockSpec((1, D), lambda i: (0, 0)),
                  pl.BlockSpec((1, D), lambda i: (0, 0)),
                  pl.BlockSpec((D, 3 * D), lambda i: (0, 0)),
                  pl.BlockSpec((1, 3 * D), lambda i: (0, 0)),
                  pl.BlockSpec((D, D), lambda i: (0, 0)),
                  pl.BlockSpec((1, D), lambda i: (0, 0))],
        out_specs=xspec,
        compiler_params=_compiler_params(est),
    )(xw, g.reshape(1, D), b.reshape(1, D), w_qkv, b_qkv.reshape(1, 3 * D),
      w_out, b_out.reshape(1, D))


# ------------------------- pure-JAX reference ops ---------------------------

def _layernorm_ref(x, g, b, eps=1e-5):
    mu = x.mean(-1, keepdims=True)
    var = ((x - mu) ** 2).mean(-1, keepdims=True)
    return (x - mu) * jax.lax.rsqrt(var + eps) * g + b


def _patch_embed_ref(patches, conv_w, pos, g, b, eps=1e-5):
    return _layernorm_ref(patches @ conv_w + pos, g, b, eps)


def _attn_block_ref(xw, g, b, w_qkv, b_qkv, w_out, b_out, heads, eps=1e-5):
    G, W, D = xw.shape
    dh = D // heads
    xn = _layernorm_ref(xw, g, b, eps)
    qkv = xn @ w_qkv + b_qkv
    q, k, v = qkv[..., :D], qkv[..., D:2 * D], qkv[..., 2 * D:]

    def split(t):
        return t.reshape(G, W, heads, dh).transpose(0, 2, 1, 3)

    q, k, v = split(q), split(k), split(v)
    s = jnp.einsum('ghqd,ghkd->ghqk', q, k) / math.sqrt(dh)
    p = jax.nn.softmax(s, axis=-1)
    o = jnp.einsum('ghqk,ghkd->ghqd', p, v)
    o = o.transpose(0, 2, 1, 3).reshape(G, W, D)
    return xw + (o @ w_out + b_out)


def _mlp_block_ref(x, g, b, w1, b1, w2, b2, eps=1e-5):
    h = _layernorm_ref(x, g, b, eps) @ w1 + b1
    h = h * jax.nn.sigmoid(1.702 * h)
    return x + (h @ w2 + b2)


# ------------------------------ model glue ----------------------------------

def transformer_encoder_forward(x, params, cfg, ops):
    # layout: x = (b, v, c, h, w) — PyTorch NCHW per view.
    b, v, c, h, w = x.shape
    p = cfg['patch_size']; D = cfg['width']; heads = cfg['heads']; Wd = cfg['window_size']
    hp, wp = h // p, w // p
    n = hp * wp
    bv = b * v
    L = v * n
    assert L % Wd == 0

    x = x.reshape(bv, c, h, w)                                   # 'b v c h w -> (b v) c h w'
    # Conv2d(kernel=stride=p, bias=False) == patch extraction + matmul (fused Pallas kernel).
    patches = (x.reshape(bv, c, hp, p, wp, p)
                 .transpose(0, 2, 4, 1, 3, 5)
                 .reshape(bv * n, c * p * p))
    pos = jnp.broadcast_to(params['pos'], (bv, n, D)).reshape(bv * n, D)
    tok = ops['patch_embed'](patches, params['conv_w'], pos,
                             params['ln1_g'], params['ln1_b'])   # conv + pos + LN1
    x = tok.reshape(b, L, D)                                     # '(b v) n d -> b (v n) d'

    for idx, lp in enumerate(params['layers']):
        shifted = (idx % 2 == 1)
        # roll(x) commutes with per-token LN and with the residual add (roll is a permutation),
        # so roll once, run the fused window-attention block, then un-roll.
        xr = jnp.roll(x, Wd // 2, axis=1) if shifted else x
        xw = xr.reshape(b * (L // Wd), Wd, D)                    # 'b (p w) c -> (b p) w c'
        yw = ops['attn_block'](xw, lp['ln1_g'], lp['ln1_b'],
                               lp['attn_in_w'], lp['attn_in_b'],
                               lp['attn_out_w'], lp['attn_out_b'], heads)
        y = yw.reshape(b, L, D)                                  # '(b p) w c -> b (p w) c'
        x = jnp.roll(y, (-Wd) // 2, axis=1) if shifted else y
        # fused LN2 + MLP + residual
        x = ops['mlp_block'](x.reshape(b * L, D), lp['ln2_g'], lp['ln2_b'],
                             lp['mlp_w1'], lp['mlp_b1'],
                             lp['mlp_w2'], lp['mlp_b2']).reshape(b, L, D)

    x = ops['layernorm'](x.reshape(b * L, D), params['ln2_g'], params['ln2_b'])
    x = x.reshape(b, v, hp, wp, D).transpose(0, 1, 4, 2, 3)      # -> (b, v, d, h', w')
    return x


# ------------------------------ parameters ----------------------------------

def init_params(key, cfg):
    in_ch, p, D, layers = cfg['in_channels'], cfg['patch_size'], cfg['width'], cfg['layers']
    n = (cfg['input_res'] // p) ** 2
    k_conv, k_pos, *k_layers = jax.random.split(key, 2 + layers)
    params = dict(
        conv_w=0.02 * jax.random.normal(k_conv, (in_ch * p * p, D), jnp.float32),  # Conv2d(bias=False)
        pos=0.02 * jax.random.normal(k_pos, (1, n, D), jnp.float32),
        ln1_g=jnp.ones((D,), jnp.float32), ln1_b=jnp.zeros((D,), jnp.float32),
        ln2_g=jnp.ones((D,), jnp.float32), ln2_b=jnp.zeros((D,), jnp.float32),
        layers=[],
    )
    for kl in k_layers:
        ks = jax.random.split(kl, 4)
        params['layers'].append(dict(
            attn_in_w=0.05 * jax.random.normal(ks[0], (D, 3 * D), jnp.float32),
            attn_in_b=jnp.zeros((3 * D,), jnp.float32),
            attn_out_w=0.05 * jax.random.normal(ks[1], (D, D), jnp.float32),
            attn_out_b=jnp.zeros((D,), jnp.float32),
            ln1_g=jnp.ones((D,), jnp.float32), ln1_b=jnp.zeros((D,), jnp.float32),
            ln2_g=jnp.ones((D,), jnp.float32), ln2_b=jnp.zeros((D,), jnp.float32),
            mlp_w1=0.05 * jax.random.normal(ks[2], (D, 4 * D), jnp.float32),
            mlp_b1=jnp.zeros((4 * D,), jnp.float32),
            mlp_w2=0.05 * jax.random.normal(ks[3], (4 * D, D), jnp.float32),
            mlp_b2=jnp.zeros((D,), jnp.float32),
        ))
    return params


# --------------------------------- main --------------------------------------

if __name__ == "__main__":
    cfg = dict(input_res=16, in_channels=4, patch_size=4, width=32,
               layers=2, heads=4, window_size=8)
    key = jax.random.PRNGKey(0)
    kp, kx = jax.random.split(key)
    params = init_params(kp, cfg)

    b, v = 1, 2
    x = jax.random.normal(kx, (b, v, cfg['in_channels'], cfg['input_res'], cfg['input_res']),
                          jnp.float32)

    pallas_ops = dict(patch_embed=patch_embed, attn_block=attn_block,
                      mlp_block=mlp_block, layernorm=layernorm)
    ref_ops = dict(patch_embed=_patch_embed_ref, attn_block=_attn_block_ref,
                   mlp_block=_mlp_block_ref, layernorm=_layernorm_ref)

    # TODO(synk): grad-checkpointing path (torch.utils.checkpoint) is training-only; forward identical.
    out = jax.jit(lambda xx: transformer_encoder_forward(xx, params, cfg, pallas_ops))(x)
    out = jax.block_until_ready(out)

    ref = transformer_encoder_forward(x, params, cfg, ref_ops)
    hp = cfg['input_res'] // cfg['patch_size']
    assert out.shape == (b, v, cfg['width'], hp, hp), out.shape
    assert bool(jnp.all(jnp.isfinite(out)))
    err = float(jnp.max(jnp.abs(out - ref)))
    assert bool(jnp.allclose(out, ref, atol=5e-3, rtol=5e-3)), err
    print("KERNEL_OK")
</pallas_src>

<mosaic_0001>
module attributes {stable_mosaic.version = 11 : i64} {
  func.func @_patch_embed_kernel(%arg0: i32, %arg1: memref<16x64xf32, #tpu.memory_space<vmem>>, %arg2: memref<64x32xf32, #tpu.memory_space<vmem>>, %arg3: memref<16x32xf32, #tpu.memory_space<vmem>>, %arg4: memref<1x32xf32, #tpu.memory_space<vmem>>, %arg5: memref<1x32xf32, #tpu.memory_space<vmem>>, %arg6: memref<16x32xf32, #tpu.memory_space<vmem>>) attributes {dimension_semantics = [#tpu.dimension_semantics<parallel>], iteration_bounds = array<i64: 2>, scalar_prefetch = 0 : i64, scratch_operands = 0 : i64, tpu.core_type = #tpu.core_type<tc>, window_params = [{transform_indices = @transform_0, window_bounds = array<i64: 16, 64>}, {pipeline_mode = #tpu.pipeline_mode<synchronous>, transform_indices = @transform_1, window_bounds = array<i64: 64, 32>}, {transform_indices = @transform_2, window_bounds = array<i64: 16, 32>}, {pipeline_mode = #tpu.pipeline_mode<synchronous>, transform_indices = @transform_3, window_bounds = array<i64: 1, 32>}, {pipeline_mode = #tpu.pipeline_mode<synchronous>, transform_indices = @transform_4, window_bounds = array<i64: 1, 32>}, {transform_indices = @transform_5, window_bounds = array<i64: 16, 32>}]} {
    %c0 = arith.constant 0 : index
    %c0_0 = arith.constant 0 : index
    %0 = vector.load %arg1[%c0, %c0_0] : memref<16x64xf32, #tpu.memory_space<vmem>>, vector<16x64xf32>
    %c0_1 = arith.constant 0 : index
    %c0_2 = arith.constant 0 : index
    %1 = vector.load %arg2[%c0_1, %c0_2] : memref<64x32xf32, #tpu.memory_space<vmem>>, vector<64x32xf32>
    %cst = arith.constant dense<0.000000e+00> : vector<16x32xf32>
    %2 = tpu.matmul %0, %1, %cst {dimension_numbers = #tpu.dot_dimension_numbers<[1], [0], [0], [1], [0, 0, 1, 1], [], []>} : vector<16x64xf32>, vector<64x32xf32>, vector<16x32xf32> -> vector<16x32xf32>
    %c0_3 = arith.constant 0 : index
    %c0_4 = arith.constant 0 : index
    %3 = vector.load %arg3[%c0_3, %c0_4] : memref<16x32xf32, #tpu.memory_space<vmem>>, vector<16x32xf32>
    %4 = arith.addf %2, %3 : vector<16x32xf32>
    %cst_5 = arith.constant dense<0.000000e+00> : vector<16xf32>
    %5 = vector.multi_reduction <add>, %4, %cst_5 [1] : vector<16x32xf32> to vector<16xf32>
    %6 = vector.shape_cast %5 : vector<16xf32> to vector<16x1xf32>
    %cst_6 = arith.constant 3.200000e+01 : f32
    %7 = vector.broadcast %cst_6 : f32 to vector<16x1xf32>
    %8 = arith.divf %6, %7 : vector<16x1xf32>
    %9 = vector.broadcast %8 : vector<16x1xf32> to vector<16x32xf32>
    %10 = arith.subf %4, %9 : vector<16x32xf32>
    %11 = arith.mulf %10, %10 : vector<16x32xf32>
    %cst_7 = arith.constant dense<0.000000e+00> : vector<16xf32>
    %12 = vector.multi_reduction <add>, %11, %cst_7 [1] : vector<16x32xf32> to vector<16xf32>
    %13 = vector.shape_cast %12 : vector<16xf32> to vector<16x1xf32>
    %cst_8 = arith.constant 3.200000e+01 : f32
    %14 = vector.broadcast %cst_8 : f32 to vector<16x1xf32>
    %15 = arith.divf %13, %14 : vector<16x1xf32>
    %16 = vector.broadcast %8 : vector<16x1xf32> to vector<16x32xf32>
    %17 = arith.subf %4, %16 : vector<16x32xf32>
    %cst_9 = arith.constant 9.99999974E-6 : f32
    %18 = vector.broadcast %cst_9 : f32 to vector<16x1xf32>
    %19 = arith.addf %15, %18 : vector<16x1xf32>
    %20 = math.rsqrt %19 : vector<16x1xf32>
    %21 = vector.broadcast %20 : vector<16x1xf32> to vector<16x32xf32>
    %22 = arith.mulf %17, %21 : vector<16x32xf32>
    %c0_10 = arith.constant 0 : index
    %c0_11 = arith.constant 0 : index
    %23 = vector.load %arg4[%c0_10, %c0_11] : memref<1x32xf32, #tpu.memory_space<vmem>>, vector<1x32xf32>
    %24 = vector.broadcast %23 : vector<1x32xf32> to vector<16x32xf32>
    %25 = arith.mulf %22, %24 : vector<16x32xf32>
    %c0_12 = arith.constant 0 : index
    %c0_13 = arith.constant 0 : index
    %26 = vector.load %arg5[%c0_12, %c0_13] : memref<1x32xf32, #tpu.memory_space<vmem>>, vector<1x32xf32>
    %27 = vector.broadcast %26 : vector<1x32xf32> to vector<16x32xf32>
    %28 = arith.addf %25, %27 : vector<16x32xf32>
    %c0_14 = arith.constant 0 : index
    %c0_15 = arith.constant 0 : index
    %29 = vector.load %arg6[%c0_14, %c0_15] : memref<16x32xf32, #tpu.memory_space<vmem>>, vector<16x32xf32>
    tpu.vector_store %arg6[%c0_14, %c0_15], %28 {strides = array<i32>} : memref<16x32xf32, #tpu.memory_space<vmem>>, vector<16x32xf32>,
    return
  }
  func.func @transform_0(%arg0: i32) -> (i32, i32) {
    %c0_i32 = arith.constant 0 : i32
    %c0_i32_0 = arith.constant 0 : i32
    return %arg0, %c0_i32 : i32, i32
  }
  func.func @transform_1(%arg0: i32) -> (i32, i32) {
    %c0_i32 = arith.constant 0 : i32
    %c0_i32_0 = arith.constant 0 : i32
    %c0_i32_1 = arith.constant 0 : i32
    return %c0_i32, %c0_i32_0 : i32, i32
  }
  func.func @transform_2(%arg0: i32) -> (i32, i32) {
    %c0_i32 = arith.constant 0 : i32
    %c0_i32_0 = arith.constant 0 : i32
    return %arg0, %c0_i32 : i32, i32
  }
  func.func @transform_3(%arg0: i32) -> (i32, i32) {
    %c0_i32 = arith.constant 0 : i32
    %c0_i32_0 = arith.constant 0 : i32
    %c0_i32_1 = arith.constant 0 : i32
    return %c0_i32, %c0_i32_0 : i32, i32
  }
  func.func @transform_4(%arg0: i32) -> (i32, i32) {
    %c0_i32 = arith.constant 0 : i32
    %c0_i32_0 = arith.constant 0 : i32
    %c0_i32_1 = arith.constant 0 : i32
    return %c0_i32, %c0_i32_0 : i32, i32
  }
  func.func @transform_5(%arg0: i32) -> (i32, i32) {
    %c0_i32 = arith.constant 0 : i32
    %c0_i32_0 = arith.constant 0 : i32
    return %arg0, %c0_i32 : i32, i32
  }
}

module attributes {stable_mosaic.version = 11 : i64} {
  func.func @_attn_block_kernel(%arg0: i32, %arg1: memref<2x8x32xf32, #tpu.memory_space<vmem>>, %arg2: memref<1x32xf32, #tpu.memory_space<vmem>>, %arg3: memref<1x32xf32, #tpu.memory_space<vmem>>, %arg4: memref<32x96xf32, #tpu.memory_space<vmem>>, %arg5: memref<1x96xf32, #tpu.memory_space<vmem>>, %arg6: memref<32x32xf32, #tpu.memory_space<vmem>>, %arg7: memref<1x32xf32, #tpu.memory_space<vmem>>, %arg8: memref<2x8x32xf32, #tpu.memory_space<vmem>>) attributes {dimension_semantics = [#tpu.dimension_semantics<parallel>], iteration_bounds = array<i64: 2>, scalar_prefetch = 0 : i64, scratch_operands = 0 : i64, tpu.core_type = #tpu.core_type<tc>, window_params = [{transform_indices = @transform_0, window_bounds = array<i64: 2, 8, 32>}, {pipeline_mode = #tpu.pipeline_mode<synchronous>, transform_indices = @transform_1, window_bounds = array<i64: 1, 32>}, {pipeline_mode = #tpu.pipeline_mode<synchronous>, transform_indices = @transform_2, window_bounds = array<i64: 1, 32>}, {pipeline_mode = #tpu.pipeline_mode<synchronous>, transform_indices = @transform_3, window_bounds = array<i64: 32, 96>}, {pipeline_mode = #tpu.pipeline_mode<synchronous>, transform_indices = @transform_4, window_bounds = array<i64: 1, 96>}, {pipeline_mode = #tpu.pipeline_mode<synchronous>, transform_indices = @transform_5, window_bounds = array<i64: 32, 32>}, {pipeline_mode = #tpu.pipeline_mode<synchronous>, transform_indices = @transform_6, window_bounds = array<i64: 1, 32>}, {transform_indices = @transform_7, window_bounds = array<i64: 2, 8, 32>}]} {
    %c0 = arith.constant 0 : index
    %c0_0 = arith.constant 0 : index
    %c0_1 = arith.constant 0 : index
    %0 = vector.load %arg1[%c0, %c0_0, %c0_1] : memref<2x8x32xf32, #tpu.memory_space<vmem>>, vector<2x8x32xf32>
    %1 = vector.shape_cast %0 : vector<2x8x32xf32> to vector<16x32xf32>
    %cst = arith.constant dense<0.000000e+00> : vector<16xf32>
    %2 = vector.multi_reduction <add>, %1, %cst [1] : vector<16x32xf32> to vector<16xf32>
    %3 = vector.shape_cast %2 : vector<16xf32> to vector<16x1xf32>
    %cst_2 = arith.constant 3.200000e+01 : f32
    %4 = vector.broadcast %cst_2 : f32 to vector<16x1xf32>
    %5 = arith.divf %3, %4 : vector<16x1xf32>
    %6 = vector.broadcast %5 : vector<16x1xf32> to vector<16x32xf32>
    %7 = arith.subf %1, %6 : vector<16x32xf32>
    %8 = arith.mulf %7, %7 : vector<16x32xf32>
    %cst_3 = arith.constant dense<0.000000e+00> : vector<16xf32>
    %9 = vector.multi_reduction <add>, %8, %cst_3 [1] : vector<16x32xf32> to vector<16xf32>
    %10 = vector.shape_cast %9 : vector<16xf32> to vector<16x1xf32>
    %cst_4 = arith.constant 3.200000e+01 : f32
    %11 = vector.broadcast %cst_4 : f32 to vector<16x1xf32>
    %12 = arith.divf %10, %11 : vector<16x1xf32>
    %13 = vector.broadcast %5 : vector<16x1xf32> to vector<16x32xf32>
    %14 = arith.subf %1, %13 : vector<16x32xf32>
    %cst_5 = arith.constant 9.99999974E-6 : f32
    %15 = vector.broadcast %cst_5 : f32 to vector<16x1xf32>
    %16 = arith.addf %12, %15 : vector<16x1xf32>
    %17 = math.rsqrt %16 : vector<16x1xf32>
    %18 = vector.broadcast %17 : vector<16x1xf32> to vector<16x32xf32>
    %19 = arith.mulf %14, %18 : vector<16x32xf32>
    %c0_6 = arith.constant 0 : index
    %c0_7 = arith.constant 0 : index
    %20 = vector.load %arg2[%c0_6, %c0_7] : memref<1x32xf32, #tpu.memory_space<vmem>>, vector<1x32xf32>
    %21 = vector.broadcast %20 : vector<1x32xf32> to vector<16x32xf32>
    %22 = arith.mulf %19, %21 : vector<16x32xf32>
    %c0_8 = arith.constant 0 : index
    %c0_9 = arith.constant 0 : index
    %23 = vector.load %arg3[%c0_8, %c0_9] : memref<1x32xf32, #tpu.memory_space<vmem>>, vector<1x32xf32>
    %24 = vector.broadcast %23 : vector<1x32xf32> to vector<16x32xf32>
    %25 = arith.addf %22, %24 : vector<16x32xf32>
    %c0_10 = arith.constant 0 : index
    %c0_11 = arith.constant 0 : index
    %26 = vector.load %arg4[%c0_10, %c0_11] : memref<32x96xf32, #tpu.memory_space<vmem>>, vector<32x96xf32>
    %cst_12 = arith.constant dense<0.000000e+00> : vector<16x96xf32>
    %27 = tpu.matmul %25, %26, %cst_12 {dimension_numbers = #tpu.dot_dimension_numbers<[1], [0], [0], [1], [0, 0, 1, 1], [], []>} : vector<16x32xf32>, vector<32x96xf32>, vector<16x96xf32> -> vector<16x96xf32>
    %c0_13 = arith.constant 0 : index
    %c0_14 = arith.constant 0 : index
    %28 = vector.load %arg5[%c0_13, %c0_14] : memref<1x96xf32, #tpu.memory_space<vmem>>, vector<1x96xf32>
    %29 = vector.broadcast %28 : vector<1x96xf32> to vector<16x96xf32>
    %30 = arith.addf %27, %29 : vector<16x96xf32>
    %31 = vector.shape_cast %30 : vector<16x96xf32> to vector<2x8x96xf32>
    %32 = vector.extract_strided_slice %31 {offsets = [0, 0, 0], sizes = [2, 8, 8], strides = [1, 1, 1]} : vector<2x8x96xf32> to vector<2x8x8xf32>
    %33 = vector.extract_strided_slice %31 {offsets = [0, 0, 32], sizes = [2, 8, 8], strides = [1, 1, 1]} : vector<2x8x96xf32> to vector<2x8x8xf32>
    %34 = vector.extract_strided_slice %31 {offsets = [0, 0, 64], sizes = [2, 8, 8], strides = [1, 1, 1]} : vector<2x8x96xf32> to vector<2x8x8xf32>
    "tpu.trace_start"() <{level = 10 : i32, message = "gqd,gkd->gqk"}> : () -> ()
    %cst_15 = arith.constant dense<0.000000e+00> : vector<2x8x8xf32>
    %35 = tpu.matmul %32, %33, %cst_15 {dimension_numbers = #tpu.dot_dimension_numbers<[2], [2], [1], [1], [0, 0, 0, 1, 1, 1], [0], [0]>} : vector<2x8x8xf32>, vector<2x8x8xf32>, vector<2x8x8xf32> -> vector<2x8x8xf32>
    "tpu.trace_stop"() : () -> ()
    %cst_16 = arith.constant 0.353553385 : f32
    %36 = vector.broadcast %cst_16 : f32 to vector<2x8x8xf32>
    %37 = arith.mulf %35, %36 : vector<2x8x8xf32>
    %cst_17 = arith.constant dense<0xFF800000> : vector<2x8xf32>
    %38 = vector.multi_reduction <maximumf>, %37, %cst_17 [2] : vector<2x8x8xf32> to vector<2x8xf32>
    %39 = vector.shape_cast %38 : vector<2x8xf32> to vector<2x8x1xf32>
    %40 = vector.broadcast %39 : vector<2x8x1xf32> to vector<2x8x8xf32>
    %41 = arith.subf %37, %40 : vector<2x8x8xf32>
    %42 = math.exp %41 : vector<2x8x8xf32>
    %cst_18 = arith.constant dense<0.000000e+00> : vector<2x8xf32>
    %43 = vector.multi_reduction <add>, %42, %cst_18 [2] : vector<2x8x8xf32> to vector<2x8xf32>
    %44 = vector.shape_cast %43 : vector<2x8xf32> to vector<2x8x1xf32>
    %45 = tpu.reciprocal %44 {approx = true} : vector<2x8x1xf32> -> vector<2x8x1xf32>
    %46 = vector.broadcast %45 : vector<2x8x1xf32> to vector<2x8x8xf32>
    %47 = arith.mulf %42, %46 : vector<2x8x8xf32>
    "tpu.trace_start"() <{level = 10 : i32, message = "gqk,gkd->gqd"}> : () -> ()
    %cst_19 = arith.constant dense<0.000000e+00> : vector<2x8x8xf32>
    %48 = tpu.matmul %47, %34, %cst_19 {dimension_numbers = #tpu.dot_dimension_numbers<[2], [1], [1], [2], [0, 0, 0, 1, 1, 2], [0], [0]>} : vector<2x8x8xf32>, vector<2x8x8xf32>, vector<2x8x8xf32> -> vector<2x8x8xf32>
    "tpu.trace_stop"() : () -> ()
    %49 = vector.extract_strided_slice %31 {offsets = [0, 0, 8], sizes = [2, 8, 8], strides = [1, 1, 1]} : vector<2x8x96xf32> to vector<2x8x8xf32>
    %50 = vector.extract_strided_slice %31 {offsets = [0, 0, 40], sizes = [2, 8, 8], strides = [1, 1, 1]} : vector<2x8x96xf32> to vector<2x8x8xf32>
    %51 = vector.extract_strided_slice %31 {offsets = [0, 0, 72], sizes = [2, 8, 8], strides = [1, 1, 1]} : vector<2x8x96xf32> to vector<2x8x8xf32>
    "tpu.trace_start"() <{level = 10 : i32, message = "gqd,gkd->gqk"}> : () -> ()
    %cst_20 = arith.constant dense<0.000000e+00> : vector<2x8x8xf32>
    %52 = tpu.matmul %49, %50, %cst_20 {dimension_numbers = #tpu.dot_dimension_numbers<[2], [2], [1], [1], [0, 0, 0, 1, 1, 1], [0], [0]>} : vector<2x8x8xf32>, vector<2x8x8xf32>, vector<2x8x8xf32> -> vector<2x8x8xf32>
    "tpu.trace_stop"() : () -> ()
    %cst_21 = arith.constant 0.353553385 : f32
    %53 = vector.broadcast %cst_21 : f32 to vector<2x8x8xf32>
    %54 = arith.mulf %52, %53 : vector<2x8x8xf32>
    %cst_22 = arith.constant dense<0xFF800000> : vector<2x8xf32>
    %55 = vector.multi_reduction <maximumf>, %54, %cst_22 [2] : vector<2x8x8xf32> to vector<2x8xf32>
    %56 = vector.shape_cast %55 : vector<2x8xf32> to vector<2x8x1xf32>
    %57 = vector.broadcast %56 : vector<2x8x1xf32> to vector<2x8x8xf32>
    %58 = arith.subf %54, %57 : vector<2x8x8xf32>
    %59 = math.exp %58 : vector<2x8x8xf32>
    %cst_23 = arith.constant dense<0.000000e+00> : vector<2x8xf32>
    %60 = vector.multi_reduction <add>, %59, %cst_23 [2] : vector<2x8x8xf32> to vector<2x8xf32>
    %61 = vector.shape_cast %60 : vector<2x8xf32> to vector<2x8x1xf32>
    %62 = tpu.reciprocal %61 {approx = true} : vector<2x8x1xf32> -> vector<2x8x1xf32>
    %63 = vector.broadcast %62 : vector<2x8x1xf32> to vector<2x8x8xf32>
    %64 = arith.mulf %59, %63 : vector<2x8x8xf32>
    "tpu.trace_start"() <{level = 10 : i32, message = "gqk,gkd->gqd"}> : () -> ()
    %cst_24 = arith.constant dense<0.000000e+00> : vector<2x8x8xf32>
    %65 = tpu.matmul %64, %51, %cst_24 {dimension_numbers = #tpu.dot_dimension_numbers<[2], [1], [1], [2], [0, 0, 0, 1, 1, 2], [0], [0]>} : vector<2x8x8xf32>, vector<2x8x8xf32>, vector<2x8x8xf32> -> vector<2x8x8xf32>
    "tpu.trace_stop"() : () -> ()
    %66 = vector.extract_strided_slice %31 {offsets = [0, 0, 16], sizes = [2, 8, 8], strides = [1, 1, 1]} : vector<2x8x96xf32> to vector<2x8x8xf32>
    %67 = vector.extract_strided_slice %31 {offsets = [0, 0, 48], sizes = [2, 8, 8], strides = [1, 1, 1]} : vector<2x8x96xf32> to vector<2x8x8xf32>
    %68 = vector.extract_strided_slice %31 {offsets = [0, 0, 80], sizes = [2, 8, 8], strides = [1, 1, 1]} : vector<2x8x96xf32> to vector<2x8x8xf32>
    "tpu.trace_start"() <{level = 10 : i32, message = "gqd,gkd->gqk"}> : () -> ()
    %cst_25 = arith.constant dense<0.000000e+00> : vector<2x8x8xf32>
    %69 = tpu.matmul %66, %67, %cst_25 {dimension_numbers = #tpu.dot_dimension_numbers<[2], [2], [1], [1], [0, 0, 0, 1, 1, 1], [0], [0]>} : vector<2x8x8xf32>, vector<2x8x8xf32>, vector<2x8x8xf32> -> vector<2x8x8xf32>
    "tpu.trace_stop"() : () -> ()
    %cst_26 = arith.constant 0.353553385 : f32
    %70 = vector.broadcast %cst_26 : f32 to vector<2x8x8xf32>
    %71 = arith.mulf %69, %70 : vector<2x8x8xf32>
    %cst_27 = arith.constant dense<0xFF800000> : vector<2x8xf32>
    %72 = vector.multi_reduction <maximumf>, %71, %cst_27 [2] : vector<2x8x8xf32> to vector<2x8xf32>
    %73 = vector.shape_cast %72 : vector<2x8xf32> to vector<2x8x1xf32>
    %74 = vector.broadcast %73 : vector<2x8x1xf32> to vector<2x8x8xf32>
    %75 = arith.subf %71, %74 : vector<2x8x8xf32>
    %76 = math.exp %75 : vector<2x8x8xf32>
    %cst_28 = arith.constant dense<0.000000e+00> : vector<2x8xf32>
    %77 = vector.multi_reduction <add>, %76, %cst_28 [2] : vector<2x8x8xf32> to vector<2x8xf32>
    %78 = vector.shape_cast %77 : vector<2x8xf32> to vector<2x8x1xf32>
    %79 = tpu.reciprocal %78 {approx = true} : vector<2x8x1xf32> -> vector<2x8x1xf32>
    %80 = vector.broadcast %79 : vector<2x8x1xf32> to vector<2x8x8xf32>
    %81 = arith.mulf %76, %80 : vector<2x8x8xf32>
    "tpu.trace_start"() <{level = 10 : i32, message = "gqk,gkd->gqd"}> : () -> ()
    %cst_29 = arith.constant dense<0.000000e+00> : vector<2x8x8xf32>
    %82 = tpu.matmul %81, %68, %cst_29 {dimension_numbers = #tpu.dot_dimension_numbers<[2], [1], [1], [2], [0, 0, 0, 1, 1, 2], [0], [0]>} : vector<2x8x8xf32>, vector<2x8x8xf32>, vector<2x8x8xf32> -> vector<2x8x8xf32>
    "tpu.trace_stop"() : () -> ()
    %83 = vector.extract_strided_slice %31 {offsets = [0, 0, 24], sizes = [2, 8, 8], strides = [1, 1, 1]} : vector<2x8x96xf32> to vector<2x8x8xf32>
    %84 = vector.extract_strided_slice %31 {offsets = [0, 0, 56], sizes = [2, 8, 8], strides = [1, 1, 1]} : vector<2x8x96xf32> to vector<2x8x8xf32>
    %85 = vector.extract_strided_slice %31 {offsets = [0, 0, 88], sizes = [2, 8, 8], strides = [1, 1, 1]} : vector<2x8x96xf32> to vector<2x8x8xf32>
    "tpu.trace_start"() <{level = 10 : i32, message = "gqd,gkd->gqk"}> : () -> ()
    %cst_30 = arith.constant dense<0.000000e+00> : vector<2x8x8xf32>
    %86 = tpu.matmul %83, %84, %cst_30 {dimension_numbers = #tpu.dot_dimension_numbers<[2], [2], [1], [1], [0, 0, 0, 1, 1, 1], [0], [0]>} : vector<2x8x8xf32>, vector<2x8x8xf32>, vector<2x8x8xf32> -> vector<2x8x8xf32>
    "tpu.trace_stop"() : () -> ()
    %cst_31 = arith.constant 0.353553385 : f32
    %87 = vector.broadcast %cst_31 : f32 to vector<2x8x8xf32>
    %88 = arith.mulf %86, %87 : vector<2x8x8xf32>
    %cst_32 = arith.constant dense<0xFF800000> : vector<2x8xf32>
    %89 = vector.multi_reduction <maximumf>, %88, %cst_32 [2] : vector<2x8x8xf32> to vector<2x8xf32>
    %90 = vector.shape_cast %89 : vector<2x8xf32> to vector<2x8x1xf32>
    %91 = vector.broadcast %90 : vector<2x8x1xf32> to vector<2x8x8xf32>
    %92 = arith.subf %88, %91 : vector<2x8x8xf32>
    %93 = math.exp %92 : vector<2x8x8xf32>
    %cst_33 = arith.constant dense<0.000000e+00> : vector<2x8xf32>
    %94 = vector.multi_reduction <add>, %93, %cst_33 [2] : vector<2x8x8xf32> to vector<2x8xf32>
    %95 = vector.shape_cast %94 : vector<2x8xf32> to vector<2x8x1xf32>
    %96 = tpu.reciprocal %95 {approx = true} : vector<2x8x1xf32> -> vector<2x8x1xf32>
    %97 = vector.broadcast %96 : vector<2x8x1xf32> to vector<2x8x8xf32>
    %98 = arith.mulf %93, %97 : vector<2x8x8xf32>
    "tpu.trace_start"() <{level = 10 : i32, message = "gqk,gkd->gqd"}> : () -> ()
    %cst_34 = arith.constant dense<0.000000e+00> : vector<2x8x8xf32>
    %99 = tpu.matmul %98, %85, %cst_34 {dimension_numbers = #tpu.dot_dimension_numbers<[2], [1], [1], [2], [0, 0, 0, 1, 1, 2], [0], [0]>} : vector<2x8x8xf32>, vector<2x8x8xf32>, vector<2x8x8xf32> -> vector<2x8x8xf32>
    "tpu.trace_stop"() : () -> ()
    %100 = tpu.concatenate %48, %65, %82, %99 in 2 : vector<2x8x8xf32>, vector<2x8x8xf32>, vector<2x8x8xf32>, vector<2x8x8xf32> -> vector<2x8x32xf32>
    %101 = vector.shape_cast %100 : vector<2x8x32xf32> to vector<16x32xf32>
    %c0_35 = arith.constant 0 : index
    %c0_36 = arith.constant 0 : index
    %102 = vector.load %arg6[%c0_35, %c0_36] : memref<32x32xf32, #tpu.memory_space<vmem>>, vector<32x32xf32>
    %cst_37 = arith.constant dense<0.000000e+00> : vector<16x32xf32>
    %103 = tpu.matmul %101, %102, %cst_37 {dimension_numbers = #tpu.dot_dimension_numbers<[1], [0], [0], [1], [0, 0, 1, 1], [], []>} : vector<16x32xf32>, vector<32x32xf32>, vector<16x32xf32> -> vector<16x32xf32>
    %c0_38 = arith.constant 0 : index
    %c0_39 = arith.constant 0 : index
    %104 = vector.load %arg7[%c0_38, %c0_39] : memref<1x32xf32, #tpu.memory_space<vmem>>, vector<1x32xf32>
    %105 = vector.broadcast %104 : vector<1x32xf32> to vector<16x32xf32>
    %106 = arith.addf %103, %105 : vector<16x32xf32>
    %107 = arith.addf %1, %106 : vector<16x32xf32>
    %108 = vector.shape_cast %107 : vector<16x32xf32> to vector<2x8x32xf32>
    %c0_40 = arith.constant 0 : index
    %c0_41 = arith.constant 0 : index
    %c0_42 = arith.constant 0 : index
    %109 = vector.load %arg8[%c0_40, %c0_41, %c0_42] : memref<2x8x32xf32, #tpu.memory_space<vmem>>, vector<2x8x32xf32>
    tpu.vector_store %arg8[%c0_40, %c0_41, %c0_42], %108 {strides = array<i32>} : memref<2x8x32xf32, #tpu.memory_space<vmem>>, vector<2x8x32xf32>,
    return
  }
  func.func @transform_0(%arg0: i32) -> (i32, i32, i32) {
    %c0_i32 = arith.constant 0 : i32
    %c0_i32_0 = arith.constant 0 : i32
    %c0_i32_1 = arith.constant 0 : i32
    return %arg0, %c0_i32, %c0_i32_0 : i32, i32, i32
  }
  func.func @transform_1(%arg0: i32) -> (i32, i32) {
    %c0_i32 = arith.constant 0 : i32
    %c0_i32_0 = arith.constant 0 : i32
    %c0_i32_1 = arith.constant 0 : i32
    return %c0_i32, %c0_i32_0 : i32, i32
  }
  func.func @transform_2(%arg0: i32) -> (i32, i32) {
    %c0_i32 = arith.constant 0 : i32
    %c0_i32_0 = arith.constant 0 : i32
    %c0_i32_1 = arith.constant 0 : i32
    return %c0_i32, %c0_i32_0 : i32, i32
  }
  func.func @transform_3(%arg0: i32) -> (i32, i32) {
    %c0_i32 = arith.constant 0 : i32
    %c0_i32_0 = arith.constant 0 : i32
    %c0_i32_1 = arith.constant 0 : i32
    return %c0_i32, %c0_i32_0 : i32, i32
  }
  func.func @transform_4(%arg0: i32) -> (i32, i32) {
    %c0_i32 = arith.constant 0 : i32
    %c0_i32_0 = arith.constant 0 : i32
    %c0_i32_1 = arith.constant 0 : i32
    return %c0_i32, %c0_i32_0 : i32, i32
  }
  func.func @transform_5(%arg0: i32) -> (i32, i32) {
    %c0_i32 = arith.constant 0 : i32
    %c0_i32_0 = arith.constant 0 : i32
    %c0_i32_1 = arith.constant 0 : i32
    return %c0_i32, %c0_i32_0 : i32, i32
  }
  func.func @transform_6(%arg0: i32) -> (i32, i32) {
    %c0_i32 = arith.constant 0 : i32
    %c0_i32_0 = arith.constant 0 : i32
    %c0_i32_1 = arith.constant 0 : i32
    return %c0_i32, %c0_i32_0 : i32, i32
  }
  func.func @transform_7(%arg0: i32) -> (i32, i32, i32) {
    %c0_i32 = arith.constant 0 : i32
    %c0_i32_0 = arith.constant 0 : i32
    %c0_i32_1 = arith.constant 0 : i32
    return %arg0, %c0_i32, %c0_i32_0 : i32, i32, i32
  }
}

module attributes {stable_mosaic.version = 11 : i64} {
  func.func @_ln_mlp_res_kernel(%arg0: i32, %arg1: memref<16x32xf32, #tpu.memory_space<vmem>>, %arg2: memref<1x32xf32, #tpu.memory_space<vmem>>, %arg3: memref<1x32xf32, #tpu.memory_space<vmem>>, %arg4: memref<32x128xf32, #tpu.memory_space<vmem>>, %arg5: memref<1x128xf32, #tpu.memory_space<vmem>>, %arg6: memref<128x32xf32, #tpu.memory_space<vmem>>, %arg7: memref<1x32xf32, #tpu.memory_space<vmem>>, %arg8: memref<16x32xf32, #tpu.memory_space<vmem>>) attributes {dimension_semantics = [#tpu.dimension_semantics<parallel>], iteration_bounds = array<i64: 2>, scalar_prefetch = 0 : i64, scratch_operands = 0 : i64, tpu.core_type = #tpu.core_type<tc>, window_params = [{transform_indices = @transform_0, window_bounds = array<i64: 16, 32>}, {pipeline_mode = #tpu.pipeline_mode<synchronous>, transform_indices = @transform_1, window_bounds = array<i64: 1, 32>}, {pipeline_mode = #tpu.pipeline_mode<synchronous>, transform_indices = @transform_2, window_bounds = array<i64: 1, 32>}, {pipeline_mode = #tpu.pipeline_mode<synchronous>, transform_indices = @transform_3, window_bounds = array<i64: 32, 128>}, {pipeline_mode = #tpu.pipeline_mode<synchronous>, transform_indices = @transform_4, window_bounds = array<i64: 1, 128>}, {pipeline_mode = #tpu.pipeline_mode<synchronous>, transform_indices = @transform_5, window_bounds = array<i64: 128, 32>}, {pipeline_mode = #tpu.pipeline_mode<synchronous>, transform_indices = @transform_6, window_bounds = array<i64: 1, 32>}, {transform_indices = @transform_7, window_bounds = array<i64: 16, 32>}]} {
    %c0 = arith.constant 0 : index
    %c0_0 = arith.constant 0 : index
    %0 = vector.load %arg1[%c0, %c0_0] : memref<16x32xf32, #tpu.memory_space<vmem>>, vector<16x32xf32>
    %cst = arith.constant dense<0.000000e+00> : vector<16xf32>
    %1 = vector.multi_reduction <add>, %0, %cst [1] : vector<16x32xf32> to vector<16xf32>
    %2 = vector.shape_cast %1 : vector<16xf32> to vector<16x1xf32>
    %cst_1 = arith.constant 3.200000e+01 : f32
    %3 = vector.broadcast %cst_1 : f32 to vector<16x1xf32>
    %4 = arith.divf %2, %3 : vector<16x1xf32>
    %5 = vector.broadcast %4 : vector<16x1xf32> to vector<16x32xf32>
    %6 = arith.subf %0, %5 : vector<16x32xf32>
    %7 = arith.mulf %6, %6 : vector<16x32xf32>
    %cst_2 = arith.constant dense<0.000000e+00> : vector<16xf32>
    %8 = vector.multi_reduction <add>, %7, %cst_2 [1] : vector<16x32xf32> to vector<16xf32>
    %9 = vector.shape_cast %8 : vector<16xf32> to vector<16x1xf32>
    %cst_3 = arith.constant 3.200000e+01 : f32
    %10 = vector.broadcast %cst_3 : f32 to vector<16x1xf32>
    %11 = arith.divf %9, %10 : vector<16x1xf32>
    %12 = vector.broadcast %4 : vector<16x1xf32> to vector<16x32xf32>
    %13 = arith.subf %0, %12 : vector<16x32xf32>
    %cst_4 = arith.constant 9.99999974E-6 : f32
    %14 = vector.broadcast %cst_4 : f32 to vector<16x1xf32>
    %15 = arith.addf %11, %14 : vector<16x1xf32>
    %16 = math.rsqrt %15 : vector<16x1xf32>
    %17 = vector.broadcast %16 : vector<16x1xf32> to vector<16x32xf32>
    %18 = arith.mulf %13, %17 : vector<16x32xf32>
    %c0_5 = arith.constant 0 : index
    %c0_6 = arith.constant 0 : index
    %19 = vector.load %arg2[%c0_5, %c0_6] : memref<1x32xf32, #tpu.memory_space<vmem>>, vector<1x32xf32>
    %20 = vector.broadcast %19 : vector<1x32xf32> to vector<16x32xf32>
    %21 = arith.mulf %18, %20 : vector<16x32xf32>
    %c0_7 = arith.constant 0 : index
    %c0_8 = arith.constant 0 : index
    %22 = vector.load %arg3[%c0_7, %c0_8] : memref<1x32xf32, #tpu.memory_space<vmem>>, vector<1x32xf32>
    %23 = vector.broadcast %22 : vector<1x32xf32> to vector<16x32xf32>
    %24 = arith.addf %21, %23 : vector<16x32xf32>
    %c0_9 = arith.constant 0 : index
    %c0_10 = arith.constant 0 : index
    %25 = vector.load %arg4[%c0_9, %c0_10] : memref<32x128xf32, #tpu.memory_space<vmem>>, vector<32x128xf32>
    %cst_11 = arith.constant dense<0.000000e+00> : vector<16x128xf32>
    %26 = tpu.matmul %24, %25, %cst_11 {dimension_numbers = #tpu.dot_dimension_numbers<[1], [0], [0], [1], [0, 0, 1, 1], [], []>} : vector<16x32xf32>, vector<32x128xf32>, vector<16x128xf32> -> vector<16x128xf32>
    %c0_12 = arith.constant 0 : index
    %c0_13 = arith.constant 0 : index
    %27 = vector.load %arg5[%c0_12, %c0_13] : memref<1x128xf32, #tpu.memory_space<vmem>>, vector<1x128xf32>
    %28 = vector.broadcast %27 : vector<1x128xf32> to vector<16x128xf32>
    %29 = arith.addf %26, %28 : vector<16x128xf32>
    %cst_14 = arith.constant 1.702000e+00 : f32
    %30 = vector.broadcast %cst_14 : f32 to vector<16x128xf32>
    %31 = arith.mulf %30, %29 : vector<16x128xf32>
    %32 = arith.negf %31 : vector<16x128xf32>
    %33 = math.exp %32 : vector<16x128xf32>
    %cst_15 = arith.constant 1.000000e+00 : f32
    %34 = vector.broadcast %cst_15 : f32 to vector<16x128xf32>
    %35 = arith.addf %34, %33 : vector<16x128xf32>
    %36 = arith.divf %34, %35 : vector<16x128xf32>
    %37 = arith.mulf %29, %36 : vector<16x128xf32>
    %c0_16 = arith.constant 0 : index
    %c0_17 = arith.constant 0 : index
    %38 = vector.load %arg6[%c0_16, %c0_17] : memref<128x32xf32, #tpu.memory_space<vmem>>, vector<128x32xf32>
    %cst_18 = arith.constant dense<0.000000e+00> : vector<16x32xf32>
    %39 = tpu.matmul %37, %38, %cst_18 {dimension_numbers = #tpu.dot_dimension_numbers<[1], [0], [0], [1], [0, 0, 1, 1], [], []>} : vector<16x128xf32>, vector<128x32xf32>, vector<16x32xf32> -> vector<16x32xf32>
    %c0_19 = arith.constant 0 : index
    %c0_20 = arith.constant 0 : index
    %40 = vector.load %arg7[%c0_19, %c0_20] : memref<1x32xf32, #tpu.memory_space<vmem>>, vector<1x32xf32>
    %41 = vector.broadcast %40 : vector<1x32xf32> to vector<16x32xf32>
    %42 = arith.addf %39, %41 : vector<16x32xf32>
    %43 = arith.addf %0, %42 : vector<16x32xf32>
    %c0_21 = arith.constant 0 : index
    %c0_22 = arith.constant 0 : index
    %44 = vector.load %arg8[%c0_21, %c0_22] : memref<16x32xf32, #tpu.memory_space<vmem>>, vector<16x32xf32>
    tpu.vector_store %arg8[%c0_21, %c0_22], %43 {strides = array<i32>} : memref<16x32xf32, #tpu.memory_space<vmem>>, vector<16x32xf32>,
    return
  }
  func.func @transform_0(%arg0: i32) -> (i32, i32) {
    %c0_i32 = arith.constant 0 : i32
    %c0_i32_0 = arith.constant 0 : i32
    return %arg0, %c0_i32 : i32, i32
  }
  func.func @transform_1(%arg0: i32) -> (i32, i32) {
    %c0_i32 = arith.constant 0 : i32
    %c0_i32_0 = arith.constant 0 : i32
    %c0_i32_1 = arith.constant 0 : i32
    return %c0_i32, %c0_i32_0 : i32, i32
  }
  func.func @transform_2(%arg0: i32) -> (i32, i32) {
    %c0_i32 = arith.constant 0 : i32
    %c0_i32_0 = arith.constant 0 : i32
    %c0_i32_1 = arith.constant 0 : i32
    return %c0_i32, %c0_i32_0 : i32, i32
  }
  func.func @transform_3(%arg0: i32) -> (i32, i32) {
    %c0_i32 = arith.constant 0 : i32
    %c0_i32_0 = arith.constant 0 : i32
    %c0_i32_1 = arith.constant 0 : i32
    return %c0_i32, %c0_i32_0 : i32, i32
  }
  func.func @transform_4(%arg0: i32) -> (i32, i32) {
    %c0_i32 = arith.constant 0 : i32
    %c0_i32_0 = arith.constant 0 : i32
    %c0_i32_1 = arith.constant 0 : i32
    return %c0_i32, %c0_i32_0 : i32, i32
  }
  func.func @transform_5(%arg0: i32) -> (i32, i32) {
    %c0_i32 = arith.constant 0 : i32
    %c0_i32_0 = arith.constant 0 : i32
    %c0_i32_1 = arith.constant 0 : i32
    return %c0_i32, %c0_i32_0 : i32, i32
  }
  func.func @transform_6(%arg0: i32) -> (i32, i32) {
    %c0_i32 = arith.constant 0 : i32
    %c0_i32_0 = arith.constant 0 : i32
    %c0_i32_1 = arith.constant 0 : i32
    return %c0_i32, %c0_i32_0 : i32, i32
  }
  func.func @transform_7(%arg0: i32) -> (i32, i32) {
    %c0_i32 = arith.constant 0 : i32
    %c0_i32_0 = arith.constant 0 : i32
    return %arg0, %c0_i32 : i32, i32
  }
}

module attributes {stable_mosaic.version = 11 : i64} {
  func.func @_layernorm_kernel(%arg0: i32, %arg1: memref<16x32xf32, #tpu.memory_space<vmem>>, %arg2: memref<1x32xf32, #tpu.memory_space<vmem>>, %arg3: memref<1x32xf32, #tpu.memory_space<vmem>>, %arg4: memref<16x32xf32, #tpu.memory_space<vmem>>) attributes {dimension_semantics = [#tpu.dimension_semantics<parallel>], iteration_bounds = array<i64: 2>, scalar_prefetch = 0 : i64, scratch_operands = 0 : i64, tpu.core_type = #tpu.core_type<tc>, window_params = [{transform_indices = @transform_0, window_bounds = array<i64: 16, 32>}, {pipeline_mode = #tpu.pipeline_mode<synchronous>, transform_indices = @transform_1, window_bounds = array<i64: 1, 32>}, {pipeline_mode = #tpu.pipeline_mode<synchronous>, transform_indices = @transform_2, window_bounds = array<i64: 1, 32>}, {transform_indices = @transform_3, window_bounds = array<i64: 16, 32>}]} {
    %c0 = arith.constant 0 : index
    %c0_0 = arith.constant 0 : index
    %0 = vector.load %arg1[%c0, %c0_0] : memref<16x32xf32, #tpu.memory_space<vmem>>, vector<16x32xf32>
    %cst = arith.constant dense<0.000000e+00> : vector<16xf32>
    %1 = vector.multi_reduction <add>, %0, %cst [1] : vector<16x32xf32> to vector<16xf32>
    %2 = vector.shape_cast %1 : vector<16xf32> to vector<16x1xf32>
    %cst_1 = arith.constant 3.200000e+01 : f32
    %3 = vector.broadcast %cst_1 : f32 to vector<16x1xf32>
    %4 = arith.divf %2, %3 : vector<16x1xf32>
    %5 = vector.broadcast %4 : vector<16x1xf32> to vector<16x32xf32>
    %6 = arith.subf %0, %5 : vector<16x32xf32>
    %7 = arith.mulf %6, %6 : vector<16x32xf32>
    %cst_2 = arith.constant dense<0.000000e+00> : vector<16xf32>
    %8 = vector.multi_reduction <add>, %7, %cst_2 [1] : vector<16x32xf32> to vector<16xf32>
    %9 = vector.shape_cast %8 : vector<16xf32> to vector<16x1xf32>
    %cst_3 = arith.constant 3.200000e+01 : f32
    %10 = vector.broadcast %cst_3 : f32 to vector<16x1xf32>
    %11 = arith.divf %9, %10 : vector<16x1xf32>
    %12 = vector.broadcast %4 : vector<16x1xf32> to vector<16x32xf32>
    %13 = arith.subf %0, %12 : vector<16x32xf32>
    %cst_4 = arith.constant 9.99999974E-6 : f32
    %14 = vector.broadcast %cst_4 : f32 to vector<16x1xf32>
    %15 = arith.addf %11, %14 : vector<16x1xf32>
    %16 = math.rsqrt %15 : vector<16x1xf32>
    %17 = vector.broadcast %16 : vector<16x1xf32> to vector<16x32xf32>
    %18 = arith.mulf %13, %17 : vector<16x32xf32>
    %c0_5 = arith.constant 0 : index
    %c0_6 = arith.constant 0 : index
    %19 = vector.load %arg2[%c0_5, %c0_6] : memref<1x32xf32, #tpu.memory_space<vmem>>, vector<1x32xf32>
    %20 = vector.broadcast %19 : vector<1x32xf32> to vector<16x32xf32>
    %21 = arith.mulf %18, %20 : vector<16x32xf32>
    %c0_7 = arith.constant 0 : index
    %c0_8 = arith.constant 0 : index
    %22 = vector.load %arg3[%c0_7, %c0_8] : memref<1x32xf32, #tpu.memory_space<vmem>>, vector<1x32xf32>
    %23 = vector.broadcast %22 : vector<1x32xf32> to vector<16x32xf32>
    %24 = arith.addf %21, %23 : vector<16x32xf32>
    %c0_9 = arith.constant 0 : index
    %c0_10 = arith.constant 0 : index
    %25 = vector.load %arg4[%c0_9, %c0_10] : memref<16x32xf32, #tpu.memory_space<vmem>>, vector<16x32xf32>
    tpu.vector_store %arg4[%c0_9, %c0_10], %24 {strides = array<i32>} : memref<16x32xf32, #tpu.memory_space<vmem>>, vector<16x32xf32>,
    return
  }
  func.func @transform_0(%arg0: i32) -> (i32, i32) {
    %c0_i32 = arith.constant 0 : i32
    %c0_i32_0 = arith.constant 0 : i32
    return %arg0, %c0_i32 : i32, i32
  }
  func.func @transform_1(%arg0: i32) -> (i32, i32) {
    %c0_i32 = arith.constant 0 : i32
    %c0_i32_0 = arith.constant 0 : i32
    %c0_i32_1 = arith.constant 0 : i32
    return %c0_i32, %c0_i32_0 : i32, i32
  }
  func.func @transform_2(%arg0: i32) -> (i32, i32) {
    %c0_i32 = arith.constant 0 : i32
    %c0_i32_0 = arith.constant 0 : i32
    %c0_i32_1 = arith.constant 0 : i32
    return %c0_i32, %c0_i32_0 : i32, i32
  }
  func.func @transform_3(%arg0: i32) -> (i32, i32) {
    %c0_i32 = arith.constant 0 : i32
    %c0_i32_0 = arith.constant 0 : i32
    return %arg0, %c0_i32 : i32, i32
  }
}

</mosaic_0001>

<llo_original>
// kernel: _lambda_.6
$region0: #{_lambda_.6}
  #allocation0 [shape = 'u32[]', space=smem, size = 0x4, offset = 0x4, fixed_abs, tag = 'smem constant byte address 0x4 - core index']
  #allocation1 [shape = 'u32[144,128]{1,0:T(1,128)}', space=vmem, size = 0x12000, scoped, tag = 'internal scratch']
  %s0 = inlined_call_operand.vmem [shape: f32[32,64], index: 0, kind: input, shape index: {}]
  %s1 = inlined_call_operand.vmem [shape: f32[64,32], index: 1, kind: input, shape index: {}]
  %s2 = inlined_call_operand.vmem [shape: f32[32,32], index: 2, kind: input, shape index: {}]
  %s3 = inlined_call_operand.vmem [shape: f32[1,32], index: 3, kind: input, shape index: {}]
  %s4 = inlined_call_operand.vmem [shape: f32[1,32], index: 4, kind: input, shape index: {}]
  %s5 = inlined_call_operand.vmem [shape: f32[32,32], index: 5, kind: output, shape index: {}]
  %s6 = sld [smem:[#allocation0]]
  $region53: #{_lambda_.6} parent=0
    _
  %s8 = ssub.s32 1, %s6
  %s9 = scalar_select 0, %s8, %s6
  loop: start=0, step=1, limit=4
  $region2: #{_lambda_.6} parent=0 // loop_pre_header
    _
  $region3: #{_lambda_.6} parent=0 // loop_header
    %s11 = sphi 0, %s15
    %p12 = scmp.ge.s32.totalorder %s11, 4
    %s21 = sphi 0, %s23
    %s24 = sphi 0, %s21
    %s25 = sphi 0, %s24
    %s41 = sphi 0, %s25
    %s45 = sphi 0, %s45
    %s47 = sphi 0, %s45
    %s48 = sphi 0, %s47
    %s62 = sphi 0, %s48
    %s68 = sphi 0, %s70
    %s71 = sphi 0, %s68
    %s72 = sphi 0, %s71
    %s88 = sphi 0, %s72
    %s92 = sphi 0, %s92
    %s94 = sphi 0, %s92
    %s95 = sphi 0, %s94
    %s109 = sphi 0, %s95
    %s113 = sphi 0, %s113
    %s115 = sphi 0, %s113
    %s116 = sphi 0, %s115
    %s130 = sphi 0, %s116
    %s136 = sphi 0, %s138
    %s139 = sphi 0, %s136
    %s140 = sphi 0, %s139
    %s156 = sphi 0, %s140
  $region4: #{_lambda_.6} parent=0 // loop_header_branch
    %14 = sbr.rel (%p12) target = $region8
  $region5: #{_lambda_.6} parent=0 // loop_body
    %s16 = ssub.s32 %s11, 1
    %s17 = ssub.s32 %s11, 2
    %s18 = sadd.s32 %s11, 1
    %s19 = ssub.s32 %s11, %s18
    %p20 = scmp.eq.s32.totalorder %s19, 0
    %s22 = sadd.s32 %s21, 1
    %s23 = scalar_select %p20, %s21, %s22
    %p26 = pneg %p20
    %p27 = scmp.eq.s32.totalorder %s11, 1
    %p28 = por %p26, %p27
    %p29 = scmp.ne.s32.totalorder %s21, %s24
    %p30 = scmp.eq.s32.totalorder %s11, 0
    %p31 = por %p29, %p30
    %p32 = scmp.ne.s32.totalorder %s21, %s24
    %p33 = scmp.eq.s32.totalorder %s16, 1
    %p34 = por %p32, %p33
    %p35 = scmp.ne.s32.totalorder %s24, %s25
    %p36 = scmp.eq.s32.totalorder %s16, 0
    %p37 = por %p35, %p36
    %p38 = scmp.ne.s32.totalorder %s24, %s25
    %p39 = scmp.eq.s32.totalorder %s17, 1
    %p40 = por %p38, %p39
    %p42 = scmp.ne.s32.totalorder %s25, %s41
    %p43 = scmp.eq.s32.totalorder %s17, 0
    %p44 = por %p42, %p43
    %s46 = sadd.s32 %s45, 1
    %p49 = scmp.eq.s32.totalorder %s11, 1
    %p50 = scmp.ne.s32.totalorder %s45, %s47
    %p51 = scmp.eq.s32.totalorder %s11, 0
    %p52 = por %p50, %p51
    %p53 = scmp.ne.s32.totalorder %s45, %s47
    %p54 = scmp.eq.s32.totalorder %s16, 1
    %p55 = por %p53, %p54
    %p56 = scmp.ne.s32.totalorder %s47, %s48
    %p57 = scmp.eq.s32.totalorder %s16, 0
    %p58 = por %p56, %p57
    %p59 = scmp.ne.s32.totalorder %s47, %s48
    %p60 = scmp.eq.s32.totalorder %s17, 1
    %p61 = por %p59, %p60
    %p63 = scmp.ne.s32.totalorder %s48, %s62
    %p64 = scmp.eq.s32.totalorder %s17, 0
    %p65 = por %p63, %p64
    %s66 = ssub.s32 %s11, %s18
    %p67 = scmp.eq.s32.totalorder %s66, 0
    %s69 = sadd.s32 %s68, 1
    %s70 = scalar_select %p67, %s68, %s69
    %p73 = pneg %p67
    %p74 = scmp.eq.s32.totalorder %s11, 1
    %p75 = por %p73, %p74
    %p76 = scmp.ne.s32.totalorder %s68, %s71
    %p77 = scmp.eq.s32.totalorder %s11, 0
    %p78 = por %p76, %p77
    %p79 = scmp.ne.s32.totalorder %s68, %s71
    %p80 = scmp.eq.s32.totalorder %s16, 1
    %p81 = por %p79, %p80
    %p82 = scmp.ne.s32.totalorder %s71, %s72
    %p83 = scmp.eq.s32.totalorder %s16, 0
    %p84 = por %p82, %p83
    %p85 = scmp.ne.s32.totalorder %s71, %s72
    %p86 = scmp.eq.s32.totalorder %s17, 1
    %p87 = por %p85, %p86
    %p89 = scmp.ne.s32.totalorder %s72, %s88
    %p90 = scmp.eq.s32.totalorder %s17, 0
    %p91 = por %p89, %p90
    %s93 = sadd.s32 %s92, 1
    %p96 = scmp.eq.s32.totalorder %s11, 1
    %p97 = scmp.ne.s32.totalorder %s92, %s94
    %p98 = scmp.eq.s32.totalorder %s11, 0
    %p99 = por %p97, %p98
    %p100 = scmp.ne.s32.totalorder %s92, %s94
    %p101 = scmp.eq.s32.totalorder %s16, 1
    %p102 = por %p100, %p101
    %p103 = scmp.ne.s32.totalorder %s94, %s95
    %p104 = scmp.eq.s32.totalorder %s16, 0
    %p105 = por %p103, %p104
    %p106 = scmp.ne.s32.totalorder %s94, %s95
    %p107 = scmp.eq.s32.totalorder %s17, 1
    %p108 = por %p106, %p107
    %p110 = scmp.ne.s32.totalorder %s95, %s109
    %p111 = scmp.eq.s32.totalorder %s17, 0
    %p112 = por %p110, %p111
    %s114 = sadd.s32 %s113, 1
    %p117 = scmp.eq.s32.totalorder %s11, 1
    %p118 = scmp.ne.s32.totalorder %s113, %s115
    %p119 = scmp.eq.s32.totalorder %s11, 0
    %p120 = por %p118, %p119
    %p121 = scmp.ne.s32.totalorder %s113, %s115
    %p122 = scmp.eq.s32.totalorder %s16, 1
    %p123 = por %p121, %p122
    %p124 = scmp.ne.s32.totalorder %s115, %s116
    %p125 = scmp.eq.s32.totalorder %s16, 0
    %p126 = por %p124, %p125
    %p127 = scmp.ne.s32.totalorder %s115, %s116
    %p128 = scmp.eq.s32.totalorder %s17, 1
    %p129 = por %p127, %p128
    %p131 = scmp.ne.s32.totalorder %s116, %s130
    %p132 = scmp.eq.s32.totalorder %s17, 0
    %p133 = por %p131, %p132
    %s134 = ssub.s32 %s11, %s18
    %p135 = scmp.eq.s32.totalorder %s134, 0
    %s137 = sadd.s32 %s136, 1
    %s138 = scalar_select %p135, %s136, %s137
    %p141 = pneg %p135
    %p142 = scmp.eq.s32.totalorder %s11, 1
    %p143 = por %p141, %p142
    %p144 = scmp.ne.s32.totalorder %s136, %s139
    %p145 = scmp.eq.s32.totalorder %s11, 0
    %p146 = por %p144, %p145
    %p147 = scmp.ne.s32.totalorder %s136, %s139
    %p148 = scmp.eq.s32.totalorder %s16, 1
    %p149 = por %p147, %p148
    %p150 = scmp.ne.s32.totalorder %s139, %s140
    %p151 = scmp.eq.s32.totalorder %s16, 0
    %p152 = por %p150, %p151
    %p153 = scmp.ne.s32.totalorder %s139, %s140
    %p154 = scmp.eq.s32.totalorder %s17, 1
    %p155 = por %p153, %p154
    %p157 = scmp.ne.s32.totalorder %s140, %s156
    %p158 = scmp.eq.s32.totalorder %s17, 0
    %p159 = por %p157, %p158
    %p160 = scmp.le.s32.totalorder 1, %s11
    %p161 = scmp.lt.s32.totalorder %s11, 3
    %p162 = pnand %p160, %p161
    %p163 = pneg %p162
    // Predicated region
    $region9: #{_lambda_.6} parent=5 // pred_check
      _
    $region10: #{_lambda_.6} parent=5 // pred_check_branch
      %165 = sbr.rel (%p162) target = $region12
    $region11: #{_lambda_.6} parent=5 // pred_region
      %s166 = ssub.s32 %s11, 1
      // Predicated region
      $region13: #{_lambda_.6} parent=11 // pred_check
        %p167 = pneg %p58
      $region14: #{_lambda_.6} parent=11 // pred_check_branch
        %169 = sbr.rel (%p167) target = $region16
      $region15: #{_lambda_.6} parent=11 // pred_region
        _
      $region16: #{_lambda_.6} parent=11 // pred_fallthru
        _
      // Predicated region
      $region17: #{_lambda_.6} parent=11 // pred_check
        %p170 = pneg %p105
      $region18: #{_lambda_.6} parent=11 // pred_check_branch
        %172 = sbr.rel (%p170) target = $region20
      $region19: #{_lambda_.6} parent=11 // pred_region
        _
      $region20: #{_lambda_.6} parent=11 // pred_fallthru
        _
      // Predicated region
      $region21: #{_lambda_.6} parent=11 // pred_check
        %p173 = pneg %p126
      $region22: #{_lambda_.6} parent=11 // pred_check_branch
        %175 = sbr.rel (%p173) target = $region24
      $region23: #{_lambda_.6} parent=11 // pred_region
        _
      $region24: #{_lambda_.6} parent=11 // pred_fallthru
        _
    $region12: #{_lambda_.6} parent=5 // pred_fallthru
      _
    %p176 = scmp.lt.s32.totalorder %s11, 2
    // Predicated region
    $region25: #{_lambda_.6} parent=5 // pred_check
      %p177 = pneg %p176
    $region26: #{_lambda_.6} parent=5 // pred_check_branch
      %179 = sbr.rel (%p177) target = $region28
    $region27: #{_lambda_.6} parent=5 // pred_region
      // Predicated region
      $region29: #{_lambda_.6} parent=27 // pred_check
        %p180 = pneg %p31
      $region30: #{_lambda_.6} parent=27 // pred_check_branch
        %182 = sbr.rel (%p180) target = $region32
      $region31: #{_lambda_.6} parent=27 // pred_region
        %s183 = smul.u32 2, %s11
        %p184 = scmp.lt.s32.totalorder %s183, 3
        %s185 = scalar_select %p184, %s183, 3
        %s186 = smul.addr %s185, 8
        %s187 = scalar_lea.vmem %s0, %s186
        %s188 = smul.u32 2, %s11
      $region32: #{_lambda_.6} parent=27 // pred_fallthru
        _
      // Predicated region
      $region33: #{_lambda_.6} parent=27 // pred_check
        %p189 = pneg %p78
      $region34: #{_lambda_.6} parent=27 // pred_check_branch
        %191 = sbr.rel (%p189) target = $region36
      $region35: #{_lambda_.6} parent=27 // pred_region
        %s192 = smul.u32 2, %s11
        %p193 = scmp.lt.s32.totalorder %s192, 3
        %s194 = scalar_select %p193, %s192, 3
        %s195 = smul.addr %s194, 8
        %s196 = scalar_lea.vmem %s2, %s195
        %s197 = smul.u32 2, %s11
      $region36: #{_lambda_.6} parent=27 // pred_fallthru
        _
    $region28: #{_lambda_.6} parent=5 // pred_fallthru
      _
    %p198 = scmp.le.s32.totalorder 1, %s11
    %p199 = scmp.lt.s32.totalorder %s11, 3
    %p200 = pnand %p198, %p199
    %p201 = pneg %p200
    // Predicated region
    $region37: #{_lambda_.6} parent=5 // pred_check
      _
    $region38: #{_lambda_.6} parent=5 // pred_check_branch
      %203 = sbr.rel (%p200) target = $region40
    $region39: #{_lambda_.6} parent=5 // pred_region
      %s204 = ssub.s32 %s11, 1
      %s205 = smul.u32 2, %s16
      %p206 = scmp.lt.s32.totalorder %s205, 3
      %s207 = scalar_select %p206, %s205, 3
      %s208 = smul.addr %s207, 8
      %s209 = scalar_lea.vmem %s0, %s208
      %p210 = pneg %p37
      %p211 = pneg %p34
      %p212 = pneg %p58
      %p213 = pneg %p55
      %s214 = smul.u32 2, %s16
      %p215 = scmp.lt.s32.totalorder %s214, 3
      %s216 = scalar_select %p215, %s214, 3
      %s217 = smul.addr %s216, 8
      %s218 = scalar_lea.vmem %s2, %s217
      %p219 = pneg %p84
      %p220 = pneg %p81
      %p221 = pneg %p105
      %p222 = pneg %p102
      %p223 = pneg %p126
      %p224 = pneg %p123
      %p225 = pneg %p152
      %p226 = pneg %p149
      %s227 = smul.u32 2, %s16
      %p228 = scmp.lt.s32.totalorder %s227, 3
      %s229 = scalar_select %p228, %s227, 3
      %s230 = smul.addr %s229, 8
      %s231 = scalar_lea.vmem %s5, %s230
      %s232 = smul.u32 2, %s16
      %p233 = scmp.lt.s32.totalorder %s232, 3
      %s234 = scalar_select %p233, %s232, 3
      %s235 = smul.addr %s234, 8
      %s236 = scalar_lea.vmem %s0, %s235
      %s237 = smul.u32 2, %s16
      %s238 = smul.u32 2, %s16
      %p239 = scmp.lt.s32.totalorder %s238, 3
      %s240 = scalar_select %p239, %s238, 3
      %s241 = smul.addr %s240, 8
      %s242 = scalar_lea.vmem %s2, %s241
      %s243 = smul.u32 2, %s16
      %s244 = smul.u32 2, %s16
      %p245 = scmp.lt.s32.totalorder %s244, 3
      %s246 = scalar_select %p245, %s244, 3
      %s247 = smul.addr %s246, 8
      %s248 = scalar_lea.vmem %s5, %s247
      %s249 = smul.u32 2, %s16
      %v250 = vld [vmem:[%s236] sm:$0xff]
      %v251 = vld [vmem:[%s236 + $0x8] sm:$0xff]
      %v252 = vld [vmem:[%s1] sm:$0xff]
      %v253 = vld [vmem:[%s1 + $0x8] sm:$0xff]
      %v254 = vld [vmem:[%s1 + $0x10] sm:$0xff]
      %v255 = vld [vmem:[%s1 + $0x18] sm:$0xff]
      %v256 = vld [vmem:[%s1 + $0x20] sm:$0xff]
      %v257 = vld [vmem:[%s1 + $0x28] sm:$0xff]
      %v258 = vld [vmem:[%s1 + $0x30] sm:$0xff]
      %v259 = vld [vmem:[%s1 + $0x38] sm:$0xff]
      %v260 = vld [vmem:[%s242] sm:$0xff]
      %v261 = vld [vmem:[%s242 + $0x8] sm:$0xff]
      %vm262 = vcmask 523264
      %v264 = vsel %vm262, %v250, 0
      %v267 = vsel %vm262, %v251, 0
      %269 = vmatprep.subr.mxu0 0.0
      %270 = vmatpush1.msra.mxu0 0.0
      %271 = vmatprep.subr.mxu0 0.0
      %272 = vmatpush1.msra.mxu0 0.0
      %273 = vmatprep.subr.mxu0 0.0
      %274 = vmatpush1.msra.mxu0 0.0
      %275 = vmatprep.subr.mxu0 0.0
      %276 = vmatpush1.msra.mxu0 0.0
      %277 = vmatprep.subr.mxu0 0.0
      %278 = vmatpush1.msra.mxu0 0.0
      %279 = vmatprep.subr.mxu0 0.0
      %280 = vmatpush1.msra.mxu0 0.0
      %281 = vmatprep.subr.mxu0 0.0
      %282 = vmatpush1.msra.mxu0 0.0
      %283 = vmatprep.subr.mxu0 0.0
      %284 = vmatpush1.msra.mxu0 0.0
      %285 = vmatprep.subr.mxu0 0.0
      %286 = vmatpush1.msra.mxu0 %v259
      %287 = vmatprep.subr.mxu0 0.0
      %288 = vmatpush1.msra.mxu0 %v258
      %289 = vmatprep.subr.mxu0 0.0
      %290 = vmatpush1.msra.mxu0 %v257
      %291 = vmatprep.subr.mxu0 0.0
      %292 = vmatpush1.msra.mxu0 %v256
      %293 = vmatprep.subr.mxu0 0.0
      %294 = vmatpush1.msra.mxu0 %v255
      %295 = vmatprep.subr.mxu0 0.0
      %296 = vmatpush1.msra.mxu0 %v254
      %297 = vmatprep.subr.mxu0 0.0
      %298 = vmatpush1.msra.mxu0 %v253
      %299 = vmatprep.subr.mxu0 0.0
      %300 = vmatpush1.msra.mxu0 %v252
      %301 = vmatprep.subr.mxu0 0.0
      %302 = vmatpush2.msra.mxu0 0.0
      %303 = vmatprep.subr.mxu0 0.0
      %304 = vmatpush2.msra.mxu0 0.0
      %305 = vmatprep.subr.mxu0 0.0
      %306 = vmatpush2.msra.mxu0 0.0
      %307 = vmatprep.subr.mxu0 0.0
      %308 = vmatpush2.msra.mxu0 0.0
      %309 = vmatprep.subr.mxu0 0.0
      %310 = vmatpush2.msra.mxu0 0.0
      %311 = vmatprep.subr.mxu0 0.0
      %312 = vmatpush2.msra.mxu0 0.0
      %313 = vmatprep.subr.mxu0 0.0
      %314 = vmatpush2.msra.mxu0 0.0
      %315 = vmatprep.subr.mxu0 0.0
      %316 = vmatpush2.msra.mxu0 0.0
      %317 = vmatprep.subr.mxu0 0.0
      %318 = vmatpush2.msra.mxu0 0.0
      %319 = vmatprep.subr.mxu0 0.0
      %320 = vmatpush2.msra.mxu0 0.0
      %321 = vmatprep.subr.mxu0 0.0
      %322 = vmatpush2.msra.mxu0 0.0
      %323 = vmatprep.subr.mxu0 0.0
      %324 = vmatpush2.msra.mxu0 0.0
      %325 = vmatprep.subr.mxu0 0.0
      %326 = vmatpush2.msra.mxu0 0.0
      %327 = vmatprep.subr.mxu0 0.0
      %328 = vmatpush2.msra.mxu0 0.0
      %329 = vmatprep.subr.mxu0 0.0
      %330 = vmatpush2.msra.mxu0 0.0
      %331 = vmatprep.subr.mxu0 0.0
      %332 = vmatpush2.msra.mxu0 0.0
      %333 = vmatprep.mubr.f32.mxu0 0.0
      %334 = vmatmul.mubr.f32.gmra.mxu0 %v264
      %v335 = vpop.f32.mrf.mxu0
      %v336 = vadd.f32 %v260, %v335
      %v337 = vpop.f32.mrf.mxu0
      %338 = vmatprep.mubr.f32.mxu0 0.0
      %339 = vmatmul.mubr.f32.gmra.mxu0 %v267
      %v340 = vpop.f32.mrf.mxu0
      %v341 = vadd.f32 %v261, %v340
      %v342 = vpop.f32.mrf.mxu0
      %343 = vdwg.mxu0
      %vm344 = vcmask 261120
      %v345 = vsel %vm344, %v336, 0.0
      %346 = vadd.xlane.f32.xlu0 %v345
      %v347 = vpop.xlane.xlu0 %346
      %v348 = vsel %vm344, %v341, 0.0
      %349 = vadd.xlane.f32.xlu0 %v348
      %v350 = vpop.xlane.xlu0 %349
      %v351 = vrcp.pop 32.0
      %v352 = vmul.f32 %v347, %v351
      %v353 = vmul.f32 %v350, %v351
      %v354 = vsub.f32 %v336, %v352
      %v355 = vsub.f32 %v341, %v353
      %v356 = vmul.f32 %v354, %v354
      %v357 = vmul.f32 %v355, %v355
      %v358 = vsel %vm344, %v356, 0.0
      %359 = vadd.xlane.f32.xlu0 %v358
      %v360 = vpop.xlane.xlu0 %359
      %v361 = vsel %vm344, %v357, 0.0
      %362 = vadd.xlane.f32.xlu0 %v361
      %v363 = vpop.xlane.xlu0 %362
      %v364 = vmul.f32 %v360, %v351
      %v365 = vmul.f32 %v363, %v351
      %v366 = vadd.f32 %v364, 1e-05
      %v367 = vadd.f32 %v365, 1e-05
      %v368 = vrsqrt.pop %v366
      %v369 = vrsqrt.pop %v367
      %v370 = vmul.f32 %v354, %v368
      %v371 = vmul.f32 %v355, %v369
      %v372 = vld [vmem:[%s3] sm:$0x1]
      %v374 = vlaneseq
      %v375 = vshrl.u32 %v374, 7
      %v376 = vsub.s32 0, %v375
      %v377 = vrot.slane %v372, %v376
      %v379 = vmul.f32 %v370, %v377
      %v380 = vmul.f32 %v371, %v377
      %v381 = vld [vmem:[%s4] sm:$0x1]
      %v383 = vlaneseq
      %v384 = vshrl.u32 %v383, 7
      %v385 = vsub.s32 0, %v384
      %v386 = vrot.slane %v381, %v385
      %v388 = vadd.f32 %v379, %v386
      %v389 = vadd.f32 %v380, %v386
      %390 = vst.msk [vmem:[%s248] sm:$0xff] %vm344, %v388
      %391 = vst.msk [vmem:[%s248 + $0x8] sm:$0xff] %vm344, %v389
      %s392 = smul.u32 2, %s16
      %p393 = scmp.lt.s32.totalorder %s392, 3
      %s394 = scalar_select %p393, %s392, 3
      %s395 = smul.addr %s394, 8
      %s396 = scalar_lea.vmem %s5, %s395
      // Predicated region
      $region41: #{_lambda_.6} parent=39 // pred_check
        %p397 = pneg %p149
      $region42: #{_lambda_.6} parent=39 // pred_check_branch
        %399 = sbr.rel (%p397) target = $region44
      $region43: #{_lambda_.6} parent=39 // pred_region
        %s400 = smul.u32 2, %s16
      $region44: #{_lambda_.6} parent=39 // pred_fallthru
        _
    $region40: #{_lambda_.6} parent=5 // pred_fallthru
      _
    %p401 = scmp.le.s32.totalorder 2, %s11
    // Predicated region
    $region45: #{_lambda_.6} parent=5 // pred_check
      %p402 = pneg %p401
    $region46: #{_lambda_.6} parent=5 // pred_check_branch
      %404 = sbr.rel (%p402) target = $region48
    $region47: #{_lambda_.6} parent=5 // pred_region
      %s405 = ssub.s32 %s11, 2
      // Predicated region
      $region49: #{_lambda_.6} parent=47 // pred_check
        %p406 = pneg %p155
      $region50: #{_lambda_.6} parent=47 // pred_check_branch
        %408 = sbr.rel (%p406) target = $region52
      $region51: #{_lambda_.6} parent=47 // pred_region
        %s409 = smul.u32 2, %s17
        %p410 = scmp.lt.s32.totalorder %s409, 3
        %s411 = scalar_select %p410, %s409, 3
        %s412 = smul.addr %s411, 8
        %s413 = scalar_lea.vmem %s5, %s412
      $region52: #{_lambda_.6} parent=47 // pred_fallthru
        _
    $region48: #{_lambda_.6} parent=5 // pred_fallthru
      _
  $region6: #{_lambda_.6} parent=0 // loop_footer
    %s15 = sadd.s32 1, %s11
  $region7: #{_lambda_.6} parent=0 // loop_footer_branch
    %10 = sbr.rel target = $region3
  $region8: #{_lambda_.6} parent=0 // loop_exit
    _

// kernel: _lambda_.8
$region0: #{_lambda_.8}
  #allocation0 [shape = 'u32[]', space=smem, size = 0x4, offset = 0x4, fixed_abs, tag = 'smem constant byte address 0x4 - core index']
  #allocation1 [shape = 'u32[144,128]{1,0:T(1,128)}', space=vmem, size = 0x12000, scoped, tag = 'internal scratch']
  %s0 = inlined_call_operand.vmem [shape: f32[32,32], index: 0, kind: input, shape index: {}]
  %s1 = inlined_call_operand.vmem [shape: f32[1,32], index: 1, kind: input, shape index: {}]
  %s2 = inlined_call_operand.vmem [shape: f32[1,32], index: 2, kind: input, shape index: {}, may-alias: {2,6}]
  %s3 = inlined_call_operand.vmem [shape: f32[32,128], index: 3, kind: input, shape index: {}]
  %s4 = inlined_call_operand.vmem [shape: f32[1,128], index: 4, kind: input, shape index: {}]
  %s5 = inlined_call_operand.vmem [shape: f32[128,32], index: 5, kind: input, shape index: {}]
  %s6 = inlined_call_operand.vmem [shape: f32[1,32], index: 6, kind: input, shape index: {}, may-alias: {2,6}]
  %s7 = inlined_call_operand.vmem [shape: f32[32,32], index: 7, kind: output, shape index: {}]
  %s8 = sld [smem:[#allocation0]]
  $region61: #{_lambda_.8} parent=0
    _
  %s10 = ssub.s32 1, %s8
  %s11 = scalar_select 0, %s10, %s8
  loop: start=0, step=1, limit=4
  $region2: #{_lambda_.8} parent=0 // loop_pre_header
    _
  $region3: #{_lambda_.8} parent=0 // loop_header
    %s13 = sphi 0, %s17
    %p14 = scmp.ge.s32.totalorder %s13, 4
    %s23 = sphi 0, %s25
    %s26 = sphi 0, %s23
    %s27 = sphi 0, %s26
    %s43 = sphi 0, %s27
    %s47 = sphi 0, %s47
    %s49 = sphi 0, %s47
    %s50 = sphi 0, %s49
    %s64 = sphi 0, %s50
    %s68 = sphi 0, %s68
    %s70 = sphi 0, %s68
    %s71 = sphi 0, %s70
    %s85 = sphi 0, %s71
    %s89 = sphi 0, %s89
    %s91 = sphi 0, %s89
    %s92 = sphi 0, %s91
    %s106 = sphi 0, %s92
    %s110 = sphi 0, %s110
    %s112 = sphi 0, %s110
    %s113 = sphi 0, %s112
    %s127 = sphi 0, %s113
    %s131 = sphi 0, %s131
    %s133 = sphi 0, %s131
    %s134 = sphi 0, %s133
    %s148 = sphi 0, %s134
    %s152 = sphi 0, %s152
    %s154 = sphi 0, %s152
    %s155 = sphi 0, %s154
    %s169 = sphi 0, %s155
    %s175 = sphi 0, %s177
    %s178 = sphi 0, %s175
    %s179 = sphi 0, %s178
    %s195 = sphi 0, %s179
  $region4: #{_lambda_.8} parent=0 // loop_header_branch
    %16 = sbr.rel (%p14) target = $region8
  $region5: #{_lambda_.8} parent=0 // loop_body
    %s18 = ssub.s32 %s13, 1
    %s19 = ssub.s32 %s13, 2
    %s20 = sadd.s32 %s13, 1
    %s21 = ssub.s32 %s13, %s20
    %p22 = scmp.eq.s32.totalorder %s21, 0
    %s24 = sadd.s32 %s23, 1
    %s25 = scalar_select %p22, %s23, %s24
    %p28 = pneg %p22
    %p29 = scmp.eq.s32.totalorder %s13, 1
    %p30 = por %p28, %p29
    %p31 = scmp.ne.s32.totalorder %s23, %s26
    %p32 = scmp.eq.s32.totalorder %s13, 0
    %p33 = por %p31, %p32
    %p34 = scmp.ne.s32.totalorder %s23, %s26
    %p35 = scmp.eq.s32.totalorder %s18, 1
    %p36 = por %p34, %p35
    %p37 = scmp.ne.s32.totalorder %s26, %s27
    %p38 = scmp.eq.s32.totalorder %s18, 0
    %p39 = por %p37, %p38
    %p40 = scmp.ne.s32.totalorder %s26, %s27
    %p41 = scmp.eq.s32.totalorder %s19, 1
    %p42 = por %p40, %p41
    %p44 = scmp.ne.s32.totalorder %s27, %s43
    %p45 = scmp.eq.s32.totalorder %s19, 0
    %p46 = por %p44, %p45
    %s48 = sadd.s32 %s47, 1
    %p51 = scmp.eq.s32.totalorder %s13, 1
    %p52 = scmp.ne.s32.totalorder %s47, %s49
    %p53 = scmp.eq.s32.totalorder %s13, 0
    %p54 = por %p52, %p53
    %p55 = scmp.ne.s32.totalorder %s47, %s49
    %p56 = scmp.eq.s32.totalorder %s18, 1
    %p57 = por %p55, %p56
    %p58 = scmp.ne.s32.totalorder %s49, %s50
    %p59 = scmp.eq.s32.totalorder %s18, 0
    %p60 = por %p58, %p59
    %p61 = scmp.ne.s32.totalorder %s49, %s50
    %p62 = scmp.eq.s32.totalorder %s19, 1
    %p63 = por %p61, %p62
    %p65 = scmp.ne.s32.totalorder %s50, %s64
    %p66 = scmp.eq.s32.totalorder %s19, 0
    %p67 = por %p65, %p66
    %s69 = sadd.s32 %s68, 1
    %p72 = scmp.eq.s32.totalorder %s13, 1
    %p73 = scmp.ne.s32.totalorder %s68, %s70
    %p74 = scmp.eq.s32.totalorder %s13, 0
    %p75 = por %p73, %p74
    %p76 = scmp.ne.s32.totalorder %s68, %s70
    %p77 = scmp.eq.s32.totalorder %s18, 1
    %p78 = por %p76, %p77
    %p79 = scmp.ne.s32.totalorder %s70, %s71
    %p80 = scmp.eq.s32.totalorder %s18, 0
    %p81 = por %p79, %p80
    %p82 = scmp.ne.s32.totalorder %s70, %s71
    %p83 = scmp.eq.s32.totalorder %s19, 1
    %p84 = por %p82, %p83
    %p86 = scmp.ne.s32.totalorder %s71, %s85
    %p87 = scmp.eq.s32.totalorder %s19, 0
    %p88 = por %p86, %p87
    %s90 = sadd.s32 %s89, 1
    %p93 = scmp.eq.s32.totalorder %s13, 1
    %p94 = scmp.ne.s32.totalorder %s89, %s91
    %p95 = scmp.eq.s32.totalorder %s13, 0
    %p96 = por %p94, %p95
    %p97 = scmp.ne.s32.totalorder %s89, %s91
    %p98 = scmp.eq.s32.totalorder %s18, 1
    %p99 = por %p97, %p98
    %p100 = scmp.ne.s32.totalorder %s91, %s92
    %p101 = scmp.eq.s32.totalorder %s18, 0
    %p102 = por %p100, %p101
    %p103 = scmp.ne.s32.totalorder %s91, %s92
    %p104 = scmp.eq.s32.totalorder %s19, 1
    %p105 = por %p103, %p104
    %p107 = scmp.ne.s32.totalorder %s92, %s106
    %p108 = scmp.eq.s32.totalorder %s19, 0
    %p109 = por %p107, %p108
    %s111 = sadd.s32 %s110, 1
    %p114 = scmp.eq.s32.totalorder %s13, 1
    %p115 = scmp.ne.s32.totalorder %s110, %s112
    %p116 = scmp.eq.s32.totalorder %s13, 0
    %p117 = por %p115, %p116
    %p118 = scmp.ne.s32.totalorder %s110, %s112
    %p119 = scmp.eq.s32.totalorder %s18, 1
    %p120 = por %p118, %p119
    %p121 = scmp.ne.s32.totalorder %s112, %s113
    %p122 = scmp.eq.s32.totalorder %s18, 0
    %p123 = por %p121, %p122
    %p124 = scmp.ne.s32.totalorder %s112, %s113
    %p125 = scmp.eq.s32.totalorder %s19, 1
    %p126 = por %p124, %p125
    %p128 = scmp.ne.s32.totalorder %s113, %s127
    %p129 = scmp.eq.s32.totalorder %s19, 0
    %p130 = por %p128, %p129
    %s132 = sadd.s32 %s131, 1
    %p135 = scmp.eq.s32.totalorder %s13, 1
    %p136 = scmp.ne.s32.totalorder %s131, %s133
    %p137 = scmp.eq.s32.totalorder %s13, 0
    %p138 = por %p136, %p137
    %p139 = scmp.ne.s32.totalorder %s131, %s133
    %p140 = scmp.eq.s32.totalorder %s18, 1
    %p141 = por %p139, %p140
    %p142 = scmp.ne.s32.totalorder %s133, %s134
    %p143 = scmp.eq.s32.totalorder %s18, 0
    %p144 = por %p142, %p143
    %p145 = scmp.ne.s32.totalorder %s133, %s134
    %p146 = scmp.eq.s32.totalorder %s19, 1
    %p147 = por %p145, %p146
    %p149 = scmp.ne.s32.totalorder %s134, %s148
    %p150 = scmp.eq.s32.totalorder %s19, 0
    %p151 = por %p149, %p150
    %s153 = sadd.s32 %s152, 1
    %p156 = scmp.eq.s32.totalorder %s13, 1
    %p157 = scmp.ne.s32.totalorder %s152, %s154
    %p158 = scmp.eq.s32.totalorder %s13, 0
    %p159 = por %p157, %p158
    %p160 = scmp.ne.s32.totalorder %s152, %s154
    %p161 = scmp.eq.s32.totalorder %s18, 1
    %p162 = por %p160, %p161
    %p163 = scmp.ne.s32.totalorder %s154, %s155
    %p164 = scmp.eq.s32.totalorder %s18, 0
    %p165 = por %p163, %p164
    %p166 = scmp.ne.s32.totalorder %s154, %s155
    %p167 = scmp.eq.s32.totalorder %s19, 1
    %p168 = por %p166, %p167
    %p170 = scmp.ne.s32.totalorder %s155, %s169
    %p171 = scmp.eq.s32.totalorder %s19, 0
    %p172 = por %p170, %p171
    %s173 = ssub.s32 %s13, %s20
    %p174 = scmp.eq.s32.totalorder %s173, 0
    %s176 = sadd.s32 %s175, 1
    %s177 = scalar_select %p174, %s175, %s176
    %p180 = pneg %p174
    %p181 = scmp.eq.s32.totalorder %s13, 1
    %p182 = por %p180, %p181
    %p183 = scmp.ne.s32.totalorder %s175, %s178
    %p184 = scmp.eq.s32.totalorder %s13, 0
    %p185 = por %p183, %p184
    %p186 = scmp.ne.s32.totalorder %s175, %s178
    %p187 = scmp.eq.s32.totalorder %s18, 1
    %p188 = por %p186, %p187
    %p189 = scmp.ne.s32.totalorder %s178, %s179
    %p190 = scmp.eq.s32.totalorder %s18, 0
    %p191 = por %p189, %p190
    %p192 = scmp.ne.s32.totalorder %s178, %s179
    %p193 = scmp.eq.s32.totalorder %s19, 1
    %p194 = por %p192, %p193
    %p196 = scmp.ne.s32.totalorder %s179, %s195
    %p197 = scmp.eq.s32.totalorder %s19, 0
    %p198 = por %p196, %p197
    %p199 = scmp.le.s32.totalorder 1, %s13
    %p200 = scmp.lt.s32.totalorder %s13, 3
    %p201 = pnand %p199, %p200
    %p202 = pneg %p201
    // Predicated region
    $region9: #{_lambda_.8} parent=5 // pred_check
      _
    $region10: #{_lambda_.8} parent=5 // pred_check_branch
      %204 = sbr.rel (%p201) target = $region12
    $region11: #{_lambda_.8} parent=5 // pred_region
      %s205 = ssub.s32 %s13, 1
      // Predicated region
      $region13: #{_lambda_.8} parent=11 // pred_check
        %p206 = pneg %p60
      $region14: #{_lambda_.8} parent=11 // pred_check_branch
        %208 = sbr.rel (%p206) target = $region16
      $region15: #{_lambda_.8} parent=11 // pred_region
        _
      $region16: #{_lambda_.8} parent=11 // pred_fallthru
        _
      // Predicated region
      $region17: #{_lambda_.8} parent=11 // pred_check
        %p209 = pneg %p81
      $region18: #{_lambda_.8} parent=11 // pred_check_branch
        %211 = sbr.rel (%p209) target = $region20
      $region19: #{_lambda_.8} parent=11 // pred_region
        _
      $region20: #{_lambda_.8} parent=11 // pred_fallthru
        _
      // Predicated region
      $region21: #{_lambda_.8} parent=11 // pred_check
        %p212 = pneg %p102
      $region22: #{_lambda_.8} parent=11 // pred_check_branch
        %214 = sbr.rel (%p212) target = $region24
      $region23: #{_lambda_.8} parent=11 // pred_region
        _
      $region24: #{_lambda_.8} parent=11 // pred_fallthru
        _
      // Predicated region
      $region25: #{_lambda_.8} parent=11 // pred_check
        %p215 = pneg %p123
      $region26: #{_lambda_.8} parent=11 // pred_check_branch
        %217 = sbr.rel (%p215) target = $region28
      $region27: #{_lambda_.8} parent=11 // pred_region
        _
      $region28: #{_lambda_.8} parent=11 // pred_fallthru
        _
      // Predicated region
      $region29: #{_lambda_.8} parent=11 // pred_check
        %p218 = pneg %p144
      $region30: #{_lambda_.8} parent=11 // pred_check_branch
        %220 = sbr.rel (%p218) target = $region32
      $region31: #{_lambda_.8} parent=11 // pred_region
        _
      $region32: #{_lambda_.8} parent=11 // pred_fallthru
        _
      // Predicated region
      $region33: #{_lambda_.8} parent=11 // pred_check
        %p221 = pneg %p165
      $region34: #{_lambda_.8} parent=11 // pred_check_branch
        %223 = sbr.rel (%p221) target = $region36
      $region35: #{_lambda_.8} parent=11 // pred_region
        _
      $region36: #{_lambda_.8} parent=11 // pred_fallthru
        _
    $region12: #{_lambda_.8} parent=5 // pred_fallthru
      _
    %p224 = scmp.lt.s32.totalorder %s13, 2
    // Predicated region
    $region37: #{_lambda_.8} parent=5 // pred_check
      %p225 = pneg %p224
    $region38: #{_lambda_.8} parent=5 // pred_check_branch
      %227 = sbr.rel (%p225) target = $region40
    $region39: #{_lambda_.8} parent=5 // pred_region
      // Predicated region
      $region41: #{_lambda_.8} parent=39 // pred_check
        %p228 = pneg %p33
      $region42: #{_lambda_.8} parent=39 // pred_check_branch
        %230 = sbr.rel (%p228) target = $region44
      $region43: #{_lambda_.8} parent=39 // pred_region
        %s231 = smul.u32 2, %s13
        %p232 = scmp.lt.s32.totalorder %s231, 3
        %s233 = scalar_select %p232, %s231, 3
        %s234 = smul.addr %s233, 8
        %s235 = scalar_lea.vmem %s0, %s234
        %s236 = smul.u32 2, %s13
      $region44: #{_lambda_.8} parent=39 // pred_fallthru
        _
    $region40: #{_lambda_.8} parent=5 // pred_fallthru
      _
    %p237 = scmp.le.s32.totalorder 1, %s13
    %p238 = scmp.lt.s32.totalorder %s13, 3
    %p239 = pnand %p237, %p238
    %p240 = pneg %p239
    // Predicated region
    $region45: #{_lambda_.8} parent=5 // pred_check
      _
    $region46: #{_lambda_.8} parent=5 // pred_check_branch
      %242 = sbr.rel (%p239) target = $region48
    $region47: #{_lambda_.8} parent=5 // pred_region
      %s243 = ssub.s32 %s13, 1
      %s244 = smul.u32 2, %s18
      %p245 = scmp.lt.s32.totalorder %s244, 3
      %s246 = scalar_select %p245, %s244, 3
      %s247 = smul.addr %s246, 8
      %s248 = scalar_lea.vmem %s0, %s247
      %p249 = pneg %p39
      %p250 = pneg %p36
      %p251 = pneg %p60
      %p252 = pneg %p57
      %p253 = pneg %p81
      %p254 = pneg %p78
      %p255 = pneg %p102
      %p256 = pneg %p99
      %p257 = pneg %p123
      %p258 = pneg %p120
      %p259 = pneg %p144
      %p260 = pneg %p141
      %p261 = pneg %p165
      %p262 = pneg %p162
      %p263 = pneg %p191
      %p264 = pneg %p188
      %s265 = smul.u32 2, %s18
      %p266 = scmp.lt.s32.totalorder %s265, 3
      %s267 = scalar_select %p266, %s265, 3
      %s268 = smul.addr %s267, 8
      %s269 = scalar_lea.vmem %s7, %s268
      %s270 = smul.u32 2, %s18
      %p271 = scmp.lt.s32.totalorder %s270, 3
      %s272 = scalar_select %p271, %s270, 3
      %s273 = smul.addr %s272, 8
      %s274 = scalar_lea.vmem %s0, %s273
      %s275 = smul.u32 2, %s18
      %s276 = smul.u32 2, %s18
      %p277 = scmp.lt.s32.totalorder %s276, 3
      %s278 = scalar_select %p277, %s276, 3
      %s279 = smul.addr %s278, 8
      %s280 = scalar_lea.vmem %s7, %s279
      %s281 = smul.u32 2, %s18
      %v282 = vld [vmem:[%s274] sm:$0xff]
      %v283 = vld [vmem:[%s274 + $0x8] sm:$0xff]
      %vm284 = vcmask 261120
      %v285 = vsel %vm284, %v282, 0.0
      %286 = vadd.xlane.f32.xlu0 %v285
      %v287 = vpop.xlane.xlu0 %286
      %v288 = vsel %vm284, %v283, 0.0
      %289 = vadd.xlane.f32.xlu0 %v288
      %v290 = vpop.xlane.xlu0 %289
      %v291 = vrcp.pop 32.0
      %v292 = vmul.f32 %v287, %v291
      %v293 = vmul.f32 %v290, %v291
      %v294 = vsub.f32 %v282, %v292
      %v295 = vsub.f32 %v283, %v293
      %v296 = vmul.f32 %v294, %v294
      %v297 = vmul.f32 %v295, %v295
      %v298 = vsel %vm284, %v296, 0.0
      %299 = vadd.xlane.f32.xlu0 %v298
      %v300 = vpop.xlane.xlu0 %299
      %v301 = vsel %vm284, %v297, 0.0
      %302 = vadd.xlane.f32.xlu0 %v301
      %v303 = vpop.xlane.xlu0 %302
      %v304 = vmul.f32 %v300, %v291
      %v305 = vmul.f32 %v303, %v291
      %v306 = vadd.f32 %v304, 1e-05
      %v307 = vadd.f32 %v305, 1e-05
      %v308 = vrsqrt.pop %v306
      %v309 = vrsqrt.pop %v307
      %v310 = vmul.f32 %v294, %v308
      %v311 = vmul.f32 %v295, %v309
      %v312 = vld [vmem:[%s1] sm:$0x1]
      %v314 = vlaneseq
      %v315 = vshrl.u32 %v314, 7
      %v316 = vsub.s32 0, %v315
      %v317 = vrot.slane %v312, %v316
      %v319 = vmul.f32 %v310, %v317
      %v320 = vmul.f32 %v311, %v317
      %v321 = vld [vmem:[%s2] sm:$0x1]
      %v323 = vlaneseq
      %v324 = vshrl.u32 %v323, 7
      %v325 = vsub.s32 0, %v324
      %v326 = vrot.slane %v321, %v325
      %v328 = vadd.f32 %v319, %v326
      %v329 = vadd.f32 %v320, %v326
      %v330 = vld [vmem:[%s3] sm:$0xff]
      %v331 = vld [vmem:[%s3 + $0x8] sm:$0xff]
      %v332 = vld [vmem:[%s3 + $0x10] sm:$0xff]
      %v333 = vld [vmem:[%s3 + $0x18] sm:$0xff]
      %v334 = vld [vmem:[%s4] sm:$0x1]
      %v336 = vlaneseq
      %v337 = vshrl.u32 %v336, 7
      %v338 = vsub.s32 0, %v337
      %v339 = vrot.slane %v334, %v338
      %v342 = vsel %vm284, %v328, 0
      %v345 = vsel %vm284, %v329, 0
      %347 = vmatprep.subr.mxu0 0.0
      %348 = vmatpush1.msra.mxu0 0.0
      %349 = vmatprep.subr.mxu0 0.0
      %350 = vmatpush1.msra.mxu0 0.0
      %351 = vmatprep.subr.mxu0 0.0
      %352 = vmatpush1.msra.mxu0 0.0
      %353 = vmatprep.subr.mxu0 0.0
      %354 = vmatpush1.msra.mxu0 0.0
      %355 = vmatprep.subr.mxu0 0.0
      %356 = vmatpush1.msra.mxu0 0.0
      %357 = vmatprep.subr.mxu0 0.0
      %358 = vmatpush1.msra.mxu0 0.0
      %359 = vmatprep.subr.mxu0 0.0
      %360 = vmatpush1.msra.mxu0 0.0
      %361 = vmatprep.subr.mxu0 0.0
      %362 = vmatpush1.msra.mxu0 0.0
      %363 = vmatprep.subr.mxu0 0.0
      %364 = vmatpush1.msra.mxu0 0.0
      %365 = vmatprep.subr.mxu0 0.0
      %366 = vmatpush1.msra.mxu0 0.0
      %367 = vmatprep.subr.mxu0 0.0
      %368 = vmatpush1.msra.mxu0 0.0
      %369 = vmatprep.subr.mxu0 0.0
      %370 = vmatpush1.msra.mxu0 0.0
      %371 = vmatprep.subr.mxu0 0.0
      %372 = vmatpush1.msra.mxu0 %v333
      %373 = vmatprep.subr.mxu0 0.0
      %374 = vmatpush1.msra.mxu0 %v332
      %375 = vmatprep.subr.mxu0 0.0
      %376 = vmatpush1.msra.mxu0 %v331
      %377 = vmatprep.subr.mxu0 0.0
      %378 = vmatpush1.msra.mxu0 %v330
      %379 = vmatprep.subr.mxu0 0.0
      %380 = vmatpush2.msra.mxu0 0.0
      %381 = vmatprep.subr.mxu0 0.0
      %382 = vmatpush2.msra.mxu0 0.0
      %383 = vmatprep.subr.mxu0 0.0
      %384 = vmatpush2.msra.mxu0 0.0
      %385 = vmatprep.subr.mxu0 0.0
      %386 = vmatpush2.msra.mxu0 0.0
      %387 = vmatprep.subr.mxu0 0.0
      %388 = vmatpush2.msra.mxu0 0.0
      %389 = vmatprep.subr.mxu0 0.0
      %390 = vmatpush2.msra.mxu0 0.0
      %391 = vmatprep.subr.mxu0 0.0
      %392 = vmatpush2.msra.mxu0 0.0
      %393 = vmatprep.subr.mxu0 0.0
      %394 = vmatpush2.msra.mxu0 0.0
      %395 = vmatprep.subr.mxu0 0.0
      %396 = vmatpush2.msra.mxu0 0.0
      %397 = vmatprep.subr.mxu0 0.0
      %398 = vmatpush2.msra.mxu0 0.0
      %399 = vmatprep.subr.mxu0 0.0
      %400 = vmatpush2.msra.mxu0 0.0
      %401 = vmatprep.subr.mxu0 0.0
      %402 = vmatpush2.msra.mxu0 0.0
      %403 = vmatprep.subr.mxu0 0.0
      %404 = vmatpush2.msra.mxu0 0.0
      %405 = vmatprep.subr.mxu0 0.0
      %406 = vmatpush2.msra.mxu0 0.0
      %407 = vmatprep.subr.mxu0 0.0
      %408 = vmatpush2.msra.mxu0 0.0
      %409 = vmatprep.subr.mxu0 0.0
      %410 = vmatpush2.msra.mxu0 0.0
      %411 = vmatprep.mubr.f32.mxu0 0.0
      %412 = vmatmul.mubr.f32.gmra.mxu0 %v342
      %v413 = vpop.f32.mrf.mxu0
      %v414 = vadd.f32 %v339, %v413
      %v415 = vpop.f32.mrf.mxu0
      %416 = vmatprep.mubr.f32.mxu0 0.0
      %417 = vmatmul.mubr.f32.gmra.mxu0 %v345
      %v418 = vpop.f32.mrf.mxu0
      %v419 = vadd.f32 %v339, %v418
      %v420 = vpop.f32.mrf.mxu0
      %421 = vdwg.mxu0
      %v422 = vmul.f32 %v414, 1.702
      %v423 = vmul.f32 %v419, 1.702
      %v424 = vxor.u32 %v422, 2147483648
      %v425 = vxor.u32 %v423, 2147483648
      %v426 = vmul.f32 %v424, 1.442695
      %v427 = vpow.pop %v426
      %v428 = vmul.f32 %v425, 1.442695
      %v429 = vpow.pop %v428
      %v430 = vadd.f32 %v427, 1.0
      %v431 = vadd.f32 %v429, 1.0
      %v432 = vrcp.pop %v430
      %v433 = vmul.f32 1.0, %v432
      %v434 = vrcp.pop %v431
      %v435 = vmul.f32 1.0, %v434
      %v436 = vmul.f32 %v414, %v433
      %v437 = vmul.f32 %v419, %v435
      %v438 = vld [vmem:[%s5] sm:$0xff]
      %v439 = vld [vmem:[%s5 + $0x8] sm:$0xff]
      %v440 = vld [vmem:[%s5 + $0x10] sm:$0xff]
      %v441 = vld [vmem:[%s5 + $0x18] sm:$0xff]
      %v442 = vld [vmem:[%s5 + $0x20] sm:$0xff]
      %v443 = vld [vmem:[%s5 + $0x28] sm:$0xff]
      %v444 = vld [vmem:[%s5 + $0x30] sm:$0xff]
      %v445 = vld [vmem:[%s5 + $0x38] sm:$0xff]
      %v446 = vld [vmem:[%s5 + $0x40] sm:$0xff]
      %v447 = vld [vmem:[%s5 + $0x48] sm:$0xff]
      %v448 = vld [vmem:[%s5 + $0x50] sm:$0xff]
      %v449 = vld [vmem:[%s5 + $0x58] sm:$0xff]
      %v450 = vld [vmem:[%s5 + $0x60] sm:$0xff]
      %v451 = vld [vmem:[%s5 + $0x68] sm:$0xff]
      %v452 = vld [vmem:[%s5 + $0x70] sm:$0xff]
      %v453 = vld [vmem:[%s5 + $0x78] sm:$0xff]
      %v454 = vld [vmem:[%s6] sm:$0x1]
      %v456 = vlaneseq
      %v457 = vshrl.u32 %v456, 7
      %v458 = vsub.s32 0, %v457
      %v459 = vrot.slane %v454, %v458
      %461 = vmatprep.subr.mxu0 0.0
      %462 = vmatpush1.msra.mxu0 %v453
      %463 = vmatprep.subr.mxu0 0.0
      %464 = vmatpush1.msra.mxu0 %v452
      %465 = vmatprep.subr.mxu0 0.0
      %466 = vmatpush1.msra.mxu0 %v451
      %467 = vmatprep.subr.mxu0 0.0
      %468 = vmatpush1.msra.mxu0 %v450
      %469 = vmatprep.subr.mxu0 0.0
      %470 = vmatpush1.msra.mxu0 %v449
      %471 = vmatprep.subr.mxu0 0.0
      %472 = vmatpush1.msra.mxu0 %v448
      %473 = vmatprep.subr.mxu0 0.0
      %474 = vmatpush1.msra.mxu0 %v447
      %475 = vmatprep.subr.mxu0 0.0
      %476 = vmatpush1.msra.mxu0 %v446
      %477 = vmatprep.subr.mxu0 0.0
      %478 = vmatpush1.msra.mxu0 %v445
      %479 = vmatprep.subr.mxu0 0.0
      %480 = vmatpush1.msra.mxu0 %v444
      %481 = vmatprep.subr.mxu0 0.0
      %482 = vmatpush1.msra.mxu0 %v443
      %483 = vmatprep.subr.mxu0 0.0
      %484 = vmatpush1.msra.mxu0 %v442
      %485 = vmatprep.subr.mxu0 0.0
      %486 = vmatpush1.msra.mxu0 %v441
      %487 = vmatprep.subr.mxu0 0.0
      %488 = vmatpush1.msra.mxu0 %v440
      %489 = vmatprep.subr.mxu0 0.0
      %490 = vmatpush1.msra.mxu0 %v439
      %491 = vmatprep.subr.mxu0 0.0
      %492 = vmatpush1.msra.mxu0 %v438
      %493 = vmatprep.subr.mxu0 0.0
      %494 = vmatpush2.msra.mxu0 0.0
      %495 = vmatprep.subr.mxu0 0.0
      %496 = vmatpush2.msra.mxu0 0.0
      %497 = vmatprep.subr.mxu0 0.0
      %498 = vmatpush2.msra.mxu0 0.0
      %499 = vmatprep.subr.mxu0 0.0
      %500 = vmatpush2.msra.mxu0 0.0
      %501 = vmatprep.subr.mxu0 0.0
      %502 = vmatpush2.msra.mxu0 0.0
      %503 = vmatprep.subr.mxu0 0.0
      %504 = vmatpush2.msra.mxu0 0.0
      %505 = vmatprep.subr.mxu0 0.0
      %506 = vmatpush2.msra.mxu0 0.0
      %507 = vmatprep.subr.mxu0 0.0
      %508 = vmatpush2.msra.mxu0 0.0
      %509 = vmatprep.subr.mxu0 0.0
      %510 = vmatpush2.msra.mxu0 0.0
      %511 = vmatprep.subr.mxu0 0.0
      %512 = vmatpush2.msra.mxu0 0.0
      %513 = vmatprep.subr.mxu0 0.0
      %514 = vmatpush2.msra.mxu0 0.0
      %515 = vmatprep.subr.mxu0 0.0
      %516 = vmatpush2.msra.mxu0 0.0
      %517 = vmatprep.subr.mxu0 0.0
      %518 = vmatpush2.msra.mxu0 0.0
      %519 = vmatprep.subr.mxu0 0.0
      %520 = vmatpush2.msra.mxu0 0.0
      %521 = vmatprep.subr.mxu0 0.0
      %522 = vmatpush2.msra.mxu0 0.0
      %523 = vmatprep.subr.mxu0 0.0
      %524 = vmatpush2.msra.mxu0 0.0
      %525 = vmatprep.mubr.f32.mxu0 0.0
      %526 = vmatmul.mubr.f32.gmra.mxu0 %v436
      %v527 = vpop.f32.mrf.mxu0
      %v528 = vadd.f32 %v459, %v527
      %v529 = vpop.f32.mrf.mxu0
      %530 = vmatprep.mubr.f32.mxu0 0.0
      %531 = vmatmul.mubr.f32.gmra.mxu0 %v437
      %v532 = vpop.f32.mrf.mxu0
      %v533 = vadd.f32 %v459, %v532
      %v534 = vpop.f32.mrf.mxu0
      %535 = vdwg.mxu0
      %v536 = vadd.f32 %v282, %v528
      %v537 = vadd.f32 %v283, %v533
      %538 = vst.msk [vmem:[%s280] sm:$0xff] %vm284, %v536
      %539 = vst.msk [vmem:[%s280 + $0x8] sm:$0xff] %vm284, %v537
      %s540 = smul.u32 2, %s18
      %p541 = scmp.lt.s32.totalorder %s540, 3
      %s542 = scalar_select %p541, %s540, 3
      %s543 = smul.addr %s542, 8
      %s544 = scalar_lea.vmem %s7, %s543
      // Predicated region
      $region49: #{_lambda_.8} parent=47 // pred_check
        %p545 = pneg %p188
      $region50: #{_lambda_.8} parent=47 // pred_check_branch
        %547 = sbr.rel (%p545) target = $region52
      $region51: #{_lambda_.8} parent=47 // pred_region
        %s548 = smul.u32 2, %s18
      $region52: #{_lambda_.8} parent=47 // pred_fallthru
        _
    $region48: #{_lambda_.8} parent=5 // pred_fallthru
      _
    %p549 = scmp.le.s32.totalorder 2, %s13
    // Predicated region
    $region53: #{_lambda_.8} parent=5 // pred_check
      %p550 = pneg %p549
    $region54: #{_lambda_.8} parent=5 // pred_check_branch
      %552 = sbr.rel (%p550) target = $region56
    $region55: #{_lambda_.8} parent=5 // pred_region
      %s553 = ssub.s32 %s13, 2
      // Predicated region
      $region57: #{_lambda_.8} parent=55 // pred_check
        %p554 = pneg %p194
      $region58: #{_lambda_.8} parent=55 // pred_check_branch
        %556 = sbr.rel (%p554) target = $region60
      $region59: #{_lambda_.8} parent=55 // pred_region
        %s557 = smul.u32 2, %s19
        %p558 = scmp.lt.s32.totalorder %s557, 3
        %s559 = scalar_select %p558, %s557, 3
        %s560 = smul.addr %s559, 8
        %s561 = scalar_lea.vmem %s7, %s560
      $region60: #{_lambda_.8} parent=55 // pred_fallthru
        _
    $region56: #{_lambda_.8} parent=5 // pred_fallthru
      _
  $region6: #{_lambda_.8} parent=0 // loop_footer
    %s17 = sadd.s32 1, %s13
  $region7: #{_lambda_.8} parent=0 // loop_footer_branch
    %12 = sbr.rel target = $region3
  $region8: #{_lambda_.8} parent=0 // loop_exit
    _

// kernel: _lambda_.11
$region0: #{_lambda_.11}
  #allocation0 [shape = 'u32[]', space=smem, size = 0x4, offset = 0x4, fixed_abs, tag = 'smem constant byte address 0x4 - core index']
  #allocation1 [shape = 'u32[144,128]{1,0:T(1,128)}', space=vmem, size = 0x12000, scoped, tag = 'internal scratch']
  %s0 = inlined_call_operand.vmem [shape: f32[32,32], index: 0, kind: input, shape index: {}]
  %s1 = inlined_call_operand.vmem [shape: f32[1,32], index: 1, kind: input, shape index: {}]
  %s2 = inlined_call_operand.vmem [shape: f32[1,32], index: 2, kind: input, shape index: {}]
  %s3 = inlined_call_operand.hbm [shape: f32[32,32], index: 3, kind: output, shape index: {}]
  %s4 = sld [smem:[#allocation0]]
  $region45: #{_lambda_.11} parent=0
    _
  %s6 = ssub.s32 1, %s4
  %s7 = scalar_select 0, %s6, %s4
  $region1: #{_lambda_.11} parent=0
    #allocation2 [shape = 'u8[16384]{0}', space=vmem, size = 0x4000, scoped, tag = 'output window, operand 0']
    #allocation3 [shape = 's32[2]{0}', space=sflag, size = 0x8, scoped, tag = 'scoped memory for _lambda_.11']
    %8 = vsyncpa [#allocation3], 0
    %s9 = scalar_lea.sflag [#allocation3], 1
    %10 = vsyncpa %s9, 0
    loop: start=0, step=1, limit=4
    $region2: #{_lambda_.11} parent=1 // loop_pre_header
      _
    $region3: #{_lambda_.11} parent=1 // loop_header
      %s12 = sphi 0, %s16
      %p13 = scmp.ge.s32.totalorder %s12, 4
      %s22 = sphi 0, %s24
      %s25 = sphi 0, %s22
      %s26 = sphi 0, %s25
      %s42 = sphi 0, %s26
      %s46 = sphi 0, %s46
      %s48 = sphi 0, %s46
      %s49 = sphi 0, %s48
      %s63 = sphi 0, %s49
      %s67 = sphi 0, %s67
      %s69 = sphi 0, %s67
      %s70 = sphi 0, %s69
      %s84 = sphi 0, %s70
      %s90 = sphi 0, %s92
      %s93 = sphi 0, %s90
      %s94 = sphi 0, %s93
      %s110 = sphi 0, %s94
    $region4: #{_lambda_.11} parent=1 // loop_header_branch
      %15 = sbr.rel (%p13) target = $region8
    $region5: #{_lambda_.11} parent=1 // loop_body
      %s17 = ssub.s32 %s12, 1
      %s18 = ssub.s32 %s12, 2
      %s19 = sadd.s32 %s12, 1
      %s20 = ssub.s32 %s12, %s19
      %p21 = scmp.eq.s32.totalorder %s20, 0
      %s23 = sadd.s32 %s22, 1
      %s24 = scalar_select %p21, %s22, %s23
      %p27 = pneg %p21
      %p28 = scmp.eq.s32.totalorder %s12, 1
      %p29 = por %p27, %p28
      %p30 = scmp.ne.s32.totalorder %s22, %s25
      %p31 = scmp.eq.s32.totalorder %s12, 0
      %p32 = por %p30, %p31
      %p33 = scmp.ne.s32.totalorder %s22, %s25
      %p34 = scmp.eq.s32.totalorder %s17, 1
      %p35 = por %p33, %p34
      %p36 = scmp.ne.s32.totalorder %s25, %s26
      %p37 = scmp.eq.s32.totalorder %s17, 0
      %p38 = por %p36, %p37
      %p39 = scmp.ne.s32.totalorder %s25, %s26
      %p40 = scmp.eq.s32.totalorder %s18, 1
      %p41 = por %p39, %p40
      %p43 = scmp.ne.s32.totalorder %s26, %s42
      %p44 = scmp.eq.s32.totalorder %s18, 0
      %p45 = por %p43, %p44
      %s47 = sadd.s32 %s46, 1
      %p50 = scmp.eq.s32.totalorder %s12, 1
      %p51 = scmp.ne.s32.totalorder %s46, %s48
      %p52 = scmp.eq.s32.totalorder %s12, 0
      %p53 = por %p51, %p52
      %p54 = scmp.ne.s32.totalorder %s46, %s48
      %p55 = scmp.eq.s32.totalorder %s17, 1
      %p56 = por %p54, %p55
      %p57 = scmp.ne.s32.totalorder %s48, %s49
      %p58 = scmp.eq.s32.totalorder %s17, 0
      %p59 = por %p57, %p58
      %p60 = scmp.ne.s32.totalorder %s48, %s49
      %p61 = scmp.eq.s32.totalorder %s18, 1
      %p62 = por %p60, %p61
      %p64 = scmp.ne.s32.totalorder %s49, %s63
      %p65 = scmp.eq.s32.totalorder %s18, 0
      %p66 = por %p64, %p65
      %s68 = sadd.s32 %s67, 1
      %p71 = scmp.eq.s32.totalorder %s12, 1
      %p72 = scmp.ne.s32.totalorder %s67, %s69
      %p73 = scmp.eq.s32.totalorder %s12, 0
      %p74 = por %p72, %p73
      %p75 = scmp.ne.s32.totalorder %s67, %s69
      %p76 = scmp.eq.s32.totalorder %s17, 1
      %p77 = por %p75, %p76
      %p78 = scmp.ne.s32.totalorder %s69, %s70
      %p79 = scmp.eq.s32.totalorder %s17, 0
      %p80 = por %p78, %p79
      %p81 = scmp.ne.s32.totalorder %s69, %s70
      %p82 = scmp.eq.s32.totalorder %s18, 1
      %p83 = por %p81, %p82
      %p85 = scmp.ne.s32.totalorder %s70, %s84
      %p86 = scmp.eq.s32.totalorder %s18, 0
      %p87 = por %p85, %p86
      %s88 = ssub.s32 %s12, %s19
      %p89 = scmp.eq.s32.totalorder %s88, 0
      %s91 = sadd.s32 %s90, 1
      %s92 = scalar_select %p89, %s90, %s91
      %p95 = pneg %p89
      %p96 = scmp.eq.s32.totalorder %s12, 1
      %p97 = por %p95, %p96
      %p98 = scmp.ne.s32.totalorder %s90, %s93
      %p99 = scmp.eq.s32.totalorder %s12, 0
      %p100 = por %p98, %p99
      %p101 = scmp.ne.s32.totalorder %s90, %s93
      %p102 = scmp.eq.s32.totalorder %s17, 1
      %p103 = por %p101, %p102
      %p104 = scmp.ne.s32.totalorder %s93, %s94
      %p105 = scmp.eq.s32.totalorder %s17, 0
      %p106 = por %p104, %p105
      %p107 = scmp.ne.s32.totalorder %s93, %s94
      %p108 = scmp.eq.s32.totalorder %s18, 1
      %p109 = por %p107, %p108
      %p111 = scmp.ne.s32.totalorder %s94, %s110
      %p112 = scmp.eq.s32.totalorder %s18, 0
      %p113 = por %p111, %p112
      %p114 = scmp.le.s32.totalorder 1, %s12
      %p115 = scmp.lt.s32.totalorder %s12, 3
      %p116 = pnand %p114, %p115
      %p117 = pneg %p116
      // Predicated region
      $region9: #{_lambda_.11} parent=5 // pred_check
        _
      $region10: #{_lambda_.11} parent=5 // pred_check_branch
        %119 = sbr.rel (%p116) target = $region12
      $region11: #{_lambda_.11} parent=5 // pred_region
        %s120 = ssub.s32 %s12, 1
        // Predicated region
        $region13: #{_lambda_.11} parent=11 // pred_check
          %p121 = pneg %p59
        $region14: #{_lambda_.11} parent=11 // pred_check_branch
          %123 = sbr.rel (%p121) target = $region16
        $region15: #{_lambda_.11} parent=11 // pred_region
          _
        $region16: #{_lambda_.11} parent=11 // pred_fallthru
          _
        // Predicated region
        $region17: #{_lambda_.11} parent=11 // pred_check
          %p124 = pneg %p80
        $region18: #{_lambda_.11} parent=11 // pred_check_branch
          %126 = sbr.rel (%p124) target = $region20
        $region19: #{_lambda_.11} parent=11 // pred_region
          _
        $region20: #{_lambda_.11} parent=11 // pred_fallthru
          _
      $region12: #{_lambda_.11} parent=5 // pred_fallthru
        _
      %p127 = scmp.lt.s32.totalorder %s12, 2
      // Predicated region
      $region21: #{_lambda_.11} parent=5 // pred_check
        %p128 = pneg %p127
      $region22: #{_lambda_.11} parent=5 // pred_check_branch
        %130 = sbr.rel (%p128) target = $region24
      $region23: #{_lambda_.11} parent=5 // pred_region
        // Predicated region
        $region25: #{_lambda_.11} parent=23 // pred_check
          %p131 = pneg %p32
        $region26: #{_lambda_.11} parent=23 // pred_check_branch
          %133 = sbr.rel (%p131) target = $region28
        $region27: #{_lambda_.11} parent=23 // pred_region
          %s134 = smul.u32 2, %s12
          %p135 = scmp.lt.s32.totalorder %s134, 3
          %s136 = scalar_select %p135, %s134, 3
          %s137 = smul.addr %s136, 8
          %s138 = scalar_lea.vmem %s0, %s137
          %s139 = smul.u32 2, %s12
        $region28: #{_lambda_.11} parent=23 // pred_fallthru
          _
      $region24: #{_lambda_.11} parent=5 // pred_fallthru
        _
      %p140 = scmp.le.s32.totalorder 1, %s12
      %p141 = scmp.lt.s32.totalorder %s12, 3
      %p142 = pnand %p140, %p141
      %p143 = pneg %p142
      // Predicated region
      $region29: #{_lambda_.11} parent=5 // pred_check
        _
      $region30: #{_lambda_.11} parent=5 // pred_check_branch
        %145 = sbr.rel (%p142) target = $region32
      $region31: #{_lambda_.11} parent=5 // pred_region
        %s146 = ssub.s32 %s12, 1
        %s147 = smul.u32 2, %s17
        %p148 = scmp.lt.s32.totalorder %s147, 3
        %s149 = scalar_select %p148, %s147, 3
        %s150 = smul.addr %s149, 8
        %s151 = scalar_lea.vmem %s0, %s150
        %p152 = pneg %p38
        %p153 = pneg %p35
        %p154 = pneg %p59
        %p155 = pneg %p56
        %p156 = pneg %p80
        %p157 = pneg %p77
        %p158 = pneg %p106
        %p159 = pneg %p103
        %s160 = sand.u32 %s93, 1
        %s161 = scalar_lea.sflag [#allocation3], %s160
        %s162 = sand.u32 %s93, 1
        %s163 = smul.addr %s162, 16
        %s164 = scalar_lea.vmem [#allocation2], %s163
        %s165 = smul.u32 2, %s17
        %p166 = scmp.lt.s32.totalorder %s165, 3
        %s167 = scalar_select %p166, %s165, 3
        %s168 = smul.addr %s167, 8
        %s169 = scalar_lea.vmem %s0, %s168
        %s170 = smul.u32 2, %s17
        %s171 = smul.u32 2, %s17
        %v172 = vld [vmem:[%s169] sm:$0xff]
        %v173 = vld [vmem:[%s169 + $0x8] sm:$0xff]
        %vm174 = vcmask 261120
        %v175 = vsel %vm174, %v172, 0.0
        %176 = vadd.xlane.f32.xlu0 %v175
        %v177 = vpop.xlane.xlu0 %176
        %v178 = vsel %vm174, %v173, 0.0
        %179 = vadd.xlane.f32.xlu0 %v178
        %v180 = vpop.xlane.xlu0 %179
        %v181 = vrcp.pop 32.0
        %v182 = vmul.f32 %v177, %v181
        %v183 = vmul.f32 %v180, %v181
        %v184 = vsub.f32 %v172, %v182
        %v185 = vsub.f32 %v173, %v183
        %v186 = vmul.f32 %v184, %v184
        %v187 = vmul.f32 %v185, %v185
        %v188 = vsel %vm174, %v186, 0.0
        %189 = vadd.xlane.f32.xlu0 %v188
        %v190 = vpop.xlane.xlu0 %189
        %v191 = vsel %vm174, %v187, 0.0
        %192 = vadd.xlane.f32.xlu0 %v191
        %v193 = vpop.xlane.xlu0 %192
        %v194 = vmul.f32 %v190, %v181
        %v195 = vmul.f32 %v193, %v181
        %v196 = vadd.f32 %v194, 1e-05
        %v197 = vadd.f32 %v195, 1e-05
        %v198 = vrsqrt.pop %v196
        %v199 = vrsqrt.pop %v197
        %v200 = vmul.f32 %v184, %v198
        %v201 = vmul.f32 %v185, %v199
        %v202 = vld [vmem:[%s1] sm:$0x1]
        %v204 = vlaneseq
        %v205 = vshrl.u32 %v204, 7
        %v206 = vsub.s32 0, %v205
        %v207 = vrot.slane %v202, %v206
        %v209 = vmul.f32 %v200, %v207
        %v210 = vmul.f32 %v201, %v207
        %v211 = vld [vmem:[%s2] sm:$0x1]
        %v213 = vlaneseq
        %v214 = vshrl.u32 %v213, 7
        %v215 = vsub.s32 0, %v214
        %v216 = vrot.slane %v211, %v215
        %v218 = vadd.f32 %v209, %v216
        %v219 = vadd.f32 %v210, %v216
        %220 = vst.msk [vmem:[%s164] sm:$0xff] %vm174, %v218
        %221 = vst.msk [vmem:[%s164 + $0x8] sm:$0xff] %vm174, %v219
        %s222 = sand.u32 %s93, 1
        %s223 = scalar_lea.sflag [#allocation3], %s222
        %s224 = sand.u32 %s93, 1
        %s225 = smul.addr %s224, 16
        %s226 = scalar_lea.vmem [#allocation2], %s225
        // Predicated region
        $region33: #{_lambda_.11} parent=31 // pred_check
          %p227 = pneg %p103
        $region34: #{_lambda_.11} parent=31 // pred_check_branch
          %229 = sbr.rel (%p227) target = $region36
        $region35: #{_lambda_.11} parent=31 // pred_region
          %s230 = smul.u32 2, %s17
          %s232 = ssub.s32 256, 256
          %233 = vsyncadd %s223, %s232
          %s234 = smul.addr %s230, 128
          %s235 = scalar_lea.hbm %s3, %s234
          %s236 = sshll.u32 %s226, 4
          %s237 = int_to_ptr.vmem [resolvable:$true] %s236
          %242 = dma.vmem_to_hbm [thread:$0]  %s237, 256, %s235, %s223, 128, 128, 8
        $region36: #{_lambda_.11} parent=31 // pred_fallthru
          _
      $region32: #{_lambda_.11} parent=5 // pred_fallthru
        _
      %p243 = scmp.le.s32.totalorder 2, %s12
      // Predicated region
      $region37: #{_lambda_.11} parent=5 // pred_check
        %p244 = pneg %p243
      $region38: #{_lambda_.11} parent=5 // pred_check_branch
        %246 = sbr.rel (%p244) target = $region40
      $region39: #{_lambda_.11} parent=5 // pred_region
        %s247 = ssub.s32 %s12, 2
        // Predicated region
        $region41: #{_lambda_.11} parent=39 // pred_check
          %p248 = pneg %p109
        $region42: #{_lambda_.11} parent=39 // pred_check_branch
          %250 = sbr.rel (%p248) target = $region44
        $region43: #{_lambda_.11} parent=39 // pred_region
          %s251 = sand.u32 %s94, 1
          %s252 = scalar_lea.sflag [#allocation3], %s251
          %s253 = sand.u32 %s94, 1
          %s254 = smul.addr %s253, 16
          %s255 = scalar_lea.vmem [#allocation2], %s254
          %256 = dma.done %s252, 256
        $region44: #{_lambda_.11} parent=39 // pred_fallthru
          _
      $region40: #{_lambda_.11} parent=5 // pred_fallthru
        _
    $region6: #{_lambda_.11} parent=1 // loop_footer
      %s16 = sadd.s32 1, %s12
    $region7: #{_lambda_.11} parent=1 // loop_footer_branch
      %11 = sbr.rel target = $region3
    $region8: #{_lambda_.11} parent=1 // loop_exit
      _
    %257 = vsyncpa [#allocation3], 1
    %s258 = scalar_lea.sflag [#allocation3], 1
    %259 = vsyncpa %s258, 1

// kernel: _lambda_.7
$region0: #{_lambda_.7}
  #allocation0 [shape = 'u32[]', space=smem, size = 0x4, offset = 0x4, fixed_abs, tag = 'smem constant byte address 0x4 - core index']
  #allocation1 [shape = 'u32[144,128]{1,0:T(1,128)}', space=vmem, size = 0x12000, scoped, tag = 'internal scratch']
  %s0 = inlined_call_operand.vmem [shape: f32[4,8,32], index: 0, kind: input, shape index: {}]
  %s1 = inlined_call_operand.vmem [shape: f32[1,32], index: 1, kind: input, shape index: {}]
  %s2 = inlined_call_operand.vmem [shape: f32[1,32], index: 2, kind: input, shape index: {}, may-alias: {2,6}]
  %s3 = inlined_call_operand.vmem [shape: f32[32,96], index: 3, kind: input, shape index: {}]
  %s4 = inlined_call_operand.vmem [shape: f32[1,96], index: 4, kind: input, shape index: {}]
  %s5 = inlined_call_operand.vmem [shape: f32[32,32], index: 5, kind: input, shape index: {}]
  %s6 = inlined_call_operand.vmem [shape: f32[1,32], index: 6, kind: input, shape index: {}, may-alias: {2,6}]
  %s7 = inlined_call_operand.vmem [shape: f32[4,8,32], index: 7, kind: output, shape index: {}]
  %s8 = sld [smem:[#allocation0]]
  $region61: #{_lambda_.7} parent=0
    _
  %s10 = ssub.s32 1, %s8
  %s11 = scalar_select 0, %s10, %s8
  loop: start=0, step=1, limit=4
  $region2: #{_lambda_.7} parent=0 // loop_pre_header
    _
  $region3: #{_lambda_.7} parent=0 // loop_header
    %s13 = sphi 0, %s17
    %p14 = scmp.ge.s32.totalorder %s13, 4
    %s23 = sphi 0, %s25
    %s26 = sphi 0, %s23
    %s27 = sphi 0, %s26
    %s43 = sphi 0, %s27
    %s47 = sphi 0, %s47
    %s49 = sphi 0, %s47
    %s50 = sphi 0, %s49
    %s64 = sphi 0, %s50
    %s68 = sphi 0, %s68
    %s70 = sphi 0, %s68
    %s71 = sphi 0, %s70
    %s85 = sphi 0, %s71
    %s89 = sphi 0, %s89
    %s91 = sphi 0, %s89
    %s92 = sphi 0, %s91
    %s106 = sphi 0, %s92
    %s110 = sphi 0, %s110
    %s112 = sphi 0, %s110
    %s113 = sphi 0, %s112
    %s127 = sphi 0, %s113
    %s131 = sphi 0, %s131
    %s133 = sphi 0, %s131
    %s134 = sphi 0, %s133
    %s148 = sphi 0, %s134
    %s152 = sphi 0, %s152
    %s154 = sphi 0, %s152
    %s155 = sphi 0, %s154
    %s169 = sphi 0, %s155
    %s175 = sphi 0, %s177
    %s178 = sphi 0, %s175
    %s179 = sphi 0, %s178
    %s195 = sphi 0, %s179
  $region4: #{_lambda_.7} parent=0 // loop_header_branch
    %16 = sbr.rel (%p14) target = $region8
  $region5: #{_lambda_.7} parent=0 // loop_body
    %s18 = ssub.s32 %s13, 1
    %s19 = ssub.s32 %s13, 2
    %s20 = sadd.s32 %s13, 1
    %s21 = ssub.s32 %s13, %s20
    %p22 = scmp.eq.s32.totalorder %s21, 0
    %s24 = sadd.s32 %s23, 1
    %s25 = scalar_select %p22, %s23, %s24
    %p28 = pneg %p22
    %p29 = scmp.eq.s32.totalorder %s13, 1
    %p30 = por %p28, %p29
    %p31 = scmp.ne.s32.totalorder %s23, %s26
    %p32 = scmp.eq.s32.totalorder %s13, 0
    %p33 = por %p31, %p32
    %p34 = scmp.ne.s32.totalorder %s23, %s26
    %p35 = scmp.eq.s32.totalorder %s18, 1
    %p36 = por %p34, %p35
    %p37 = scmp.ne.s32.totalorder %s26, %s27
    %p38 = scmp.eq.s32.totalorder %s18, 0
    %p39 = por %p37, %p38
    %p40 = scmp.ne.s32.totalorder %s26, %s27
    %p41 = scmp.eq.s32.totalorder %s19, 1
    %p42 = por %p40, %p41
    %p44 = scmp.ne.s32.totalorder %s27, %s43
    %p45 = scmp.eq.s32.totalorder %s19, 0
    %p46 = por %p44, %p45
    %s48 = sadd.s32 %s47, 1
    %p51 = scmp.eq.s32.totalorder %s13, 1
    %p52 = scmp.ne.s32.totalorder %s47, %s49
    %p53 = scmp.eq.s32.totalorder %s13, 0
    %p54 = por %p52, %p53
    %p55 = scmp.ne.s32.totalorder %s47, %s49
    %p56 = scmp.eq.s32.totalorder %s18, 1
    %p57 = por %p55, %p56
    %p58 = scmp.ne.s32.totalorder %s49, %s50
    %p59 = scmp.eq.s32.totalorder %s18, 0
    %p60 = por %p58, %p59
    %p61 = scmp.ne.s32.totalorder %s49, %s50
    %p62 = scmp.eq.s32.totalorder %s19, 1
    %p63 = por %p61, %p62
    %p65 = scmp.ne.s32.totalorder %s50, %s64
    %p66 = scmp.eq.s32.totalorder %s19, 0
    %p67 = por %p65, %p66
    %s69 = sadd.s32 %s68, 1
    %p72 = scmp.eq.s32.totalorder %s13, 1
    %p73 = scmp.ne.s32.totalorder %s68, %s70
    %p74 = scmp.eq.s32.totalorder %s13, 0
    %p75 = por %p73, %p74
    %p76 = scmp.ne.s32.totalorder %s68, %s70
    %p77 = scmp.eq.s32.totalorder %s18, 1
    %p78 = por %p76, %p77
    %p79 = scmp.ne.s32.totalorder %s70, %s71
    %p80 = scmp.eq.s32.totalorder %s18, 0
    %p81 = por %p79, %p80
    %p82 = scmp.ne.s32.totalorder %s70, %s71
    %p83 = scmp.eq.s32.totalorder %s19, 1
    %p84 = por %p82, %p83
    %p86 = scmp.ne.s32.totalorder %s71, %s85
    %p87 = scmp.eq.s32.totalorder %s19, 0
    %p88 = por %p86, %p87
    %s90 = sadd.s32 %s89, 1
    %p93 = scmp.eq.s32.totalorder %s13, 1
    %p94 = scmp.ne.s32.totalorder %s89, %s91
    %p95 = scmp.eq.s32.totalorder %s13, 0
    %p96 = por %p94, %p95
    %p97 = scmp.ne.s32.totalorder %s89, %s91
    %p98 = scmp.eq.s32.totalorder %s18, 1
    %p99 = por %p97, %p98
    %p100 = scmp.ne.s32.totalorder %s91, %s92
    %p101 = scmp.eq.s32.totalorder %s18, 0
    %p102 = por %p100, %p101
    %p103 = scmp.ne.s32.totalorder %s91, %s92
    %p104 = scmp.eq.s32.totalorder %s19, 1
    %p105 = por %p103, %p104
    %p107 = scmp.ne.s32.totalorder %s92, %s106
    %p108 = scmp.eq.s32.totalorder %s19, 0
    %p109 = por %p107, %p108
    %s111 = sadd.s32 %s110, 1
    %p114 = scmp.eq.s32.totalorder %s13, 1
    %p115 = scmp.ne.s32.totalorder %s110, %s112
    %p116 = scmp.eq.s32.totalorder %s13, 0
    %p117 = por %p115, %p116
    %p118 = scmp.ne.s32.totalorder %s110, %s112
    %p119 = scmp.eq.s32.totalorder %s18, 1
    %p120 = por %p118, %p119
    %p121 = scmp.ne.s32.totalorder %s112, %s113
    %p122 = scmp.eq.s32.totalorder %s18, 0
    %p123 = por %p121, %p122
    %p124 = scmp.ne.s32.totalorder %s112, %s113
    %p125 = scmp.eq.s32.totalorder %s19, 1
    %p126 = por %p124, %p125
    %p128 = scmp.ne.s32.totalorder %s113, %s127
    %p129 = scmp.eq.s32.totalorder %s19, 0
    %p130 = por %p128, %p129
    %s132 = sadd.s32 %s131, 1
    %p135 = scmp.eq.s32.totalorder %s13, 1
    %p136 = scmp.ne.s32.totalorder %s131, %s133
    %p137 = scmp.eq.s32.totalorder %s13, 0
    %p138 = por %p136, %p137
    %p139 = scmp.ne.s32.totalorder %s131, %s133
    %p140 = scmp.eq.s32.totalorder %s18, 1
    %p141 = por %p139, %p140
    %p142 = scmp.ne.s32.totalorder %s133, %s134
    %p143 = scmp.eq.s32.totalorder %s18, 0
    %p144 = por %p142, %p143
    %p145 = scmp.ne.s32.totalorder %s133, %s134
    %p146 = scmp.eq.s32.totalorder %s19, 1
    %p147 = por %p145, %p146
    %p149 = scmp.ne.s32.totalorder %s134, %s148
    %p150 = scmp.eq.s32.totalorder %s19, 0
    %p151 = por %p149, %p150
    %s153 = sadd.s32 %s152, 1
    %p156 = scmp.eq.s32.totalorder %s13, 1
    %p157 = scmp.ne.s32.totalorder %s152, %s154
    %p158 = scmp.eq.s32.totalorder %s13, 0
    %p159 = por %p157, %p158
    %p160 = scmp.ne.s32.totalorder %s152, %s154
    %p161 = scmp.eq.s32.totalorder %s18, 1
    %p162 = por %p160, %p161
    %p163 = scmp.ne.s32.totalorder %s154, %s155
    %p164 = scmp.eq.s32.totalorder %s18, 0
    %p165 = por %p163, %p164
    %p166 = scmp.ne.s32.totalorder %s154, %s155
    %p167 = scmp.eq.s32.totalorder %s19, 1
    %p168 = por %p166, %p167
    %p170 = scmp.ne.s32.totalorder %s155, %s169
    %p171 = scmp.eq.s32.totalorder %s19, 0
    %p172 = por %p170, %p171
    %s173 = ssub.s32 %s13, %s20
    %p174 = scmp.eq.s32.totalorder %s173, 0
    %s176 = sadd.s32 %s175, 1
    %s177 = scalar_select %p174, %s175, %s176
    %p180 = pneg %p174
    %p181 = scmp.eq.s32.totalorder %s13, 1
    %p182 = por %p180, %p181
    %p183 = scmp.ne.s32.totalorder %s175, %s178
    %p184 = scmp.eq.s32.totalorder %s13, 0
    %p185 = por %p183, %p184
    %p186 = scmp.ne.s32.totalorder %s175, %s178
    %p187 = scmp.eq.s32.totalorder %s18, 1
    %p188 = por %p186, %p187
    %p189 = scmp.ne.s32.totalorder %s178, %s179
    %p190 = scmp.eq.s32.totalorder %s18, 0
    %p191 = por %p189, %p190
    %p192 = scmp.ne.s32.totalorder %s178, %s179
    %p193 = scmp.eq.s32.totalorder %s19, 1
    %p194 = por %p192, %p193
    %p196 = scmp.ne.s32.totalorder %s179, %s195
    %p197 = scmp.eq.s32.totalorder %s19, 0
    %p198 = por %p196, %p197
    %p199 = scmp.le.s32.totalorder 1, %s13
    %p200 = scmp.lt.s32.totalorder %s13, 3
    %p201 = pnand %p199, %p200
    %p202 = pneg %p201
    // Predicated region
    $region9: #{_lambda_.7} parent=5 // pred_check
      _
    $region10: #{_lambda_.7} parent=5 // pred_check_branch
      %204 = sbr.rel (%p201) target = $region12
    $region11: #{_lambda_.7} parent=5 // pred_region
      %s205 = ssub.s32 %s13, 1
      // Predicated region
      $region13: #{_lambda_.7} parent=11 // pred_check
        %p206 = pneg %p60
      $region14: #{_lambda_.7} parent=11 // pred_check_branch
        %208 = sbr.rel (%p206) target = $region16
      $region15: #{_lambda_.7} parent=11 // pred_region
        _
      $region16: #{_lambda_.7} parent=11 // pred_fallthru
        _
      // Predicated region
      $region17: #{_lambda_.7} parent=11 // pred_check
        %p209 = pneg %p81
      $region18: #{_lambda_.7} parent=11 // pred_check_branch
        %211 = sbr.rel (%p209) target = $region20
      $region19: #{_lambda_.7} parent=11 // pred_region
        _
      $region20: #{_lambda_.7} parent=11 // pred_fallthru
        _
      // Predicated region
      $region21: #{_lambda_.7} parent=11 // pred_check
        %p212 = pneg %p102
      $region22: #{_lambda_.7} parent=11 // pred_check_branch
        %214 = sbr.rel (%p212) target = $region24
      $region23: #{_lambda_.7} parent=11 // pred_region
        _
      $region24: #{_lambda_.7} parent=11 // pred_fallthru
        _
      // Predicated region
      $region25: #{_lambda_.7} parent=11 // pred_check
        %p215 = pneg %p123
      $region26: #{_lambda_.7} parent=11 // pred_check_branch
        %217 = sbr.rel (%p215) target = $region28
      $region27: #{_lambda_.7} parent=11 // pred_region
        _
      $region28: #{_lambda_.7} parent=11 // pred_fallthru
        _
      // Predicated region
      $region29: #{_lambda_.7} parent=11 // pred_check
        %p218 = pneg %p144
      $region30: #{_lambda_.7} parent=11 // pred_check_branch
        %220 = sbr.rel (%p218) target = $region32
      $region31: #{_lambda_.7} parent=11 // pred_region
        _
      $region32: #{_lambda_.7} parent=11 // pred_fallthru
        _
      // Predicated region
      $region33: #{_lambda_.7} parent=11 // pred_check
        %p221 = pneg %p165
      $region34: #{_lambda_.7} parent=11 // pred_check_branch
        %223 = sbr.rel (%p221) target = $region36
      $region35: #{_lambda_.7} parent=11 // pred_region
        _
      $region36: #{_lambda_.7} parent=11 // pred_fallthru
        _
    $region12: #{_lambda_.7} parent=5 // pred_fallthru
      _
    %p224 = scmp.lt.s32.totalorder %s13, 2
    // Predicated region
    $region37: #{_lambda_.7} parent=5 // pred_check
      %p225 = pneg %p224
    $region38: #{_lambda_.7} parent=5 // pred_check_branch
      %227 = sbr.rel (%p225) target = $region40
    $region39: #{_lambda_.7} parent=5 // pred_region
      // Predicated region
      $region41: #{_lambda_.7} parent=39 // pred_check
        %p228 = pneg %p33
      $region42: #{_lambda_.7} parent=39 // pred_check_branch
        %230 = sbr.rel (%p228) target = $region44
      $region43: #{_lambda_.7} parent=39 // pred_region
        %s231 = smul.u32 2, %s13
        %p232 = scmp.lt.s32.totalorder %s231, 3
        %s233 = scalar_select %p232, %s231, 3
        %s234 = smul.addr %s233, 8
        %s235 = scalar_lea.vmem %s0, %s234
        %s236 = smul.u32 2, %s13
      $region44: #{_lambda_.7} parent=39 // pred_fallthru
        _
    $region40: #{_lambda_.7} parent=5 // pred_fallthru
      _
    %p237 = scmp.le.s32.totalorder 1, %s13
    %p238 = scmp.lt.s32.totalorder %s13, 3
    %p239 = pnand %p237, %p238
    %p240 = pneg %p239
    // Predicated region
    $region45: #{_lambda_.7} parent=5 // pred_check
      _
    $region46: #{_lambda_.7} parent=5 // pred_check_branch
      %242 = sbr.rel (%p239) target = $region48
    $region47: #{_lambda_.7} parent=5 // pred_region
      %s243 = ssub.s32 %s13, 1
      %s244 = smul.u32 2, %s18
      %p245 = scmp.lt.s32.totalorder %s244, 3
      %s246 = scalar_select %p245, %s244, 3
      %s247 = smul.addr %s246, 8
      %s248 = scalar_lea.vmem %s0, %s247
      %p249 = pneg %p39
      %p250 = pneg %p36
      %p251 = pneg %p60
      %p252 = pneg %p57
      %p253 = pneg %p81
      %p254 = pneg %p78
      %p255 = pneg %p102
      %p256 = pneg %p99
      %p257 = pneg %p123
      %p258 = pneg %p120
      %p259 = pneg %p144
      %p260 = pneg %p141
      %p261 = pneg %p165
      %p262 = pneg %p162
      %p263 = pneg %p191
      %p264 = pneg %p188
      %s265 = smul.u32 2, %s18
      %p266 = scmp.lt.s32.totalorder %s265, 3
      %s267 = scalar_select %p266, %s265, 3
      %s268 = smul.addr %s267, 8
      %s269 = scalar_lea.vmem %s7, %s268
      %s270 = smul.u32 2, %s18
      %p271 = scmp.lt.s32.totalorder %s270, 3
      %s272 = scalar_select %p271, %s270, 3
      %s273 = smul.addr %s272, 8
      %s274 = scalar_lea.vmem %s0, %s273
      %s275 = smul.u32 2, %s18
      %s276 = smul.u32 2, %s18
      %p277 = scmp.lt.s32.totalorder %s276, 3
      %s278 = scalar_select %p277, %s276, 3
      %s279 = smul.addr %s278, 8
      %s280 = scalar_lea.vmem %s7, %s279
      %s281 = smul.u32 2, %s18
      %v282 = vld [vmem:[%s274] sm:$0xff]
      %v283 = vld [vmem:[%s274 + $0x8] sm:$0xff]
      %vm284 = vcmask 261120
      %v285 = vsel %vm284, %v282, 0.0
      %286 = vadd.xlane.f32.xlu0 %v285
      %v287 = vpop.xlane.xlu0 %286
      %v288 = vsel %vm284, %v283, 0.0
      %289 = vadd.xlane.f32.xlu0 %v288
      %v290 = vpop.xlane.xlu0 %289
      %v291 = vrcp.pop 32.0
      %v292 = vmul.f32 %v287, %v291
      %v293 = vmul.f32 %v290, %v291
      %v294 = vsub.f32 %v282, %v292
      %v295 = vsub.f32 %v283, %v293
      %v296 = vmul.f32 %v294, %v294
      %v297 = vmul.f32 %v295, %v295
      %v298 = vsel %vm284, %v296, 0.0
      %299 = vadd.xlane.f32.xlu0 %v298
      %v300 = vpop.xlane.xlu0 %299
      %v301 = vsel %vm284, %v297, 0.0
      %302 = vadd.xlane.f32.xlu0 %v301
      %v303 = vpop.xlane.xlu0 %302
      %v304 = vmul.f32 %v300, %v291
      %v305 = vmul.f32 %v303, %v291
      %v306 = vadd.f32 %v304, 1e-05
      %v307 = vadd.f32 %v305, 1e-05
      %v308 = vrsqrt.pop %v306
      %v309 = vrsqrt.pop %v307
      %v310 = vmul.f32 %v294, %v308
      %v311 = vmul.f32 %v295, %v309
      %v312 = vld [vmem:[%s1] sm:$0x1]
      %v314 = vlaneseq
      %v315 = vshrl.u32 %v314, 7
      %v316 = vsub.s32 0, %v315
      %v317 = vrot.slane %v312, %v316
      %v319 = vmul.f32 %v310, %v317
      %v320 = vmul.f32 %v311, %v317
      %v321 = vld [vmem:[%s2] sm:$0x1]
      %v323 = vlaneseq
      %v324 = vshrl.u32 %v323, 7
      %v325 = vsub.s32 0, %v324
      %v326 = vrot.slane %v321, %v325
      %v328 = vadd.f32 %v319, %v326
      %v329 = vadd.f32 %v320, %v326
      %v330 = vld [vmem:[%s3] sm:$0xff]
      %v331 = vld [vmem:[%s3 + $0x8] sm:$0xff]
      %v332 = vld [vmem:[%s3 + $0x10] sm:$0xff]
      %v333 = vld [vmem:[%s3 + $0x18] sm:$0xff]
      %v334 = vld [vmem:[%s4] sm:$0x1]
      %v336 = vlaneseq
      %v337 = vshrl.u32 %v336, 7
      %v338 = vsub.s32 0, %v337
      %v339 = vrot.slane %v334, %v338
      %v342 = vsel %vm284, %v328, 0
      %v345 = vsel %vm284, %v329, 0
      %347 = vmatprep.subr.mxu0 0.0
      %348 = vmatpush1.msra.mxu0 0.0
      %349 = vmatprep.subr.mxu0 0.0
      %350 = vmatpush1.msra.mxu0 0.0
      %351 = vmatprep.subr.mxu0 0.0
      %352 = vmatpush1.msra.mxu0 0.0
      %353 = vmatprep.subr.mxu0 0.0
      %354 = vmatpush1.msra.mxu0 0.0
      %355 = vmatprep.subr.mxu0 0.0
      %356 = vmatpush1.msra.mxu0 0.0
      %357 = vmatprep.subr.mxu0 0.0
      %358 = vmatpush1.msra.mxu0 0.0
      %359 = vmatprep.subr.mxu0 0.0
      %360 = vmatpush1.msra.mxu0 0.0
      %361 = vmatprep.subr.mxu0 0.0
      %362 = vmatpush1.msra.mxu0 0.0
      %363 = vmatprep.subr.mxu0 0.0
      %364 = vmatpush1.msra.mxu0 0.0
      %365 = vmatprep.subr.mxu0 0.0
      %366 = vmatpush1.msra.mxu0 0.0
      %367 = vmatprep.subr.mxu0 0.0
      %368 = vmatpush1.msra.mxu0 0.0
      %369 = vmatprep.subr.mxu0 0.0
      %370 = vmatpush1.msra.mxu0 0.0
      %371 = vmatprep.subr.mxu0 0.0
      %372 = vmatpush1.msra.mxu0 %v333
      %373 = vmatprep.subr.mxu0 0.0
      %374 = vmatpush1.msra.mxu0 %v332
      %375 = vmatprep.subr.mxu0 0.0
      %376 = vmatpush1.msra.mxu0 %v331
      %377 = vmatprep.subr.mxu0 0.0
      %378 = vmatpush1.msra.mxu0 %v330
      %379 = vmatprep.subr.mxu0 0.0
      %380 = vmatpush2.msra.mxu0 0.0
      %381 = vmatprep.subr.mxu0 0.0
      %382 = vmatpush2.msra.mxu0 0.0
      %383 = vmatprep.subr.mxu0 0.0
      %384 = vmatpush2.msra.mxu0 0.0
      %385 = vmatprep.subr.mxu0 0.0
      %386 = vmatpush2.msra.mxu0 0.0
      %387 = vmatprep.subr.mxu0 0.0
      %388 = vmatpush2.msra.mxu0 0.0
      %389 = vmatprep.subr.mxu0 0.0
      %390 = vmatpush2.msra.mxu0 0.0
      %391 = vmatprep.subr.mxu0 0.0
      %392 = vmatpush2.msra.mxu0 0.0
      %393 = vmatprep.subr.mxu0 0.0
      %394 = vmatpush2.msra.mxu0 0.0
      %395 = vmatprep.subr.mxu0 0.0
      %396 = vmatpush2.msra.mxu0 0.0
      %397 = vmatprep.subr.mxu0 0.0
      %398 = vmatpush2.msra.mxu0 0.0
      %399 = vmatprep.subr.mxu0 0.0
      %400 = vmatpush2.msra.mxu0 0.0
      %401 = vmatprep.subr.mxu0 0.0
      %402 = vmatpush2.msra.mxu0 0.0
      %403 = vmatprep.subr.mxu0 0.0
      %404 = vmatpush2.msra.mxu0 0.0
      %405 = vmatprep.subr.mxu0 0.0
      %406 = vmatpush2.msra.mxu0 0.0
      %407 = vmatprep.subr.mxu0 0.0
      %408 = vmatpush2.msra.mxu0 0.0
      %409 = vmatprep.subr.mxu0 0.0
      %410 = vmatpush2.msra.mxu0 0.0
      %411 = vmatprep.mubr.f32.mxu0 0.0
      %412 = vmatmul.mubr.f32.gmra.mxu0 %v342
      %v413 = vpop.f32.mrf.mxu0
      %v414 = vadd.f32 %v339, %v413
      %v415 = vpop.f32.mrf.mxu0
      %416 = vmatprep.mubr.f32.mxu0 0.0
      %417 = vmatmul.mubr.f32.gmra.mxu0 %v345
      %v418 = vpop.f32.mrf.mxu0
      %v419 = vadd.f32 %v339, %v418
      %v420 = vpop.f32.mrf.mxu0
      %421 = vdwg.mxu0
      %423 = vrot.lane.b32.xlu0 %v414, 96
      %v424 = vpop.permute.xlu0 %423
      %vm425 = vcmask 64512
      %v426 = vsel %vm425, %v414, 0
      %v428 = vsel %vm425, %v424, 0
      %430 = vmatprep.subr.mxu0 0.0
      %431 = vmatpush1.xpose.msra.mxu0 0.0
      %432 = vmatprep.subr.mxu0 0.0
      %433 = vmatpush1.xpose.msra.mxu0 0.0
      %434 = vmatprep.subr.mxu0 0.0
      %435 = vmatpush1.xpose.msra.mxu0 0.0
      %436 = vmatprep.subr.mxu0 0.0
      %437 = vmatpush1.xpose.msra.mxu0 0.0
      %438 = vmatprep.subr.mxu0 0.0
      %439 = vmatpush1.xpose.msra.mxu0 0.0
      %440 = vmatprep.subr.mxu0 0.0
      %441 = vmatpush1.xpose.msra.mxu0 0.0
      %442 = vmatprep.subr.mxu0 0.0
      %443 = vmatpush1.xpose.msra.mxu0 0.0
      %444 = vmatprep.subr.mxu0 0.0
      %445 = vmatpush1.xpose.msra.mxu0 0.0
      %446 = vmatprep.subr.mxu0 0.0
      %447 = vmatpush1.xpose.msra.mxu0 0.0
      %448 = vmatprep.subr.mxu0 0.0
      %449 = vmatpush1.xpose.msra.mxu0 0.0
      %450 = vmatprep.subr.mxu0 0.0
      %451 = vmatpush1.xpose.msra.mxu0 0.0
      %452 = vmatprep.subr.mxu0 0.0
      %453 = vmatpush1.xpose.msra.mxu0 0.0
      %454 = vmatprep.subr.mxu0 0.0
      %455 = vmatpush1.xpose.msra.mxu0 0.0
      %456 = vmatprep.subr.mxu0 0.0
      %457 = vmatpush1.xpose.msra.mxu0 0.0
      %458 = vmatprep.subr.mxu0 0.0
      %459 = vmatpush1.xpose.msra.mxu0 0.0
      %460 = vmatprep.subr.mxu0 0.0
      %461 = vmatpush1.xpose.msra.mxu0 %v428
      %462 = vmatprep.subr.mxu0 0.0
      %463 = vmatpush2.xpose.msra.mxu0 0.0
      %464 = vmatprep.subr.mxu0 0.0
      %465 = vmatpush2.xpose.msra.mxu0 0.0
      %466 = vmatprep.subr.mxu0 0.0
      %467 = vmatpush2.xpose.msra.mxu0 0.0
      %468 = vmatprep.subr.mxu0 0.0
      %469 = vmatpush2.xpose.msra.mxu0 0.0
      %470 = vmatprep.subr.mxu0 0.0
      %471 = vmatpush2.xpose.msra.mxu0 0.0
      %472 = vmatprep.subr.mxu0 0.0
      %473 = vmatpush2.xpose.msra.mxu0 0.0
      %474 = vmatprep.subr.mxu0 0.0
      %475 = vmatpush2.xpose.msra.mxu0 0.0
      %476 = vmatprep.subr.mxu0 0.0
      %477 = vmatpush2.xpose.msra.mxu0 0.0
      %478 = vmatprep.subr.mxu0 0.0
      %479 = vmatpush2.xpose.msra.mxu0 0.0
      %480 = vmatprep.subr.mxu0 0.0
      %481 = vmatpush2.xpose.msra.mxu0 0.0
      %482 = vmatprep.subr.mxu0 0.0
      %483 = vmatpush2.xpose.msra.mxu0 0.0
      %484 = vmatprep.subr.mxu0 0.0
      %485 = vmatpush2.xpose.msra.mxu0 0.0
      %486 = vmatprep.subr.mxu0 0.0
      %487 = vmatpush2.xpose.msra.mxu0 0.0
      %488 = vmatprep.subr.mxu0 0.0
      %489 = vmatpush2.xpose.msra.mxu0 0.0
      %490 = vmatprep.subr.mxu0 0.0
      %491 = vmatpush2.xpose.msra.mxu0 0.0
      %492 = vmatprep.subr.mxu0 0.0
      %493 = vmatpush2.xpose.msra.mxu0 0.0
      %494 = vmatprep.mubr.f32.mxu0 0.0
      %495 = vmatmul.mubr.f32.gmra.mxu0 %v426
      %v496 = vpop.f32.mrf.mxu0
      %v497 = vadd.f32 0.0, %v496
      %v498 = vpop.f32.mrf.mxu0
      %499 = vdwg.mxu0
      %501 = vrot.lane.b32.xlu0 %v419, 96
      %v502 = vpop.permute.xlu0 %501
      %v503 = vsel %vm425, %v419, 0
      %v505 = vsel %vm425, %v502, 0
      %507 = vmatprep.subr.mxu0 0.0
      %508 = vmatpush1.xpose.msra.mxu0 0.0
      %509 = vmatprep.subr.mxu0 0.0
      %510 = vmatpush1.xpose.msra.mxu0 0.0
      %511 = vmatprep.subr.mxu0 0.0
      %512 = vmatpush1.xpose.msra.mxu0 0.0
      %513 = vmatprep.subr.mxu0 0.0
      %514 = vmatpush1.xpose.msra.mxu0 0.0
      %515 = vmatprep.subr.mxu0 0.0
      %516 = vmatpush1.xpose.msra.mxu0 0.0
      %517 = vmatprep.subr.mxu0 0.0
      %518 = vmatpush1.xpose.msra.mxu0 0.0
      %519 = vmatprep.subr.mxu0 0.0
      %520 = vmatpush1.xpose.msra.mxu0 0.0
      %521 = vmatprep.subr.mxu0 0.0
      %522 = vmatpush1.xpose.msra.mxu0 0.0
      %523 = vmatprep.subr.mxu0 0.0
      %524 = vmatpush1.xpose.msra.mxu0 0.0
      %525 = vmatprep.subr.mxu0 0.0
      %526 = vmatpush1.xpose.msra.mxu0 0.0
      %527 = vmatprep.subr.mxu0 0.0
      %528 = vmatpush1.xpose.msra.mxu0 0.0
      %529 = vmatprep.subr.mxu0 0.0
      %530 = vmatpush1.xpose.msra.mxu0 0.0
      %531 = vmatprep.subr.mxu0 0.0
      %532 = vmatpush1.xpose.msra.mxu0 0.0
      %533 = vmatprep.subr.mxu0 0.0
      %534 = vmatpush1.xpose.msra.mxu0 0.0
      %535 = vmatprep.subr.mxu0 0.0
      %536 = vmatpush1.xpose.msra.mxu0 0.0
      %537 = vmatprep.subr.mxu0 0.0
      %538 = vmatpush1.xpose.msra.mxu0 %v505
      %539 = vmatprep.subr.mxu0 0.0
      %540 = vmatpush2.xpose.msra.mxu0 0.0
      %541 = vmatprep.subr.mxu0 0.0
      %542 = vmatpush2.xpose.msra.mxu0 0.0
      %543 = vmatprep.subr.mxu0 0.0
      %544 = vmatpush2.xpose.msra.mxu0 0.0
      %545 = vmatprep.subr.mxu0 0.0
      %546 = vmatpush2.xpose.msra.mxu0 0.0
      %547 = vmatprep.subr.mxu0 0.0
      %548 = vmatpush2.xpose.msra.mxu0 0.0
      %549 = vmatprep.subr.mxu0 0.0
      %550 = vmatpush2.xpose.msra.mxu0 0.0
      %551 = vmatprep.subr.mxu0 0.0
      %552 = vmatpush2.xpose.msra.mxu0 0.0
      %553 = vmatprep.subr.mxu0 0.0
      %554 = vmatpush2.xpose.msra.mxu0 0.0
      %555 = vmatprep.subr.mxu0 0.0
      %556 = vmatpush2.xpose.msra.mxu0 0.0
      %557 = vmatprep.subr.mxu0 0.0
      %558 = vmatpush2.xpose.msra.mxu0 0.0
      %559 = vmatprep.subr.mxu0 0.0
      %560 = vmatpush2.xpose.msra.mxu0 0.0
      %561 = vmatprep.subr.mxu0 0.0
      %562 = vmatpush2.xpose.msra.mxu0 0.0
      %563 = vmatprep.subr.mxu0 0.0
      %564 = vmatpush2.xpose.msra.mxu0 0.0
      %565 = vmatprep.subr.mxu0 0.0
      %566 = vmatpush2.xpose.msra.mxu0 0.0
      %567 = vmatprep.subr.mxu0 0.0
      %568 = vmatpush2.xpose.msra.mxu0 0.0
      %569 = vmatprep.subr.mxu0 0.0
      %570 = vmatpush2.xpose.msra.mxu0 0.0
      %571 = vmatprep.mubr.f32.mxu0 0.0
      %572 = vmatmul.mubr.f32.gmra.mxu0 %v503
      %v573 = vpop.f32.mrf.mxu0
      %v574 = vadd.f32 0.0, %v573
      %v575 = vpop.f32.mrf.mxu0
      %576 = vdwg.mxu0
      %v577 = vmul.f32 %v497, 0.35355338
      %v578 = vmul.f32 %v574, 0.35355338
      %v579 = vsel %vm425, %v577, -inf
      %580 = vmax.xlane.f32.xlu0 %v579
      %v581 = vpop.xlane.xlu0 %580
      %v582 = vsel %vm425, %v578, -inf
      %583 = vmax.xlane.f32.xlu0 %v582
      %v584 = vpop.xlane.xlu0 %583
      %v585 = vsub.f32 %v577, %v581
      %v586 = vsub.f32 %v578, %v584
      %v587 = vmul.f32 %v585, 1.442695
      %v588 = vpow.pop %v587
      %v589 = vmul.f32 %v586, 1.442695
      %v590 = vpow.pop %v589
      %v591 = vsel %vm425, %v588, 0.0
      %592 = vadd.xlane.f32.xlu0 %v591
      %v593 = vpop.xlane.xlu0 %592
      %v594 = vsel %vm425, %v590, 0.0
      %595 = vadd.xlane.f32.xlu0 %v594
      %v596 = vpop.xlane.xlu0 %595
      %v597 = vrcp.pop %v593
      %v598 = vrcp.pop %v596
      %v599 = vmul.f32 %v588, %v597
      %v600 = vmul.f32 %v590, %v598
      %601 = vrot.lane.b32.xlu0 %v414, 64
      %v602 = vpop.permute.xlu0 %601
      %v605 = vsel %vm425, %v599, 0
      %607 = vmatprep.subr.mxu0 0.0
      %608 = vmatpush1.msra.mxu0 0.0
      %609 = vmatprep.subr.mxu0 0.0
      %610 = vmatpush1.msra.mxu0 0.0
      %611 = vmatprep.subr.mxu0 0.0
      %612 = vmatpush1.msra.mxu0 0.0
      %613 = vmatprep.subr.mxu0 0.0
      %614 = vmatpush1.msra.mxu0 0.0
      %615 = vmatprep.subr.mxu0 0.0
      %616 = vmatpush1.msra.mxu0 0.0
      %617 = vmatprep.subr.mxu0 0.0
      %618 = vmatpush1.msra.mxu0 0.0
      %619 = vmatprep.subr.mxu0 0.0
      %620 = vmatpush1.msra.mxu0 0.0
      %621 = vmatprep.subr.mxu0 0.0
      %622 = vmatpush1.msra.mxu0 0.0
      %623 = vmatprep.subr.mxu0 0.0
      %624 = vmatpush1.msra.mxu0 0.0
      %625 = vmatprep.subr.mxu0 0.0
      %626 = vmatpush1.msra.mxu0 0.0
      %627 = vmatprep.subr.mxu0 0.0
      %628 = vmatpush1.msra.mxu0 0.0
      %629 = vmatprep.subr.mxu0 0.0
      %630 = vmatpush1.msra.mxu0 0.0
      %631 = vmatprep.subr.mxu0 0.0
      %632 = vmatpush1.msra.mxu0 0.0
      %633 = vmatprep.subr.mxu0 0.0
      %634 = vmatpush1.msra.mxu0 0.0
      %635 = vmatprep.subr.mxu0 0.0
      %636 = vmatpush1.msra.mxu0 0.0
      %637 = vmatprep.subr.mxu0 0.0
      %638 = vmatpush1.msra.mxu0 %v602
      %639 = vmatprep.subr.mxu0 0.0
      %640 = vmatpush2.msra.mxu0 0.0
      %641 = vmatprep.subr.mxu0 0.0
      %642 = vmatpush2.msra.mxu0 0.0
      %643 = vmatprep.subr.mxu0 0.0
      %644 = vmatpush2.msra.mxu0 0.0
      %645 = vmatprep.subr.mxu0 0.0
      %646 = vmatpush2.msra.mxu0 0.0
      %647 = vmatprep.subr.mxu0 0.0
      %648 = vmatpush2.msra.mxu0 0.0
      %649 = vmatprep.subr.mxu0 0.0
      %650 = vmatpush2.msra.mxu0 0.0
      %651 = vmatprep.subr.mxu0 0.0
      %652 = vmatpush2.msra.mxu0 0.0
      %653 = vmatprep.subr.mxu0 0.0
      %654 = vmatpush2.msra.mxu0 0.0
      %655 = vmatprep.subr.mxu0 0.0
      %656 = vmatpush2.msra.mxu0 0.0
      %657 = vmatprep.subr.mxu0 0.0
      %658 = vmatpush2.msra.mxu0 0.0
      %659 = vmatprep.subr.mxu0 0.0
      %660 = vmatpush2.msra.mxu0 0.0
      %661 = vmatprep.subr.mxu0 0.0
      %662 = vmatpush2.msra.mxu0 0.0
      %663 = vmatprep.subr.mxu0 0.0
      %664 = vmatpush2.msra.mxu0 0.0
      %665 = vmatprep.subr.mxu0 0.0
      %666 = vmatpush2.msra.mxu0 0.0
      %667 = vmatprep.subr.mxu0 0.0
      %668 = vmatpush2.msra.mxu0 0.0
      %669 = vmatprep.subr.mxu0 0.0
      %670 = vmatpush2.msra.mxu0 0.0
      %671 = vmatprep.mubr.f32.mxu0 0.0
      %672 = vmatmul.mubr.f32.gmra.mxu0 %v605
      %v673 = vpop.f32.mrf.mxu0
      %v674 = vadd.f32 0.0, %v673
      %v675 = vpop.f32.mrf.mxu0
      %676 = vdwg.mxu0
      %677 = vrot.lane.b32.xlu0 %v419, 64
      %v678 = vpop.permute.xlu0 %677
      %v681 = vsel %vm425, %v600, 0
      %683 = vmatprep.subr.mxu0 0.0
      %684 = vmatpush1.msra.mxu0 0.0
      %685 = vmatprep.subr.mxu0 0.0
      %686 = vmatpush1.msra.mxu0 0.0
      %687 = vmatprep.subr.mxu0 0.0
      %688 = vmatpush1.msra.mxu0 0.0
      %689 = vmatprep.subr.mxu0 0.0
      %690 = vmatpush1.msra.mxu0 0.0
      %691 = vmatprep.subr.mxu0 0.0
      %692 = vmatpush1.msra.mxu0 0.0
      %693 = vmatprep.subr.mxu0 0.0
      %694 = vmatpush1.msra.mxu0 0.0
      %695 = vmatprep.subr.mxu0 0.0
      %696 = vmatpush1.msra.mxu0 0.0
      %697 = vmatprep.subr.mxu0 0.0
      %698 = vmatpush1.msra.mxu0 0.0
      %699 = vmatprep.subr.mxu0 0.0
      %700 = vmatpush1.msra.mxu0 0.0
      %701 = vmatprep.subr.mxu0 0.0
      %702 = vmatpush1.msra.mxu0 0.0
      %703 = vmatprep.subr.mxu0 0.0
      %704 = vmatpush1.msra.mxu0 0.0
      %705 = vmatprep.subr.mxu0 0.0
      %706 = vmatpush1.msra.mxu0 0.0
      %707 = vmatprep.subr.mxu0 0.0
      %708 = vmatpush1.msra.mxu0 0.0
      %709 = vmatprep.subr.mxu0 0.0
      %710 = vmatpush1.msra.mxu0 0.0
      %711 = vmatprep.subr.mxu0 0.0
      %712 = vmatpush1.msra.mxu0 0.0
      %713 = vmatprep.subr.mxu0 0.0
      %714 = vmatpush1.msra.mxu0 %v678
      %715 = vmatprep.subr.mxu0 0.0
      %716 = vmatpush2.msra.mxu0 0.0
      %717 = vmatprep.subr.mxu0 0.0
      %718 = vmatpush2.msra.mxu0 0.0
      %719 = vmatprep.subr.mxu0 0.0
      %720 = vmatpush2.msra.mxu0 0.0
      %721 = vmatprep.subr.mxu0 0.0
      %722 = vmatpush2.msra.mxu0 0.0
      %723 = vmatprep.subr.mxu0 0.0
      %724 = vmatpush2.msra.mxu0 0.0
      %725 = vmatprep.subr.mxu0 0.0
      %726 = vmatpush2.msra.mxu0 0.0
      %727 = vmatprep.subr.mxu0 0.0
      %728 = vmatpush2.msra.mxu0 0.0
      %729 = vmatprep.subr.mxu0 0.0
      %730 = vmatpush2.msra.mxu0 0.0
      %731 = vmatprep.subr.mxu0 0.0
      %732 = vmatpush2.msra.mxu0 0.0
      %733 = vmatprep.subr.mxu0 0.0
      %734 = vmatpush2.msra.mxu0 0.0
      %735 = vmatprep.subr.mxu0 0.0
      %736 = vmatpush2.msra.mxu0 0.0
      %737 = vmatprep.subr.mxu0 0.0
      %738 = vmatpush2.msra.mxu0 0.0
      %739 = vmatprep.subr.mxu0 0.0
      %740 = vmatpush2.msra.mxu0 0.0
      %741 = vmatprep.subr.mxu0 0.0
      %742 = vmatpush2.msra.mxu0 0.0
      %743 = vmatprep.subr.mxu0 0.0
      %744 = vmatpush2.msra.mxu0 0.0
      %745 = vmatprep.subr.mxu0 0.0
      %746 = vmatpush2.msra.mxu0 0.0
      %747 = vmatprep.mubr.f32.mxu0 0.0
      %748 = vmatmul.mubr.f32.gmra.mxu0 %v681
      %v749 = vpop.f32.mrf.mxu0
      %v750 = vadd.f32 0.0, %v749
      %v751 = vpop.f32.mrf.mxu0
      %752 = vdwg.mxu0
      %753 = vrot.lane.b32.xlu0 %v414, 120
      %v754 = vpop.permute.xlu0 %753
      %755 = vrot.lane.b32.xlu0 %v414, 88
      %v756 = vpop.permute.xlu0 %755
      %v757 = vsel %vm425, %v754, 0
      %v759 = vsel %vm425, %v756, 0
      %761 = vmatprep.subr.mxu0 0.0
      %762 = vmatpush1.xpose.msra.mxu0 0.0
      %763 = vmatprep.subr.mxu0 0.0
      %764 = vmatpush1.xpose.msra.mxu0 0.0
      %765 = vmatprep.subr.mxu0 0.0
      %766 = vmatpush1.xpose.msra.mxu0 0.0
      %767 = vmatprep.subr.mxu0 0.0
      %768 = vmatpush1.xpose.msra.mxu0 0.0
      %769 = vmatprep.subr.mxu0 0.0
      %770 = vmatpush1.xpose.msra.mxu0 0.0
      %771 = vmatprep.subr.mxu0 0.0
      %772 = vmatpush1.xpose.msra.mxu0 0.0
      %773 = vmatprep.subr.mxu0 0.0
      %774 = vmatpush1.xpose.msra.mxu0 0.0
      %775 = vmatprep.subr.mxu0 0.0
      %776 = vmatpush1.xpose.msra.mxu0 0.0
      %777 = vmatprep.subr.mxu0 0.0
      %778 = vmatpush1.xpose.msra.mxu0 0.0
      %779 = vmatprep.subr.mxu0 0.0
      %780 = vmatpush1.xpose.msra.mxu0 0.0
      %781 = vmatprep.subr.mxu0 0.0
      %782 = vmatpush1.xpose.msra.mxu0 0.0
      %783 = vmatprep.subr.mxu0 0.0
      %784 = vmatpush1.xpose.msra.mxu0 0.0
      %785 = vmatprep.subr.mxu0 0.0
      %786 = vmatpush1.xpose.msra.mxu0 0.0
      %787 = vmatprep.subr.mxu0 0.0
      %788 = vmatpush1.xpose.msra.mxu0 0.0
      %789 = vmatprep.subr.mxu0 0.0
      %790 = vmatpush1.xpose.msra.mxu0 0.0
      %791 = vmatprep.subr.mxu0 0.0
      %792 = vmatpush1.xpose.msra.mxu0 %v759
      %793 = vmatprep.subr.mxu0 0.0
      %794 = vmatpush2.xpose.msra.mxu0 0.0
      %795 = vmatprep.subr.mxu0 0.0
      %796 = vmatpush2.xpose.msra.mxu0 0.0
      %797 = vmatprep.subr.mxu0 0.0
      %798 = vmatpush2.xpose.msra.mxu0 0.0
      %799 = vmatprep.subr.mxu0 0.0
      %800 = vmatpush2.xpose.msra.mxu0 0.0
      %801 = vmatprep.subr.mxu0 0.0
      %802 = vmatpush2.xpose.msra.mxu0 0.0
      %803 = vmatprep.subr.mxu0 0.0
      %804 = vmatpush2.xpose.msra.mxu0 0.0
      %805 = vmatprep.subr.mxu0 0.0
      %806 = vmatpush2.xpose.msra.mxu0 0.0
      %807 = vmatprep.subr.mxu0 0.0
      %808 = vmatpush2.xpose.msra.mxu0 0.0
      %809 = vmatprep.subr.mxu0 0.0
      %810 = vmatpush2.xpose.msra.mxu0 0.0
      %811 = vmatprep.subr.mxu0 0.0
      %812 = vmatpush2.xpose.msra.mxu0 0.0
      %813 = vmatprep.subr.mxu0 0.0
      %814 = vmatpush2.xpose.msra.mxu0 0.0
      %815 = vmatprep.subr.mxu0 0.0
      %816 = vmatpush2.xpose.msra.mxu0 0.0
      %817 = vmatprep.subr.mxu0 0.0
      %818 = vmatpush2.xpose.msra.mxu0 0.0
      %819 = vmatprep.subr.mxu0 0.0
      %820 = vmatpush2.xpose.msra.mxu0 0.0
      %821 = vmatprep.subr.mxu0 0.0
      %822 = vmatpush2.xpose.msra.mxu0 0.0
      %823 = vmatprep.subr.mxu0 0.0
      %824 = vmatpush2.xpose.msra.mxu0 0.0
      %825 = vmatprep.mubr.f32.mxu0 0.0
      %826 = vmatmul.mubr.f32.gmra.mxu0 %v757
      %v827 = vpop.f32.mrf.mxu0
      %v828 = vadd.f32 0.0, %v827
      %v829 = vpop.f32.mrf.mxu0
      %830 = vdwg.mxu0
      %831 = vrot.lane.b32.xlu0 %v419, 120
      %v832 = vpop.permute.xlu0 %831
      %833 = vrot.lane.b32.xlu0 %v419, 88
      %v834 = vpop.permute.xlu0 %833
      %v835 = vsel %vm425, %v832, 0
      %v837 = vsel %vm425, %v834, 0
      %839 = vmatprep.subr.mxu0 0.0
      %840 = vmatpush1.xpose.msra.mxu0 0.0
      %841 = vmatprep.subr.mxu0 0.0
      %842 = vmatpush1.xpose.msra.mxu0 0.0
      %843 = vmatprep.subr.mxu0 0.0
      %844 = vmatpush1.xpose.msra.mxu0 0.0
      %845 = vmatprep.subr.mxu0 0.0
      %846 = vmatpush1.xpose.msra.mxu0 0.0
      %847 = vmatprep.subr.mxu0 0.0
      %848 = vmatpush1.xpose.msra.mxu0 0.0
      %849 = vmatprep.subr.mxu0 0.0
      %850 = vmatpush1.xpose.msra.mxu0 0.0
      %851 = vmatprep.subr.mxu0 0.0
      %852 = vmatpush1.xpose.msra.mxu0 0.0
      %853 = vmatprep.subr.mxu0 0.0
      %854 = vmatpush1.xpose.msra.mxu0 0.0
      %855 = vmatprep.subr.mxu0 0.0
      %856 = vmatpush1.xpose.msra.mxu0 0.0
      %857 = vmatprep.subr.mxu0 0.0
      %858 = vmatpush1.xpose.msra.mxu0 0.0
      %859 = vmatprep.subr.mxu0 0.0
      %860 = vmatpush1.xpose.msra.mxu0 0.0
      %861 = vmatprep.subr.mxu0 0.0
      %862 = vmatpush1.xpose.msra.mxu0 0.0
      %863 = vmatprep.subr.mxu0 0.0
      %864 = vmatpush1.xpose.msra.mxu0 0.0
      %865 = vmatprep.subr.mxu0 0.0
      %866 = vmatpush1.xpose.msra.mxu0 0.0
      %867 = vmatprep.subr.mxu0 0.0
      %868 = vmatpush1.xpose.msra.mxu0 0.0
      %869 = vmatprep.subr.mxu0 0.0
      %870 = vmatpush1.xpose.msra.mxu0 %v837
      %871 = vmatprep.subr.mxu0 0.0
      %872 = vmatpush2.xpose.msra.mxu0 0.0
      %873 = vmatprep.subr.mxu0 0.0
      %874 = vmatpush2.xpose.msra.mxu0 0.0
      %875 = vmatprep.subr.mxu0 0.0
      %876 = vmatpush2.xpose.msra.mxu0 0.0
      %877 = vmatprep.subr.mxu0 0.0
      %878 = vmatpush2.xpose.msra.mxu0 0.0
      %879 = vmatprep.subr.mxu0 0.0
      %880 = vmatpush2.xpose.msra.mxu0 0.0
      %881 = vmatprep.subr.mxu0 0.0
      %882 = vmatpush2.xpose.msra.mxu0 0.0
      %883 = vmatprep.subr.mxu0 0.0
      %884 = vmatpush2.xpose.msra.mxu0 0.0
      %885 = vmatprep.subr.mxu0 0.0
      %886 = vmatpush2.xpose.msra.mxu0 0.0
      %887 = vmatprep.subr.mxu0 0.0
      %888 = vmatpush2.xpose.msra.mxu0 0.0
      %889 = vmatprep.subr.mxu0 0.0
      %890 = vmatpush2.xpose.msra.mxu0 0.0
      %891 = vmatprep.subr.mxu0 0.0
      %892 = vmatpush2.xpose.msra.mxu0 0.0
      %893 = vmatprep.subr.mxu0 0.0
      %894 = vmatpush2.xpose.msra.mxu0 0.0
      %895 = vmatprep.subr.mxu0 0.0
      %896 = vmatpush2.xpose.msra.mxu0 0.0
      %897 = vmatprep.subr.mxu0 0.0
      %898 = vmatpush2.xpose.msra.mxu0 0.0
      %899 = vmatprep.subr.mxu0 0.0
      %900 = vmatpush2.xpose.msra.mxu0 0.0
      %901 = vmatprep.subr.mxu0 0.0
      %902 = vmatpush2.xpose.msra.mxu0 0.0
      %903 = vmatprep.mubr.f32.mxu0 0.0
      %904 = vmatmul.mubr.f32.gmra.mxu0 %v835
      %v905 = vpop.f32.mrf.mxu0
      %v906 = vadd.f32 0.0, %v905
      %v907 = vpop.f32.mrf.mxu0
      %908 = vdwg.mxu0
      %v909 = vmul.f32 %v828, 0.35355338
      %v910 = vmul.f32 %v906, 0.35355338
      %v911 = vsel %vm425, %v909, -inf
      %912 = vmax.xlane.f32.xlu0 %v911
      %v913 = vpop.xlane.xlu0 %912
      %v914 = vsel %vm425, %v910, -inf
      %915 = vmax.xlane.f32.xlu0 %v914
      %v916 = vpop.xlane.xlu0 %915
      %v917 = vsub.f32 %v909, %v913
      %v918 = vsub.f32 %v910, %v916
      %v919 = vmul.f32 %v917, 1.442695
      %v920 = vpow.pop %v919
      %v921 = vmul.f32 %v918, 1.442695
      %v922 = vpow.pop %v921
      %v923 = vsel %vm425, %v920, 0.0
      %924 = vadd.xlane.f32.xlu0 %v923
      %v925 = vpop.xlane.xlu0 %924
      %v926 = vsel %vm425, %v922, 0.0
      %927 = vadd.xlane.f32.xlu0 %v926
      %v928 = vpop.xlane.xlu0 %927
      %v929 = vrcp.pop %v925
      %v930 = vrcp.pop %v928
      %v931 = vmul.f32 %v920, %v929
      %v932 = vmul.f32 %v922, %v930
      %933 = vrot.lane.b32.xlu0 %v414, 56
      %v934 = vpop.permute.xlu0 %933
      %v937 = vsel %vm425, %v931, 0
      %939 = vmatprep.subr.mxu0 0.0
      %940 = vmatpush1.msra.mxu0 0.0
      %941 = vmatprep.subr.mxu0 0.0
      %942 = vmatpush1.msra.mxu0 0.0
      %943 = vmatprep.subr.mxu0 0.0
      %944 = vmatpush1.msra.mxu0 0.0
      %945 = vmatprep.subr.mxu0 0.0
      %946 = vmatpush1.msra.mxu0 0.0
      %947 = vmatprep.subr.mxu0 0.0
      %948 = vmatpush1.msra.mxu0 0.0
      %949 = vmatprep.subr.mxu0 0.0
      %950 = vmatpush1.msra.mxu0 0.0
      %951 = vmatprep.subr.mxu0 0.0
      %952 = vmatpush1.msra.mxu0 0.0
      %953 = vmatprep.subr.mxu0 0.0
      %954 = vmatpush1.msra.mxu0 0.0
      %955 = vmatprep.subr.mxu0 0.0
      %956 = vmatpush1.msra.mxu0 0.0
      %957 = vmatprep.subr.mxu0 0.0
      %958 = vmatpush1.msra.mxu0 0.0
      %959 = vmatprep.subr.mxu0 0.0
      %960 = vmatpush1.msra.mxu0 0.0
      %961 = vmatprep.subr.mxu0 0.0
      %962 = vmatpush1.msra.mxu0 0.0
      %963 = vmatprep.subr.mxu0 0.0
      %964 = vmatpush1.msra.mxu0 0.0
      %965 = vmatprep.subr.mxu0 0.0
      %966 = vmatpush1.msra.mxu0 0.0
      %967 = vmatprep.subr.mxu0 0.0
      %968 = vmatpush1.msra.mxu0 0.0
      %969 = vmatprep.subr.mxu0 0.0
      %970 = vmatpush1.msra.mxu0 %v934
      %971 = vmatprep.subr.mxu0 0.0
      %972 = vmatpush2.msra.mxu0 0.0
      %973 = vmatprep.subr.mxu0 0.0
      %974 = vmatpush2.msra.mxu0 0.0
      %975 = vmatprep.subr.mxu0 0.0
      %976 = vmatpush2.msra.mxu0 0.0
      %977 = vmatprep.subr.mxu0 0.0
      %978 = vmatpush2.msra.mxu0 0.0
      %979 = vmatprep.subr.mxu0 0.0
      %980 = vmatpush2.msra.mxu0 0.0
      %981 = vmatprep.subr.mxu0 0.0
      %982 = vmatpush2.msra.mxu0 0.0
      %983 = vmatprep.subr.mxu0 0.0
      %984 = vmatpush2.msra.mxu0 0.0
      %985 = vmatprep.subr.mxu0 0.0
      %986 = vmatpush2.msra.mxu0 0.0
      %987 = vmatprep.subr.mxu0 0.0
      %988 = vmatpush2.msra.mxu0 0.0
      %989 = vmatprep.subr.mxu0 0.0
      %990 = vmatpush2.msra.mxu0 0.0
      %991 = vmatprep.subr.mxu0 0.0
      %992 = vmatpush2.msra.mxu0 0.0
      %993 = vmatprep.subr.mxu0 0.0
      %994 = vmatpush2.msra.mxu0 0.0
      %995 = vmatprep.subr.mxu0 0.0
      %996 = vmatpush2.msra.mxu0 0.0
      %997 = vmatprep.subr.mxu0 0.0
      %998 = vmatpush2.msra.mxu0 0.0
      %999 = vmatprep.subr.mxu0 0.0
      %1000 = vmatpush2.msra.mxu0 0.0
      %1001 = vmatprep.subr.mxu0 0.0
      %1002 = vmatpush2.msra.mxu0 0.0
      %1003 = vmatprep.mubr.f32.mxu0 0.0
      %1004 = vmatmul.mubr.f32.gmra.mxu0 %v937
      %v1005 = vpop.f32.mrf.mxu0
      %v1006 = vadd.f32 0.0, %v1005
      %v1007 = vpop.f32.mrf.mxu0
      %1008 = vdwg.mxu0
      %1009 = vrot.lane.b32.xlu0 %v419, 56
      %v1010 = vpop.permute.xlu0 %1009
      %v1013 = vsel %vm425, %v932, 0
      %1015 = vmatprep.subr.mxu0 0.0
      %1016 = vmatpush1.msra.mxu0 0.0
      %1017 = vmatprep.subr.mxu0 0.0
      %1018 = vmatpush1.msra.mxu0 0.0
      %1019 = vmatprep.subr.mxu0 0.0
      %1020 = vmatpush1.msra.mxu0 0.0
      %1021 = vmatprep.subr.mxu0 0.0
      %1022 = vmatpush1.msra.mxu0 0.0
      %1023 = vmatprep.subr.mxu0 0.0
      %1024 = vmatpush1.msra.mxu0 0.0
      %1025 = vmatprep.subr.mxu0 0.0
      %1026 = vmatpush1.msra.mxu0 0.0
      %1027 = vmatprep.subr.mxu0 0.0
      %1028 = vmatpush1.msra.mxu0 0.0
      %1029 = vmatprep.subr.mxu0 0.0
      %1030 = vmatpush1.msra.mxu0 0.0
      %1031 = vmatprep.subr.mxu0 0.0
      %1032 = vmatpush1.msra.mxu0 0.0
      %1033 = vmatprep.subr.mxu0 0.0
      %1034 = vmatpush1.msra.mxu0 0.0
      %1035 = vmatprep.subr.mxu0 0.0
      %1036 = vmatpush1.msra.mxu0 0.0
      %1037 = vmatprep.subr.mxu0 0.0
      %1038 = vmatpush1.msra.mxu0 0.0
      %1039 = vmatprep.subr.mxu0 0.0
      %1040 = vmatpush1.msra.mxu0 0.0
      %1041 = vmatprep.subr.mxu0 0.0
      %1042 = vmatpush1.msra.mxu0 0.0
      %1043 = vmatprep.subr.mxu0 0.0
      %1044 = vmatpush1.msra.mxu0 0.0
      %1045 = vmatprep.subr.mxu0 0.0
      %1046 = vmatpush1.msra.mxu0 %v1010
      %1047 = vmatprep.subr.mxu0 0.0
      %1048 = vmatpush2.msra.mxu0 0.0
      %1049 = vmatprep.subr.mxu0 0.0
      %1050 = vmatpush2.msra.mxu0 0.0
      %1051 = vmatprep.subr.mxu0 0.0
      %1052 = vmatpush2.msra.mxu0 0.0
      %1053 = vmatprep.subr.mxu0 0.0
      %1054 = vmatpush2.msra.mxu0 0.0
      %1055 = vmatprep.subr.mxu0 0.0
      %1056 = vmatpush2.msra.mxu0 0.0
      %1057 = vmatprep.subr.mxu0 0.0
      %1058 = vmatpush2.msra.mxu0 0.0
      %1059 = vmatprep.subr.mxu0 0.0
      %1060 = vmatpush2.msra.mxu0 0.0
      %1061 = vmatprep.subr.mxu0 0.0
      %1062 = vmatpush2.msra.mxu0 0.0
      %1063 = vmatprep.subr.mxu0 0.0
      %1064 = vmatpush2.msra.mxu0 0.0
      %1065 = vmatprep.subr.mxu0 0.0
      %1066 = vmatpush2.msra.mxu0 0.0
      %1067 = vmatprep.subr.mxu0 0.0
      %1068 = vmatpush2.msra.mxu0 0.0
      %1069 = vmatprep.subr.mxu0 0.0
      %1070 = vmatpush2.msra.mxu0 0.0
      %1071 = vmatprep.subr.mxu0 0.0
      %1072 = vmatpush2.msra.mxu0 0.0
      %1073 = vmatprep.subr.mxu0 0.0
      %1074 = vmatpush2.msra.mxu0 0.0
      %1075 = vmatprep.subr.mxu0 0.0
      %1076 = vmatpush2.msra.mxu0 0.0
      %1077 = vmatprep.subr.mxu0 0.0
      %1078 = vmatpush2.msra.mxu0 0.0
      %1079 = vmatprep.mubr.f32.mxu0 0.0
      %1080 = vmatmul.mubr.f32.gmra.mxu0 %v1013
      %v1081 = vpop.f32.mrf.mxu0
      %v1082 = vadd.f32 0.0, %v1081
      %v1083 = vpop.f32.mrf.mxu0
      %1084 = vdwg.mxu0
      %1085 = vrot.lane.b32.xlu0 %v414, 112
      %v1086 = vpop.permute.xlu0 %1085
      %1087 = vrot.lane.b32.xlu0 %v414, 80
      %v1088 = vpop.permute.xlu0 %1087
      %v1089 = vsel %vm425, %v1086, 0
      %v1091 = vsel %vm425, %v1088, 0
      %1093 = vmatprep.subr.mxu0 0.0
      %1094 = vmatpush1.xpose.msra.mxu0 0.0
      %1095 = vmatprep.subr.mxu0 0.0
      %1096 = vmatpush1.xpose.msra.mxu0 0.0
      %1097 = vmatprep.subr.mxu0 0.0
      %1098 = vmatpush1.xpose.msra.mxu0 0.0
      %1099 = vmatprep.subr.mxu0 0.0
      %1100 = vmatpush1.xpose.msra.mxu0 0.0
      %1101 = vmatprep.subr.mxu0 0.0
      %1102 = vmatpush1.xpose.msra.mxu0 0.0
      %1103 = vmatprep.subr.mxu0 0.0
      %1104 = vmatpush1.xpose.msra.mxu0 0.0
      %1105 = vmatprep.subr.mxu0 0.0
      %1106 = vmatpush1.xpose.msra.mxu0 0.0
      %1107 = vmatprep.subr.mxu0 0.0
      %1108 = vmatpush1.xpose.msra.mxu0 0.0
      %1109 = vmatprep.subr.mxu0 0.0
      %1110 = vmatpush1.xpose.msra.mxu0 0.0
      %1111 = vmatprep.subr.mxu0 0.0
      %1112 = vmatpush1.xpose.msra.mxu0 0.0
      %1113 = vmatprep.subr.mxu0 0.0
      %1114 = vmatpush1.xpose.msra.mxu0 0.0
      %1115 = vmatprep.subr.mxu0 0.0
      %1116 = vmatpush1.xpose.msra.mxu0 0.0
      %1117 = vmatprep.subr.mxu0 0.0
      %1118 = vmatpush1.xpose.msra.mxu0 0.0
      %1119 = vmatprep.subr.mxu0 0.0
      %1120 = vmatpush1.xpose.msra.mxu0 0.0
      %1121 = vmatprep.subr.mxu0 0.0
      %1122 = vmatpush1.xpose.msra.mxu0 0.0
      %1123 = vmatprep.subr.mxu0 0.0
      %1124 = vmatpush1.xpose.msra.mxu0 %v1091
      %1125 = vmatprep.subr.mxu0 0.0
      %1126 = vmatpush2.xpose.msra.mxu0 0.0
      %1127 = vmatprep.subr.mxu0 0.0
      %1128 = vmatpush2.xpose.msra.mxu0 0.0
      %1129 = vmatprep.subr.mxu0 0.0
      %1130 = vmatpush2.xpose.msra.mxu0 0.0
      %1131 = vmatprep.subr.mxu0 0.0
      %1132 = vmatpush2.xpose.msra.mxu0 0.0
      %1133 = vmatprep.subr.mxu0 0.0
      %1134 = vmatpush2.xpose.msra.mxu0 0.0
      %1135 = vmatprep.subr.mxu0 0.0
      %1136 = vmatpush2.xpose.msra.mxu0 0.0
      %1137 = vmatprep.subr.mxu0 0.0
      %1138 = vmatpush2.xpose.msra.mxu0 0.0
      %1139 = vmatprep.subr.mxu0 0.0
      %1140 = vmatpush2.xpose.msra.mxu0 0.0
      %1141 = vmatprep.subr.mxu0 0.0
      %1142 = vmatpush2.xpose.msra.mxu0 0.0
      %1143 = vmatprep.subr.mxu0 0.0
      %1144 = vmatpush2.xpose.msra.mxu0 0.0
      %1145 = vmatprep.subr.mxu0 0.0
      %1146 = vmatpush2.xpose.msra.mxu0 0.0
      %1147 = vmatprep.subr.mxu0 0.0
      %1148 = vmatpush2.xpose.msra.mxu0 0.0
      %1149 = vmatprep.subr.mxu0 0.0
      %1150 = vmatpush2.xpose.msra.mxu0 0.0
      %1151 = vmatprep.subr.mxu0 0.0
      %1152 = vmatpush2.xpose.msra.mxu0 0.0
      %1153 = vmatprep.subr.mxu0 0.0
      %1154 = vmatpush2.xpose.msra.mxu0 0.0
      %1155 = vmatprep.subr.mxu0 0.0
      %1156 = vmatpush2.xpose.msra.mxu0 0.0
      %1157 = vmatprep.mubr.f32.mxu0 0.0
      %1158 = vmatmul.mubr.f32.gmra.mxu0 %v1089
      %v1159 = vpop.f32.mrf.mxu0
      %v1160 = vadd.f32 0.0, %v1159
      %v1161 = vpop.f32.mrf.mxu0
      %1162 = vdwg.mxu0
      %1163 = vrot.lane.b32.xlu0 %v419, 112
      %v1164 = vpop.permute.xlu0 %1163
      %1165 = vrot.lane.b32.xlu0 %v419, 80
      %v1166 = vpop.permute.xlu0 %1165
      %v1167 = vsel %vm425, %v1164, 0
      %v1169 = vsel %vm425, %v1166, 0
      %1171 = vmatprep.subr.mxu0 0.0
      %1172 = vmatpush1.xpose.msra.mxu0 0.0
      %1173 = vmatprep.subr.mxu0 0.0
      %1174 = vmatpush1.xpose.msra.mxu0 0.0
      %1175 = vmatprep.subr.mxu0 0.0
      %1176 = vmatpush1.xpose.msra.mxu0 0.0
      %1177 = vmatprep.subr.mxu0 0.0
      %1178 = vmatpush1.xpose.msra.mxu0 0.0
      %1179 = vmatprep.subr.mxu0 0.0
      %1180 = vmatpush1.xpose.msra.mxu0 0.0
      %1181 = vmatprep.subr.mxu0 0.0
      %1182 = vmatpush1.xpose.msra.mxu0 0.0
      %1183 = vmatprep.subr.mxu0 0.0
      %1184 = vmatpush1.xpose.msra.mxu0 0.0
      %1185 = vmatprep.subr.mxu0 0.0
      %1186 = vmatpush1.xpose.msra.mxu0 0.0
      %1187 = vmatprep.subr.mxu0 0.0
      %1188 = vmatpush1.xpose.msra.mxu0 0.0
      %1189 = vmatprep.subr.mxu0 0.0
      %1190 = vmatpush1.xpose.msra.mxu0 0.0
      %1191 = vmatprep.subr.mxu0 0.0
      %1192 = vmatpush1.xpose.msra.mxu0 0.0
      %1193 = vmatprep.subr.mxu0 0.0
      %1194 = vmatpush1.xpose.msra.mxu0 0.0
      %1195 = vmatprep.subr.mxu0 0.0
      %1196 = vmatpush1.xpose.msra.mxu0 0.0
      %1197 = vmatprep.subr.mxu0 0.0
      %1198 = vmatpush1.xpose.msra.mxu0 0.0
      %1199 = vmatprep.subr.mxu0 0.0
      %1200 = vmatpush1.xpose.msra.mxu0 0.0
      %1201 = vmatprep.subr.mxu0 0.0
      %1202 = vmatpush1.xpose.msra.mxu0 %v1169
      %1203 = vmatprep.subr.mxu0 0.0
      %1204 = vmatpush2.xpose.msra.mxu0 0.0
      %1205 = vmatprep.subr.mxu0 0.0
      %1206 = vmatpush2.xpose.msra.mxu0 0.0
      %1207 = vmatprep.subr.mxu0 0.0
      %1208 = vmatpush2.xpose.msra.mxu0 0.0
      %1209 = vmatprep.subr.mxu0 0.0
      %1210 = vmatpush2.xpose.msra.mxu0 0.0
      %1211 = vmatprep.subr.mxu0 0.0
      %1212 = vmatpush2.xpose.msra.mxu0 0.0
      %1213 = vmatprep.subr.mxu0 0.0
      %1214 = vmatpush2.xpose.msra.mxu0 0.0
      %1215 = vmatprep.subr.mxu0 0.0
      %1216 = vmatpush2.xpose.msra.mxu0 0.0
      %1217 = vmatprep.subr.mxu0 0.0
      %1218 = vmatpush2.xpose.msra.mxu0 0.0
      %1219 = vmatprep.subr.mxu0 0.0
      %1220 = vmatpush2.xpose.msra.mxu0 0.0
      %1221 = vmatprep.subr.mxu0 0.0
      %1222 = vmatpush2.xpose.msra.mxu0 0.0
      %1223 = vmatprep.subr.mxu0 0.0
      %1224 = vmatpush2.xpose.msra.mxu0 0.0
      %1225 = vmatprep.subr.mxu0 0.0
      %1226 = vmatpush2.xpose.msra.mxu0 0.0
      %1227 = vmatprep.subr.mxu0 0.0
      %1228 = vmatpush2.xpose.msra.mxu0 0.0
      %1229 = vmatprep.subr.mxu0 0.0
      %1230 = vmatpush2.xpose.msra.mxu0 0.0
      %1231 = vmatprep.subr.mxu0 0.0
      %1232 = vmatpush2.xpose.msra.mxu0 0.0
      %1233 = vmatprep.subr.mxu0 0.0
      %1234 = vmatpush2.xpose.msra.mxu0 0.0
      %1235 = vmatprep.mubr.f32.mxu0 0.0
      %1236 = vmatmul.mubr.f32.gmra.mxu0 %v1167
      %v1237 = vpop.f32.mrf.mxu0
      %v1238 = vadd.f32 0.0, %v1237
      %v1239 = vpop.f32.mrf.mxu0
      %1240 = vdwg.mxu0
      %v1241 = vmul.f32 %v1160, 0.35355338
      %v1242 = vmul.f32 %v1238, 0.35355338
      %v1243 = vsel %vm425, %v1241, -inf
      %1244 = vmax.xlane.f32.xlu0 %v1243
      %v1245 = vpop.xlane.xlu0 %1244
      %v1246 = vsel %vm425, %v1242, -inf
      %1247 = vmax.xlane.f32.xlu0 %v1246
      %v1248 = vpop.xlane.xlu0 %1247
      %v1249 = vsub.f32 %v1241, %v1245
      %v1250 = vsub.f32 %v1242, %v1248
      %v1251 = vmul.f32 %v1249, 1.442695
      %v1252 = vpow.pop %v1251
      %v1253 = vmul.f32 %v1250, 1.442695
      %v1254 = vpow.pop %v1253
      %v1255 = vsel %vm425, %v1252, 0.0
      %1256 = vadd.xlane.f32.xlu0 %v1255
      %v1257 = vpop.xlane.xlu0 %1256
      %v1258 = vsel %vm425, %v1254, 0.0
      %1259 = vadd.xlane.f32.xlu0 %v1258
      %v1260 = vpop.xlane.xlu0 %1259
      %v1261 = vrcp.pop %v1257
      %v1262 = vrcp.pop %v1260
      %v1263 = vmul.f32 %v1252, %v1261
      %v1264 = vmul.f32 %v1254, %v1262
      %1265 = vrot.lane.b32.xlu0 %v414, 48
      %v1266 = vpop.permute.xlu0 %1265
      %v1269 = vsel %vm425, %v1263, 0
      %1271 = vmatprep.subr.mxu0 0.0
      %1272 = vmatpush1.msra.mxu0 0.0
      %1273 = vmatprep.subr.mxu0 0.0
      %1274 = vmatpush1.msra.mxu0 0.0
      %1275 = vmatprep.subr.mxu0 0.0
      %1276 = vmatpush1.msra.mxu0 0.0
      %1277 = vmatprep.subr.mxu0 0.0
      %1278 = vmatpush1.msra.mxu0 0.0
      %1279 = vmatprep.subr.mxu0 0.0
      %1280 = vmatpush1.msra.mxu0 0.0
      %1281 = vmatprep.subr.mxu0 0.0
      %1282 = vmatpush1.msra.mxu0 0.0
      %1283 = vmatprep.subr.mxu0 0.0
      %1284 = vmatpush1.msra.mxu0 0.0
      %1285 = vmatprep.subr.mxu0 0.0
      %1286 = vmatpush1.msra.mxu0 0.0
      %1287 = vmatprep.subr.mxu0 0.0
      %1288 = vmatpush1.msra.mxu0 0.0
      %1289 = vmatprep.subr.mxu0 0.0
      %1290 = vmatpush1.msra.mxu0 0.0
      %1291 = vmatprep.subr.mxu0 0.0
      %1292 = vmatpush1.msra.mxu0 0.0
      %1293 = vmatprep.subr.mxu0 0.0
      %1294 = vmatpush1.msra.mxu0 0.0
      %1295 = vmatprep.subr.mxu0 0.0
      %1296 = vmatpush1.msra.mxu0 0.0
      %1297 = vmatprep.subr.mxu0 0.0
      %1298 = vmatpush1.msra.mxu0 0.0
      %1299 = vmatprep.subr.mxu0 0.0
      %1300 = vmatpush1.msra.mxu0 0.0
      %1301 = vmatprep.subr.mxu0 0.0
      %1302 = vmatpush1.msra.mxu0 %v1266
      %1303 = vmatprep.subr.mxu0 0.0
      %1304 = vmatpush2.msra.mxu0 0.0
      %1305 = vmatprep.subr.mxu0 0.0
      %1306 = vmatpush2.msra.mxu0 0.0
      %1307 = vmatprep.subr.mxu0 0.0
      %1308 = vmatpush2.msra.mxu0 0.0
      %1309 = vmatprep.subr.mxu0 0.0
      %1310 = vmatpush2.msra.mxu0 0.0
      %1311 = vmatprep.subr.mxu0 0.0
      %1312 = vmatpush2.msra.mxu0 0.0
      %1313 = vmatprep.subr.mxu0 0.0
      %1314 = vmatpush2.msra.mxu0 0.0
      %1315 = vmatprep.subr.mxu0 0.0
      %1316 = vmatpush2.msra.mxu0 0.0
      %1317 = vmatprep.subr.mxu0 0.0
      %1318 = vmatpush2.msra.mxu0 0.0
      %1319 = vmatprep.subr.mxu0 0.0
      %1320 = vmatpush2.msra.mxu0 0.0
      %1321 = vmatprep.subr.mxu0 0.0
      %1322 = vmatpush2.msra.mxu0 0.0
      %1323 = vmatprep.subr.mxu0 0.0
      %1324 = vmatpush2.msra.mxu0 0.0
      %1325 = vmatprep.subr.mxu0 0.0
      %1326 = vmatpush2.msra.mxu0 0.0
      %1327 = vmatprep.subr.mxu0 0.0
      %1328 = vmatpush2.msra.mxu0 0.0
      %1329 = vmatprep.subr.mxu0 0.0
      %1330 = vmatpush2.msra.mxu0 0.0
      %1331 = vmatprep.subr.mxu0 0.0
      %1332 = vmatpush2.msra.mxu0 0.0
      %1333 = vmatprep.subr.mxu0 0.0
      %1334 = vmatpush2.msra.mxu0 0.0
      %1335 = vmatprep.mubr.f32.mxu0 0.0
      %1336 = vmatmul.mubr.f32.gmra.mxu0 %v1269
      %v1337 = vpop.f32.mrf.mxu0
      %v1338 = vadd.f32 0.0, %v1337
      %v1339 = vpop.f32.mrf.mxu0
      %1340 = vdwg.mxu0
      %1341 = vrot.lane.b32.xlu0 %v419, 48
      %v1342 = vpop.permute.xlu0 %1341
      %v1345 = vsel %vm425, %v1264, 0
      %1347 = vmatprep.subr.mxu0 0.0
      %1348 = vmatpush1.msra.mxu0 0.0
      %1349 = vmatprep.subr.mxu0 0.0
      %1350 = vmatpush1.msra.mxu0 0.0
      %1351 = vmatprep.subr.mxu0 0.0
      %1352 = vmatpush1.msra.mxu0 0.0
      %1353 = vmatprep.subr.mxu0 0.0
      %1354 = vmatpush1.msra.mxu0 0.0
      %1355 = vmatprep.subr.mxu0 0.0
      %1356 = vmatpush1.msra.mxu0 0.0
      %1357 = vmatprep.subr.mxu0 0.0
      %1358 = vmatpush1.msra.mxu0 0.0
      %1359 = vmatprep.subr.mxu0 0.0
      %1360 = vmatpush1.msra.mxu0 0.0
      %1361 = vmatprep.subr.mxu0 0.0
      %1362 = vmatpush1.msra.mxu0 0.0
      %1363 = vmatprep.subr.mxu0 0.0
      %1364 = vmatpush1.msra.mxu0 0.0
      %1365 = vmatprep.subr.mxu0 0.0
      %1366 = vmatpush1.msra.mxu0 0.0
      %1367 = vmatprep.subr.mxu0 0.0
      %1368 = vmatpush1.msra.mxu0 0.0
      %1369 = vmatprep.subr.mxu0 0.0
      %1370 = vmatpush1.msra.mxu0 0.0
      %1371 = vmatprep.subr.mxu0 0.0
      %1372 = vmatpush1.msra.mxu0 0.0
      %1373 = vmatprep.subr.mxu0 0.0
      %1374 = vmatpush1.msra.mxu0 0.0
      %1375 = vmatprep.subr.mxu0 0.0
      %1376 = vmatpush1.msra.mxu0 0.0
      %1377 = vmatprep.subr.mxu0 0.0
      %1378 = vmatpush1.msra.mxu0 %v1342
      %1379 = vmatprep.subr.mxu0 0.0
      %1380 = vmatpush2.msra.mxu0 0.0
      %1381 = vmatprep.subr.mxu0 0.0
      %1382 = vmatpush2.msra.mxu0 0.0
      %1383 = vmatprep.subr.mxu0 0.0
      %1384 = vmatpush2.msra.mxu0 0.0
      %1385 = vmatprep.subr.mxu0 0.0
      %1386 = vmatpush2.msra.mxu0 0.0
      %1387 = vmatprep.subr.mxu0 0.0
      %1388 = vmatpush2.msra.mxu0 0.0
      %1389 = vmatprep.subr.mxu0 0.0
      %1390 = vmatpush2.msra.mxu0 0.0
      %1391 = vmatprep.subr.mxu0 0.0
      %1392 = vmatpush2.msra.mxu0 0.0
      %1393 = vmatprep.subr.mxu0 0.0
      %1394 = vmatpush2.msra.mxu0 0.0
      %1395 = vmatprep.subr.mxu0 0.0
      %1396 = vmatpush2.msra.mxu0 0.0
      %1397 = vmatprep.subr.mxu0 0.0
      %1398 = vmatpush2.msra.mxu0 0.0
      %1399 = vmatprep.subr.mxu0 0.0
      %1400 = vmatpush2.msra.mxu0 0.0
      %1401 = vmatprep.subr.mxu0 0.0
      %1402 = vmatpush2.msra.mxu0 0.0
      %1403 = vmatprep.subr.mxu0 0.0
      %1404 = vmatpush2.msra.mxu0 0.0
      %1405 = vmatprep.subr.mxu0 0.0
      %1406 = vmatpush2.msra.mxu0 0.0
      %1407 = vmatprep.subr.mxu0 0.0
      %1408 = vmatpush2.msra.mxu0 0.0
      %1409 = vmatprep.subr.mxu0 0.0
      %1410 = vmatpush2.msra.mxu0 0.0
      %1411 = vmatprep.mubr.f32.mxu0 0.0
      %1412 = vmatmul.mubr.f32.gmra.mxu0 %v1345
      %v1413 = vpop.f32.mrf.mxu0
      %v1414 = vadd.f32 0.0, %v1413
      %v1415 = vpop.f32.mrf.mxu0
      %1416 = vdwg.mxu0
      %1417 = vrot.lane.b32.xlu0 %v414, 104
      %v1418 = vpop.permute.xlu0 %1417
      %1419 = vrot.lane.b32.xlu0 %v414, 72
      %v1420 = vpop.permute.xlu0 %1419
      %v1421 = vsel %vm425, %v1418, 0
      %v1423 = vsel %vm425, %v1420, 0
      %1425 = vmatprep.subr.mxu0 0.0
      %1426 = vmatpush1.xpose.msra.mxu0 0.0
      %1427 = vmatprep.subr.mxu0 0.0
      %1428 = vmatpush1.xpose.msra.mxu0 0.0
      %1429 = vmatprep.subr.mxu0 0.0
      %1430 = vmatpush1.xpose.msra.mxu0 0.0
      %1431 = vmatprep.subr.mxu0 0.0
      %1432 = vmatpush1.xpose.msra.mxu0 0.0
      %1433 = vmatprep.subr.mxu0 0.0
      %1434 = vmatpush1.xpose.msra.mxu0 0.0
      %1435 = vmatprep.subr.mxu0 0.0
      %1436 = vmatpush1.xpose.msra.mxu0 0.0
      %1437 = vmatprep.subr.mxu0 0.0
      %1438 = vmatpush1.xpose.msra.mxu0 0.0
      %1439 = vmatprep.subr.mxu0 0.0
      %1440 = vmatpush1.xpose.msra.mxu0 0.0
      %1441 = vmatprep.subr.mxu0 0.0
      %1442 = vmatpush1.xpose.msra.mxu0 0.0
      %1443 = vmatprep.subr.mxu0 0.0
      %1444 = vmatpush1.xpose.msra.mxu0 0.0
      %1445 = vmatprep.subr.mxu0 0.0
      %1446 = vmatpush1.xpose.msra.mxu0 0.0
      %1447 = vmatprep.subr.mxu0 0.0
      %1448 = vmatpush1.xpose.msra.mxu0 0.0
      %1449 = vmatprep.subr.mxu0 0.0
      %1450 = vmatpush1.xpose.msra.mxu0 0.0
      %1451 = vmatprep.subr.mxu0 0.0
      %1452 = vmatpush1.xpose.msra.mxu0 0.0
      %1453 = vmatprep.subr.mxu0 0.0
      %1454 = vmatpush1.xpose.msra.mxu0 0.0
      %1455 = vmatprep.subr.mxu0 0.0
      %1456 = vmatpush1.xpose.msra.mxu0 %v1423
      %1457 = vmatprep.subr.mxu0 0.0
      %1458 = vmatpush2.xpose.msra.mxu0 0.0
      %1459 = vmatprep.subr.mxu0 0.0
      %1460 = vmatpush2.xpose.msra.mxu0 0.0
      %1461 = vmatprep.subr.mxu0 0.0
      %1462 = vmatpush2.xpose.msra.mxu0 0.0
      %1463 = vmatprep.subr.mxu0 0.0
      %1464 = vmatpush2.xpose.msra.mxu0 0.0
      %1465 = vmatprep.subr.mxu0 0.0
      %1466 = vmatpush2.xpose.msra.mxu0 0.0
      %1467 = vmatprep.subr.mxu0 0.0
      %1468 = vmatpush2.xpose.msra.mxu0 0.0
      %1469 = vmatprep.subr.mxu0 0.0
      %1470 = vmatpush2.xpose.msra.mxu0 0.0
      %1471 = vmatprep.subr.mxu0 0.0
      %1472 = vmatpush2.xpose.msra.mxu0 0.0
      %1473 = vmatprep.subr.mxu0 0.0
      %1474 = vmatpush2.xpose.msra.mxu0 0.0
      %1475 = vmatprep.subr.mxu0 0.0
      %1476 = vmatpush2.xpose.msra.mxu0 0.0
      %1477 = vmatprep.subr.mxu0 0.0
      %1478 = vmatpush2.xpose.msra.mxu0 0.0
      %1479 = vmatprep.subr.mxu0 0.0
      %1480 = vmatpush2.xpose.msra.mxu0 0.0
      %1481 = vmatprep.subr.mxu0 0.0
      %1482 = vmatpush2.xpose.msra.mxu0 0.0
      %1483 = vmatprep.subr.mxu0 0.0
      %1484 = vmatpush2.xpose.msra.mxu0 0.0
      %1485 = vmatprep.subr.mxu0 0.0
      %1486 = vmatpush2.xpose.msra.mxu0 0.0
      %1487 = vmatprep.subr.mxu0 0.0
      %1488 = vmatpush2.xpose.msra.mxu0 0.0
      %1489 = vmatprep.mubr.f32.mxu0 0.0
      %1490 = vmatmul.mubr.f32.gmra.mxu0 %v1421
      %v1491 = vpop.f32.mrf.mxu0
      %v1492 = vadd.f32 0.0, %v1491
      %v1493 = vpop.f32.mrf.mxu0
      %1494 = vdwg.mxu0
      %1495 = vrot.lane.b32.xlu0 %v419, 104
      %v1496 = vpop.permute.xlu0 %1495
      %1497 = vrot.lane.b32.xlu0 %v419, 72
      %v1498 = vpop.permute.xlu0 %1497
      %v1499 = vsel %vm425, %v1496, 0
      %v1501 = vsel %vm425, %v1498, 0
      %1503 = vmatprep.subr.mxu0 0.0
      %1504 = vmatpush1.xpose.msra.mxu0 0.0
      %1505 = vmatprep.subr.mxu0 0.0
      %1506 = vmatpush1.xpose.msra.mxu0 0.0
      %1507 = vmatprep.subr.mxu0 0.0
      %1508 = vmatpush1.xpose.msra.mxu0 0.0
      %1509 = vmatprep.subr.mxu0 0.0
      %1510 = vmatpush1.xpose.msra.mxu0 0.0
      %1511 = vmatprep.subr.mxu0 0.0
      %1512 = vmatpush1.xpose.msra.mxu0 0.0
      %1513 = vmatprep.subr.mxu0 0.0
      %1514 = vmatpush1.xpose.msra.mxu0 0.0
      %1515 = vmatprep.subr.mxu0 0.0
      %1516 = vmatpush1.xpose.msra.mxu0 0.0
      %1517 = vmatprep.subr.mxu0 0.0
      %1518 = vmatpush1.xpose.msra.mxu0 0.0
      %1519 = vmatprep.subr.mxu0 0.0
      %1520 = vmatpush1.xpose.msra.mxu0 0.0
      %1521 = vmatprep.subr.mxu0 0.0
      %1522 = vmatpush1.xpose.msra.mxu0 0.0
      %1523 = vmatprep.subr.mxu0 0.0
      %1524 = vmatpush1.xpose.msra.mxu0 0.0
      %1525 = vmatprep.subr.mxu0 0.0
      %1526 = vmatpush1.xpose.msra.mxu0 0.0
      %1527 = vmatprep.subr.mxu0 0.0
      %1528 = vmatpush1.xpose.msra.mxu0 0.0
      %1529 = vmatprep.subr.mxu0 0.0
      %1530 = vmatpush1.xpose.msra.mxu0 0.0
      %1531 = vmatprep.subr.mxu0 0.0
      %1532 = vmatpush1.xpose.msra.mxu0 0.0
      %1533 = vmatprep.subr.mxu0 0.0
      %1534 = vmatpush1.xpose.msra.mxu0 %v1501
      %1535 = vmatprep.subr.mxu0 0.0
      %1536 = vmatpush2.xpose.msra.mxu0 0.0
      %1537 = vmatprep.subr.mxu0 0.0
      %1538 = vmatpush2.xpose.msra.mxu0 0.0
      %1539 = vmatprep.subr.mxu0 0.0
      %1540 = vmatpush2.xpose.msra.mxu0 0.0
      %1541 = vmatprep.subr.mxu0 0.0
      %1542 = vmatpush2.xpose.msra.mxu0 0.0
      %1543 = vmatprep.subr.mxu0 0.0
      %1544 = vmatpush2.xpose.msra.mxu0 0.0
      %1545 = vmatprep.subr.mxu0 0.0
      %1546 = vmatpush2.xpose.msra.mxu0 0.0
      %1547 = vmatprep.subr.mxu0 0.0
      %1548 = vmatpush2.xpose.msra.mxu0 0.0
      %1549 = vmatprep.subr.mxu0 0.0
      %1550 = vmatpush2.xpose.msra.mxu0 0.0
      %1551 = vmatprep.subr.mxu0 0.0
      %1552 = vmatpush2.xpose.msra.mxu0 0.0
      %1553 = vmatprep.subr.mxu0 0.0
      %1554 = vmatpush2.xpose.msra.mxu0 0.0
      %1555 = vmatprep.subr.mxu0 0.0
      %1556 = vmatpush2.xpose.msra.mxu0 0.0
      %1557 = vmatprep.subr.mxu0 0.0
      %1558 = vmatpush2.xpose.msra.mxu0 0.0
      %1559 = vmatprep.subr.mxu0 0.0
      %1560 = vmatpush2.xpose.msra.mxu0 0.0
      %1561 = vmatprep.subr.mxu0 0.0
      %1562 = vmatpush2.xpose.msra.mxu0 0.0
      %1563 = vmatprep.subr.mxu0 0.0
      %1564 = vmatpush2.xpose.msra.mxu0 0.0
      %1565 = vmatprep.subr.mxu0 0.0
      %1566 = vmatpush2.xpose.msra.mxu0 0.0
      %1567 = vmatprep.mubr.f32.mxu0 0.0
      %1568 = vmatmul.mubr.f32.gmra.mxu0 %v1499
      %v1569 = vpop.f32.mrf.mxu0
      %v1570 = vadd.f32 0.0, %v1569
      %v1571 = vpop.f32.mrf.mxu0
      %1572 = vdwg.mxu0
      %v1573 = vmul.f32 %v1492, 0.35355338
      %v1574 = vmul.f32 %v1570, 0.35355338
      %v1575 = vsel %vm425, %v1573, -inf
      %1576 = vmax.xlane.f32.xlu0 %v1575
      %v1577 = vpop.xlane.xlu0 %1576
      %v1578 = vsel %vm425, %v1574, -inf
      %1579 = vmax.xlane.f32.xlu0 %v1578
      %v1580 = vpop.xlane.xlu0 %1579
      %v1581 = vsub.f32 %v1573, %v1577
      %v1582 = vsub.f32 %v1574, %v1580
      %v1583 = vmul.f32 %v1581, 1.442695
      %v1584 = vpow.pop %v1583
      %v1585 = vmul.f32 %v1582, 1.442695
      %v1586 = vpow.pop %v1585
      %v1587 = vsel %vm425, %v1584, 0.0
      %1588 = vadd.xlane.f32.xlu0 %v1587
      %v1589 = vpop.xlane.xlu0 %1588
      %v1590 = vsel %vm425, %v1586, 0.0
      %1591 = vadd.xlane.f32.xlu0 %v1590
      %v1592 = vpop.xlane.xlu0 %1591
      %v1593 = vrcp.pop %v1589
      %v1594 = vrcp.pop %v1592
      %v1595 = vmul.f32 %v1584, %v1593
      %v1596 = vmul.f32 %v1586, %v1594
      %1597 = vrot.lane.b32.xlu0 %v414, 40
      %v1598 = vpop.permute.xlu0 %1597
      %v1601 = vsel %vm425, %v1595, 0
      %1603 = vmatprep.subr.mxu0 0.0
      %1604 = vmatpush1.msra.mxu0 0.0
      %1605 = vmatprep.subr.mxu0 0.0
      %1606 = vmatpush1.msra.mxu0 0.0
      %1607 = vmatprep.subr.mxu0 0.0
      %1608 = vmatpush1.msra.mxu0 0.0
      %1609 = vmatprep.subr.mxu0 0.0
      %1610 = vmatpush1.msra.mxu0 0.0
      %1611 = vmatprep.subr.mxu0 0.0
      %1612 = vmatpush1.msra.mxu0 0.0
      %1613 = vmatprep.subr.mxu0 0.0
      %1614 = vmatpush1.msra.mxu0 0.0
      %1615 = vmatprep.subr.mxu0 0.0
      %1616 = vmatpush1.msra.mxu0 0.0
      %1617 = vmatprep.subr.mxu0 0.0
      %1618 = vmatpush1.msra.mxu0 0.0
      %1619 = vmatprep.subr.mxu0 0.0
      %1620 = vmatpush1.msra.mxu0 0.0
      %1621 = vmatprep.subr.mxu0 0.0
      %1622 = vmatpush1.msra.mxu0 0.0
      %1623 = vmatprep.subr.mxu0 0.0
      %1624 = vmatpush1.msra.mxu0 0.0
      %1625 = vmatprep.subr.mxu0 0.0
      %1626 = vmatpush1.msra.mxu0 0.0
      %1627 = vmatprep.subr.mxu0 0.0
      %1628 = vmatpush1.msra.mxu0 0.0
      %1629 = vmatprep.subr.mxu0 0.0
      %1630 = vmatpush1.msra.mxu0 0.0
      %1631 = vmatprep.subr.mxu0 0.0
      %1632 = vmatpush1.msra.mxu0 0.0
      %1633 = vmatprep.subr.mxu0 0.0
      %1634 = vmatpush1.msra.mxu0 %v1598
      %1635 = vmatprep.subr.mxu0 0.0
      %1636 = vmatpush2.msra.mxu0 0.0
      %1637 = vmatprep.subr.mxu0 0.0
      %1638 = vmatpush2.msra.mxu0 0.0
      %1639 = vmatprep.subr.mxu0 0.0
      %1640 = vmatpush2.msra.mxu0 0.0
      %1641 = vmatprep.subr.mxu0 0.0
      %1642 = vmatpush2.msra.mxu0 0.0
      %1643 = vmatprep.subr.mxu0 0.0
      %1644 = vmatpush2.msra.mxu0 0.0
      %1645 = vmatprep.subr.mxu0 0.0
      %1646 = vmatpush2.msra.mxu0 0.0
      %1647 = vmatprep.subr.mxu0 0.0
      %1648 = vmatpush2.msra.mxu0 0.0
      %1649 = vmatprep.subr.mxu0 0.0
      %1650 = vmatpush2.msra.mxu0 0.0
      %1651 = vmatprep.subr.mxu0 0.0
      %1652 = vmatpush2.msra.mxu0 0.0
      %1653 = vmatprep.subr.mxu0 0.0
      %1654 = vmatpush2.msra.mxu0 0.0
      %1655 = vmatprep.subr.mxu0 0.0
      %1656 = vmatpush2.msra.mxu0 0.0
      %1657 = vmatprep.subr.mxu0 0.0
      %1658 = vmatpush2.msra.mxu0 0.0
      %1659 = vmatprep.subr.mxu0 0.0
      %1660 = vmatpush2.msra.mxu0 0.0
      %1661 = vmatprep.subr.mxu0 0.0
      %1662 = vmatpush2.msra.mxu0 0.0
      %1663 = vmatprep.subr.mxu0 0.0
      %1664 = vmatpush2.msra.mxu0 0.0
      %1665 = vmatprep.subr.mxu0 0.0
      %1666 = vmatpush2.msra.mxu0 0.0
      %1667 = vmatprep.mubr.f32.mxu0 0.0
      %1668 = vmatmul.mubr.f32.gmra.mxu0 %v1601
      %v1669 = vpop.f32.mrf.mxu0
      %v1670 = vadd.f32 0.0, %v1669
      %v1671 = vpop.f32.mrf.mxu0
      %1672 = vdwg.mxu0
      %1673 = vrot.lane.b32.xlu0 %v419, 40
      %v1674 = vpop.permute.xlu0 %1673
      %v1677 = vsel %vm425, %v1596, 0
      %1679 = vmatprep.subr.mxu0 0.0
      %1680 = vmatpush1.msra.mxu0 0.0
      %1681 = vmatprep.subr.mxu0 0.0
      %1682 = vmatpush1.msra.mxu0 0.0
      %1683 = vmatprep.subr.mxu0 0.0
      %1684 = vmatpush1.msra.mxu0 0.0
      %1685 = vmatprep.subr.mxu0 0.0
      %1686 = vmatpush1.msra.mxu0 0.0
      %1687 = vmatprep.subr.mxu0 0.0
      %1688 = vmatpush1.msra.mxu0 0.0
      %1689 = vmatprep.subr.mxu0 0.0
      %1690 = vmatpush1.msra.mxu0 0.0
      %1691 = vmatprep.subr.mxu0 0.0
      %1692 = vmatpush1.msra.mxu0 0.0
      %1693 = vmatprep.subr.mxu0 0.0
      %1694 = vmatpush1.msra.mxu0 0.0
      %1695 = vmatprep.subr.mxu0 0.0
      %1696 = vmatpush1.msra.mxu0 0.0
      %1697 = vmatprep.subr.mxu0 0.0
      %1698 = vmatpush1.msra.mxu0 0.0
      %1699 = vmatprep.subr.mxu0 0.0
      %1700 = vmatpush1.msra.mxu0 0.0
      %1701 = vmatprep.subr.mxu0 0.0
      %1702 = vmatpush1.msra.mxu0 0.0
      %1703 = vmatprep.subr.mxu0 0.0
      %1704 = vmatpush1.msra.mxu0 0.0
      %1705 = vmatprep.subr.mxu0 0.0
      %1706 = vmatpush1.msra.mxu0 0.0
      %1707 = vmatprep.subr.mxu0 0.0
      %1708 = vmatpush1.msra.mxu0 0.0
      %1709 = vmatprep.subr.mxu0 0.0
      %1710 = vmatpush1.msra.mxu0 %v1674
      %1711 = vmatprep.subr.mxu0 0.0
      %1712 = vmatpush2.msra.mxu0 0.0
      %1713 = vmatprep.subr.mxu0 0.0
      %1714 = vmatpush2.msra.mxu0 0.0
      %1715 = vmatprep.subr.mxu0 0.0
      %1716 = vmatpush2.msra.mxu0 0.0
      %1717 = vmatprep.subr.mxu0 0.0
      %1718 = vmatpush2.msra.mxu0 0.0
      %1719 = vmatprep.subr.mxu0 0.0
      %1720 = vmatpush2.msra.mxu0 0.0
      %1721 = vmatprep.subr.mxu0 0.0
      %1722 = vmatpush2.msra.mxu0 0.0
      %1723 = vmatprep.subr.mxu0 0.0
      %1724 = vmatpush2.msra.mxu0 0.0
      %1725 = vmatprep.subr.mxu0 0.0
      %1726 = vmatpush2.msra.mxu0 0.0
      %1727 = vmatprep.subr.mxu0 0.0
      %1728 = vmatpush2.msra.mxu0 0.0
      %1729 = vmatprep.subr.mxu0 0.0
      %1730 = vmatpush2.msra.mxu0 0.0
      %1731 = vmatprep.subr.mxu0 0.0
      %1732 = vmatpush2.msra.mxu0 0.0
      %1733 = vmatprep.subr.mxu0 0.0
      %1734 = vmatpush2.msra.mxu0 0.0
      %1735 = vmatprep.subr.mxu0 0.0
      %1736 = vmatpush2.msra.mxu0 0.0
      %1737 = vmatprep.subr.mxu0 0.0
      %1738 = vmatpush2.msra.mxu0 0.0
      %1739 = vmatprep.subr.mxu0 0.0
      %1740 = vmatpush2.msra.mxu0 0.0
      %1741 = vmatprep.subr.mxu0 0.0
      %1742 = vmatpush2.msra.mxu0 0.0
      %1743 = vmatprep.mubr.f32.mxu0 0.0
      %1744 = vmatmul.mubr.f32.gmra.mxu0 %v1677
      %v1745 = vpop.f32.mrf.mxu0
      %v1746 = vadd.f32 0.0, %v1745
      %v1747 = vpop.f32.mrf.mxu0
      %1748 = vdwg.mxu0
      %1751 = vrot.lane.b32.xlu0 %v1006, 8
      %v1752 = vpop.permute.xlu0 %1751
      %1753 = vrot.lane.b32.xlu0 %v1082, 8
      %v1754 = vpop.permute.xlu0 %1753
      %1759 = vrot.lane.b32.xlu0 %v1338, 16
      %v1760 = vpop.permute.xlu0 %1759
      %1761 = vrot.lane.b32.xlu0 %v1414, 16
      %v1762 = vpop.permute.xlu0 %1761
      %1767 = vrot.lane.b32.xlu0 %v1670, 24
      %v1768 = vpop.permute.xlu0 %1767
      %1769 = vrot.lane.b32.xlu0 %v1746, 24
      %v1770 = vpop.permute.xlu0 %1769
      %v1773 = vsel %vm425, %v674, %v1752
      %v1774 = vsel %vm425, %v750, %v1754
      %vm1775 = vcmask 130048
      %v1776 = vsel %vm1775, %v1773, %v1760
      %v1777 = vsel %vm1775, %v1774, %v1762
      %vm1778 = vcmask 195584
      %v1779 = vsel %vm1778, %v1776, %v1768
      %v1780 = vsel %vm1778, %v1777, %v1770
      %v1781 = vld [vmem:[%s5] sm:$0xff]
      %v1782 = vld [vmem:[%s5 + $0x8] sm:$0xff]
      %v1783 = vld [vmem:[%s5 + $0x10] sm:$0xff]
      %v1784 = vld [vmem:[%s5 + $0x18] sm:$0xff]
      %v1785 = vld [vmem:[%s6] sm:$0x1]
      %v1787 = vlaneseq
      %v1788 = vshrl.u32 %v1787, 7
      %v1789 = vsub.s32 0, %v1788
      %v1790 = vrot.slane %v1785, %v1789
      %v1793 = vsel %vm284, %v1779, 0
      %v1796 = vsel %vm284, %v1780, 0
      %1798 = vmatprep.subr.mxu0 0.0
      %1799 = vmatpush1.msra.mxu0 0.0
      %1800 = vmatprep.subr.mxu0 0.0
      %1801 = vmatpush1.msra.mxu0 0.0
      %1802 = vmatprep.subr.mxu0 0.0
      %1803 = vmatpush1.msra.mxu0 0.0
      %1804 = vmatprep.subr.mxu0 0.0
      %1805 = vmatpush1.msra.mxu0 0.0
      %1806 = vmatprep.subr.mxu0 0.0
      %1807 = vmatpush1.msra.mxu0 0.0
      %1808 = vmatprep.subr.mxu0 0.0
      %1809 = vmatpush1.msra.mxu0 0.0
      %1810 = vmatprep.subr.mxu0 0.0
      %1811 = vmatpush1.msra.mxu0 0.0
      %1812 = vmatprep.subr.mxu0 0.0
      %1813 = vmatpush1.msra.mxu0 0.0
      %1814 = vmatprep.subr.mxu0 0.0
      %1815 = vmatpush1.msra.mxu0 0.0
      %1816 = vmatprep.subr.mxu0 0.0
      %1817 = vmatpush1.msra.mxu0 0.0
      %1818 = vmatprep.subr.mxu0 0.0
      %1819 = vmatpush1.msra.mxu0 0.0
      %1820 = vmatprep.subr.mxu0 0.0
      %1821 = vmatpush1.msra.mxu0 0.0
      %1822 = vmatprep.subr.mxu0 0.0
      %1823 = vmatpush1.msra.mxu0 %v1784
      %1824 = vmatprep.subr.mxu0 0.0
      %1825 = vmatpush1.msra.mxu0 %v1783
      %1826 = vmatprep.subr.mxu0 0.0
      %1827 = vmatpush1.msra.mxu0 %v1782
      %1828 = vmatprep.subr.mxu0 0.0
      %1829 = vmatpush1.msra.mxu0 %v1781
      %1830 = vmatprep.subr.mxu0 0.0
      %1831 = vmatpush2.msra.mxu0 0.0
      %1832 = vmatprep.subr.mxu0 0.0
      %1833 = vmatpush2.msra.mxu0 0.0
      %1834 = vmatprep.subr.mxu0 0.0
      %1835 = vmatpush2.msra.mxu0 0.0
      %1836 = vmatprep.subr.mxu0 0.0
      %1837 = vmatpush2.msra.mxu0 0.0
      %1838 = vmatprep.subr.mxu0 0.0
      %1839 = vmatpush2.msra.mxu0 0.0
      %1840 = vmatprep.subr.mxu0 0.0
      %1841 = vmatpush2.msra.mxu0 0.0
      %1842 = vmatprep.subr.mxu0 0.0
      %1843 = vmatpush2.msra.mxu0 0.0
      %1844 = vmatprep.subr.mxu0 0.0
      %1845 = vmatpush2.msra.mxu0 0.0
      %1846 = vmatprep.subr.mxu0 0.0
      %1847 = vmatpush2.msra.mxu0 0.0
      %1848 = vmatprep.subr.mxu0 0.0
      %1849 = vmatpush2.msra.mxu0 0.0
      %1850 = vmatprep.subr.mxu0 0.0
      %1851 = vmatpush2.msra.mxu0 0.0
      %1852 = vmatprep.subr.mxu0 0.0
      %1853 = vmatpush2.msra.mxu0 0.0
      %1854 = vmatprep.subr.mxu0 0.0
      %1855 = vmatpush2.msra.mxu0 0.0
      %1856 = vmatprep.subr.mxu0 0.0
      %1857 = vmatpush2.msra.mxu0 0.0
      %1858 = vmatprep.subr.mxu0 0.0
      %1859 = vmatpush2.msra.mxu0 0.0
      %1860 = vmatprep.subr.mxu0 0.0
      %1861 = vmatpush2.msra.mxu0 0.0
      %1862 = vmatprep.mubr.f32.mxu0 0.0
      %1863 = vmatmul.mubr.f32.gmra.mxu0 %v1793
      %v1864 = vpop.f32.mrf.mxu0
      %v1865 = vadd.f32 %v1790, %v1864
      %v1866 = vpop.f32.mrf.mxu0
      %1867 = vmatprep.mubr.f32.mxu0 0.0
      %1868 = vmatmul.mubr.f32.gmra.mxu0 %v1796
      %v1869 = vpop.f32.mrf.mxu0
      %v1870 = vadd.f32 %v1790, %v1869
      %v1871 = vpop.f32.mrf.mxu0
      %1872 = vdwg.mxu0
      %v1873 = vadd.f32 %v282, %v1865
      %v1874 = vadd.f32 %v283, %v1870
      %1875 = vst.msk [vmem:[%s280] sm:$0xff] %vm284, %v1873
      %1876 = vst.msk [vmem:[%s280 + $0x8] sm:$0xff] %vm284, %v1874
      %s1877 = smul.u32 2, %s18
      %p1878 = scmp.lt.s32.totalorder %s1877, 3
      %s1879 = scalar_select %p1878, %s1877, 3
      %s1880 = smul.addr %s1879, 8
      %s1881 = scalar_lea.vmem %s7, %s1880
      // Predicated region
      $region49: #{_lambda_.7} parent=47 // pred_check
        %p1882 = pneg %p188
      $region50: #{_lambda_.7} parent=47 // pred_check_branch
        %1884 = sbr.rel (%p1882) target = $region52
      $region51: #{_lambda_.7} parent=47 // pred_region
        %s1885 = smul.u32 2, %s18
      $region52: #{_lambda_.7} parent=47 // pred_fallthru
        _
    $region48: #{_lambda_.7} parent=5 // pred_fallthru
      _
    %p1886 = scmp.le.s32.totalorder 2, %s13
    // Predicated region
    $region53: #{_lambda_.7} parent=5 // pred_check
      %p1887 = pneg %p1886
    $region54: #{_lambda_.7} parent=5 // pred_check_branch
      %1889 = sbr.rel (%p1887) target = $region56
    $region55: #{_lambda_.7} parent=5 // pred_region
      %s1890 = ssub.s32 %s13, 2
      // Predicated region
      $region57: #{_lambda_.7} parent=55 // pred_check
        %p1891 = pneg %p194
      $region58: #{_lambda_.7} parent=55 // pred_check_branch
        %1893 = sbr.rel (%p1891) target = $region60
      $region59: #{_lambda_.7} parent=55 // pred_region
        %s1894 = smul.u32 2, %s19
        %p1895 = scmp.lt.s32.totalorder %s1894, 3
        %s1896 = scalar_select %p1895, %s1894, 3
        %s1897 = smul.addr %s1896, 8
        %s1898 = scalar_lea.vmem %s7, %s1897
      $region60: #{_lambda_.7} parent=55 // pred_fallthru
        _
    $region56: #{_lambda_.7} parent=5 // pred_fallthru
      _
  $region6: #{_lambda_.7} parent=0 // loop_footer
    %s17 = sadd.s32 1, %s13
  $region7: #{_lambda_.7} parent=0 // loop_footer_branch
    %12 = sbr.rel target = $region3
  $region8: #{_lambda_.7} parent=0 // loop_exit
    _

</llo_original>
